<compile_context>
chip_gen: v7x
topology: tpu7x:2x2x1
jax: 0.10.0
libtpu: 0.0.40
codegen_flags: <defaults>
</compile_context>

<pallas_src>
import math

import jax
import jax.numpy as jnp
from jax.experimental import pallas as pl
from jax.experimental.pallas import tpu as pltpu  # noqa: F401  (TPU backend)

TX_DIM = 32
DEPTH = 2
HEADS = 4
DIM_HEAD = 64            # x-transformers default dim_head
HD = HEADS * DIM_HEAD    # 256
LATENT_DIM = 16
MAX_SEQ_LEN = 64
FF_INNER = TX_DIM * 4    # 128
TIME_DIM = TX_DIM * 4    # 128
NUM_BUCKETS = 32
MAX_DISTANCE = 128
EPS = 1e-5
NEG_INF = -1e9


def _gelu(x):
    # TODO(synk): torch nn.GELU default is the exact erf form; tanh approximation is
    # used here to stay within Mosaic-supported transcendentals (tiny numeric delta).
    return jax.nn.gelu(x, approximate=True)


def _ln(x, g, b):
    mu = jnp.mean(x, axis=-1, keepdims=True)
    var = jnp.mean(jnp.square(x - mu), axis=-1, keepdims=True)
    return (x - mu) * jax.lax.rsqrt(var + EPS) * g + b


# ----------------------------- fused Pallas kernel -----------------------------

def _fused_forward_kernel(
        x_ref, sinu_ref, bias_ref, pos_ref,
        time_w_ref, time_b_ref, tpe_w_ref, in_w_ref,
        gvec_ref, lvec_ref, w_in_ref, ff_b1_ref, w_out_ref,
        out_w_ref, out_b_ref,
        o_ref):
    f32 = jnp.float32
    B = sinu_ref.shape[0]
    BL = x_ref.shape[0]
    L = BL // B

    gvec = gvec_ref[...]               # (6, D): tpe_b, in_b, enc_g, enc_b, norm_g, norm_b

    # ---- time MLP: Linear(D,4D) -> GELU -> Linear(4D,4D); then GELU -> Linear(4D,D) ----
    t = jnp.dot(sinu_ref[...], time_w_ref[0:TX_DIM, :],
                preferred_element_type=f32) + time_b_ref[0:1, :]
    t = jnp.dot(_gelu(t), time_w_ref[TX_DIM:TX_DIM + TIME_DIM, :],
                preferred_element_type=f32) + time_b_ref[1:2, :]
    tpe = jnp.dot(_gelu(t), tpe_w_ref[...],
                  preferred_element_type=f32) + gvec[0:1, :]               # (B, D)
    # broadcast each batch's time embedding onto its L rows of the flattened slab
    tpe_rows = jnp.concatenate(
        [jnp.broadcast_to(tpe[b:b + 1, :], (L, TX_DIM)) for b in range(B)], axis=0)

    # ---- input projection + absolute pos emb + time pos emb ----
    h = jnp.dot(x_ref[...], in_w_ref[...], preferred_element_type=f32) + gvec[1:2, :]
    h = h + pos_ref[...] + tpe_rows                                        # (B*L, D)

    bias = bias_ref[...]   # (H, B*L, B*L): T5 bias (carries the sqrt(dim_head) factor)
                           # on in-batch blocks, -1e9 on cross-batch blocks
    scale = DIM_HEAD ** -0.5

    for l in range(DEPTH):
        lv = lvec_ref[l]   # (6, D): ln1_g, ln1_b, bo, ln2_g, ln2_b, ff_b2

        # ---- self-attention block (pre-norm + residual), fused QKV matmul ----
        hn = _ln(h, lv[0:1, :], lv[1:2, :])
        qkv = jnp.dot(hn, w_in_ref[l, :, 0:3 * HD],
                      preferred_element_type=f32)                          # (B*L, 3*H*Dh)
        head_outs = []
        for hh in range(HEADS):
            q = qkv[:, hh * DIM_HEAD:(hh + 1) * DIM_HEAD]
            k = qkv[:, HD + hh * DIM_HEAD:HD + (hh + 1) * DIM_HEAD]
            v = qkv[:, 2 * HD + hh * DIM_HEAD:2 * HD + (hh + 1) * DIM_HEAD]
            s = jax.lax.dot_general(q, k, (((1,), (1,)), ((), ())),
                                    preferred_element_type=f32) * scale
            s = s + bias[hh]
            m = jnp.max(s, axis=-1, keepdims=True)
            p = jnp.exp(s - m)
            p = p / jnp.sum(p, axis=-1, keepdims=True)
            head_outs.append(jnp.dot(p, v, preferred_element_type=f32))
        a = jnp.concatenate(head_outs, axis=-1)                            # (B*L, H*Dh)
        h = h + jnp.dot(a, w_out_ref[l, 0:HD, :],
                        preferred_element_type=f32) + lv[2:3, :]

        # ---- feed-forward GLU block (pre-norm + residual) ----
        hn = _ln(h, lv[3:4, :], lv[4:5, :])
        u = jnp.dot(hn, w_in_ref[l, :, 3 * HD:3 * HD + 2 * FF_INNER],
                    preferred_element_type=f32) + ff_b1_ref[l]             # (B*L, 2*FF_INNER)
        f = u[:, 0:FF_INNER] * _gelu(u[:, FF_INNER:2 * FF_INNER])
        h = h + jnp.dot(f, w_out_ref[l, HD:HD + FF_INNER, :],
                        preferred_element_type=f32) + lv[5:6, :]

    # ---- epilogue: encoder final pre-norm LN -> self.norm -> zero-init output_proj ----
    h = _ln(h, gvec[2:3, :], gvec[3:4, :])
    h = _ln(h, gvec[4:5, :], gvec[5:6, :])
    o_ref[...] = (jnp.dot(h, out_w_ref[...], preferred_element_type=f32)
                  + out_b_ref[...]).astype(o_ref.dtype)


def forward(packed, x, time, bias_full, pos_tiled):
    """x: (B, L, latent_dim) f32, time: (B,) f32,
    bias_full: (H, B*L, B*L) f32, pos_tiled: (B*L, D) f32."""
    B, L, _ = x.shape
    D = TX_DIM

    # SinusoidalPosEmb (tiny; left to XLA, rides into the fused kernel as a (B, D) input)
    half = D // 2
    freqs = jnp.exp(jnp.arange(half, dtype=jnp.float32) * -(math.log(10000.0) / (half - 1)))
    ang = time[:, None] * freqs[None, :]
    sinu = jnp.concatenate([jnp.sin(ang), jnp.cos(ang)], axis=-1)          # (B, D)

    x_flat = x.reshape(B * L, LATENT_DIM)                                  # free bitcast

    out_flat = pl.pallas_call(
        _fused_forward_kernel,
        out_shape=jax.ShapeDtypeStruct((B * L, LATENT_DIM), jnp.float32),
    )(x_flat, sinu, bias_full, pos_tiled,
      packed['time_w'], packed['time_b'], packed['tpe_w'], packed['in_w'],
      packed['gvec'], packed['lvec'], packed['w_in'], packed['ff_b1'],
      packed['w_out'], packed['out_w'], packed['out_b'])
    return out_flat.reshape(B, L, LATENT_DIM)


# ----------------------------- parameters -----------------------------

def _linear_init(key, fan_in, fan_out, bias=True):
    kw, kb = jax.random.split(key)
    bound = 1.0 / math.sqrt(fan_in)
    w = jax.random.uniform(kw, (fan_in, fan_out), jnp.float32, -bound, bound)
    b = (jax.random.uniform(kb, (fan_out,), jnp.float32, -bound, bound)
         if bias else jnp.zeros((fan_out,), jnp.float32))
    return w, b


def init_params(key):
    keys = iter(jax.random.split(key, 64))
    p = {}
    # time_mlp: Linear(D, 4D) -> GELU -> Linear(4D, 4D)
    p['time_w1'], p['time_b1'] = _linear_init(next(keys), TX_DIM, TIME_DIM)
    p['time_w2'], p['time_b2'] = _linear_init(next(keys), TIME_DIM, TIME_DIM)
    # time_pos_embed_mlp: GELU -> Linear(4D, D)
    p['tpe_w'], p['tpe_b'] = _linear_init(next(keys), TIME_DIM, TX_DIM)
    # AbsolutePositionalEmbedding table (scaled by D**-0.5 at use site)
    p['pos_emb'] = jax.random.normal(next(keys), (MAX_SEQ_LEN, TX_DIM), jnp.float32)
    # input_proj
    p['in_w'], p['in_b'] = _linear_init(next(keys), LATENT_DIM, TX_DIM)
    # shared T5 relative position bias embedding (num_buckets, heads)
    p['rel_emb'] = jax.random.normal(next(keys), (NUM_BUCKETS, HEADS), jnp.float32)
    layers = []
    for _ in range(DEPTH):
        lp = {}
        lp['attn_norm_g'] = jnp.ones((TX_DIM,), jnp.float32)
        lp['attn_norm_b'] = jnp.zeros((TX_DIM,), jnp.float32)
        lp['wq'], _ = _linear_init(next(keys), TX_DIM, HD, bias=False)
        lp['wk'], _ = _linear_init(next(keys), TX_DIM, HD, bias=False)
        lp['wv'], _ = _linear_init(next(keys), TX_DIM, HD, bias=False)
        lp['wo'], lp['bo'] = _linear_init(next(keys), HD, TX_DIM)
        lp['ff_norm_g'] = jnp.ones((TX_DIM,), jnp.float32)
        lp['ff_norm_b'] = jnp.zeros((TX_DIM,), jnp.float32)
        lp['ff_w1'], lp['ff_b1'] = _linear_init(next(keys), TX_DIM, 2 * FF_INNER)
        lp['ff_w2'], lp['ff_b2'] = _linear_init(next(keys), FF_INNER, TX_DIM)
        layers.append(lp)
    p['layers'] = layers
    p['enc_norm_g'] = jnp.ones((TX_DIM,), jnp.float32)   # encoder final pre-norm LN
    p['enc_norm_b'] = jnp.zeros((TX_DIM,), jnp.float32)
    p['out_norm_g'] = jnp.ones((TX_DIM,), jnp.float32)   # self.norm
    p['out_norm_b'] = jnp.zeros((TX_DIM,), jnp.float32)
    # output_proj is zero-initialized in the reference (init_zero_)
    p['out_w'] = jnp.zeros((TX_DIM, LATENT_DIM), jnp.float32)
    p['out_b'] = jnp.zeros((LATENT_DIM,), jnp.float32)
    return p


def pack_params(p):
    """Consolidate params into a few VMEM-friendly slabs (fewer DMAs, fused matmuls)."""
    layers = p['layers']
    packed = {
        # time-MLP weights stacked along rows: rows [0:32)=w1, [32:160)=w2
        'time_w': jnp.concatenate([p['time_w1'], p['time_w2']], axis=0),       # (160, 128)
        'time_b': jnp.stack([p['time_b1'], p['time_b2']]),                     # (2, 128)
        'tpe_w': p['tpe_w'],                                                   # (128, 32)
        'in_w': p['in_w'],                                                     # (16, 32)
        # global row vectors: tpe_b, in_b, enc_g, enc_b, norm_g, norm_b
        'gvec': jnp.stack([p['tpe_b'], p['in_b'], p['enc_norm_g'], p['enc_norm_b'],
                           p['out_norm_g'], p['out_norm_b']]),                 # (6, 32)
        'out_w': p['out_w'],                                                   # (32, 16)
        'out_b': p['out_b'].reshape(1, -1),                                    # (1, 16)
    }
    # per-layer row vectors: ln1_g, ln1_b, bo, ln2_g, ln2_b, ff_b2
    packed['lvec'] = jnp.stack(
        [jnp.stack([lp['attn_norm_g'], lp['attn_norm_b'], lp['bo'],
                    lp['ff_norm_g'], lp['ff_norm_b'], lp['ff_b2']])
         for lp in layers])                                                    # (DEPTH, 6, 32)
    # fused "into-hidden" weights: [wq|wk|wv|ff_w1] along lanes
    packed['w_in'] = jnp.stack(
        [jnp.concatenate([lp['wq'], lp['wk'], lp['wv'], lp['ff_w1']], axis=1)
         for lp in layers])                                                    # (DEPTH, 32, 1024)
    packed['ff_b1'] = jnp.stack([lp['ff_b1'].reshape(1, -1) for lp in layers])  # (DEPTH, 1, 256)
    # fused "back-to-dim" weights: [wo; ff_w2] along rows
    packed['w_out'] = jnp.stack(
        [jnp.concatenate([lp['wo'], lp['ff_w2']], axis=0) for lp in layers])   # (DEPTH, 384, 32)
    return packed


def rel_pos_bias(rel_emb, L):
    """T5-style bidirectional relative position bias -> (H, L, L). Precomputed once."""
    pos = jnp.arange(L)
    rel = pos[None, :] - pos[:, None]          # k_pos - q_pos
    n = -rel
    nb = NUM_BUCKETS // 2
    ret = (n < 0).astype(jnp.int32) * nb
    n = jnp.abs(n)
    max_exact = nb // 2
    is_small = n < max_exact
    val_if_large = max_exact + (
        jnp.log(jnp.maximum(n, 1).astype(jnp.float32) / max_exact)
        / math.log(MAX_DISTANCE / max_exact) * (nb - max_exact)).astype(jnp.int32)
    val_if_large = jnp.minimum(val_if_large, nb - 1)
    bucket = ret + jnp.where(is_small, n, val_if_large)
    values = rel_emb[bucket]                   # (L, L, H)
    return jnp.transpose(values, (2, 0, 1)) * (DIM_HEAD ** 0.5)


def build_attn_bias(rel_emb, B, L):
    """(H, B*L, B*L): T5 bias on in-batch diagonal blocks, -1e9 on cross-batch blocks.

    Lets the kernel run each attention head over the whole flattened batch with a
    single score / value matmul (cross-batch attention is masked out by the bias)."""
    base = rel_pos_bias(rel_emb, L)                            # (H, L, L)
    tiled = jnp.tile(base, (1, B, B))                          # (H, B*L, B*L)
    bidx = jnp.arange(B * L) // L
    same = bidx[:, None] == bidx[None, :]
    return jnp.where(same[None, :, :], tiled, jnp.float32(NEG_INF))


if __name__ == "__main__":
    key = jax.random.PRNGKey(0)
    kp, kx, kt = jax.random.split(key, 3)
    params = init_params(kp)
    packed = pack_params(params)

    B, L = 2, 8
    # Hoisted constants (depend only on B, L and params): block-diagonal T5 bias and
    # batch-tiled, scaled absolute positional embedding.
    bias_full = build_attn_bias(params['rel_emb'], B, L)              # (H, B*L, B*L)
    pos_tiled = jnp.tile(params['pos_emb'][:L] * (TX_DIM ** -0.5), (B, 1))  # (B*L, D)

    x = jax.random.normal(kx, (B, L, LATENT_DIM), jnp.float32)
    time = jax.random.uniform(kt, (B,), jnp.float32, minval=0.0, maxval=1.0)

    out = jax.jit(forward)(packed, x, time, bias_full, pos_tiled)
    jax.block_until_ready(out)
    assert out.shape == (B, L, LATENT_DIM) and out.dtype == jnp.float32
    print("KERNEL_OK")
</pallas_src>

<mosaic_0001>
module attributes {stable_mosaic.version = 11 : i64} {
  func.func @_fused_forward_kernel(%arg0: memref<16x16xf32, #tpu.memory_space<vmem>>, %arg1: memref<2x32xf32, #tpu.memory_space<vmem>>, %arg2: memref<4x16x16xf32, #tpu.memory_space<vmem>>, %arg3: memref<16x32xf32, #tpu.memory_space<vmem>>, %arg4: memref<160x128xf32, #tpu.memory_space<vmem>>, %arg5: memref<2x128xf32, #tpu.memory_space<vmem>>, %arg6: memref<128x32xf32, #tpu.memory_space<vmem>>, %arg7: memref<16x32xf32, #tpu.memory_space<vmem>>, %arg8: memref<6x32xf32, #tpu.memory_space<vmem>>, %arg9: memref<2x6x32xf32, #tpu.memory_space<vmem>>, %arg10: memref<2x32x1024xf32, #tpu.memory_space<vmem>>, %arg11: memref<2x1x256xf32, #tpu.memory_space<vmem>>, %arg12: memref<2x384x32xf32, #tpu.memory_space<vmem>>, %arg13: memref<32x16xf32, #tpu.memory_space<vmem>>, %arg14: memref<1x16xf32, #tpu.memory_space<vmem>>, %arg15: memref<16x16xf32, #tpu.memory_space<vmem>>) attributes {dimension_semantics = [], scalar_prefetch = 0 : i64, scratch_operands = 0 : i64, tpu.core_type = #tpu.core_type<tc>} {
    %c0 = arith.constant 0 : index
    %c0_0 = arith.constant 0 : index
    %0 = vector.load %arg8[%c0, %c0_0] : memref<6x32xf32, #tpu.memory_space<vmem>>, vector<6x32xf32>
    %c0_1 = arith.constant 0 : index
    %c0_2 = arith.constant 0 : index
    %1 = vector.load %arg1[%c0_1, %c0_2] : memref<2x32xf32, #tpu.memory_space<vmem>>, vector<2x32xf32>
    %c0_3 = arith.constant 0 : index
    %c0_4 = arith.constant 0 : index
    %2 = vector.load %arg4[%c0_3, %c0_4] : memref<160x128xf32, #tpu.memory_space<vmem>>, vector<32x128xf32>
    %cst = arith.constant dense<0.000000e+00> : vector<2x128xf32>
    %3 = tpu.matmul %1, %2, %cst {dimension_numbers = #tpu.dot_dimension_numbers<[1], [0], [0], [1], [0, 0, 1, 1], [], []>} : vector<2x32xf32>, vector<32x128xf32>, vector<2x128xf32> -> vector<2x128xf32>
    %c0_5 = arith.constant 0 : index
    %c0_6 = arith.constant 0 : index
    %4 = vector.load %arg5[%c0_5, %c0_6] : memref<2x128xf32, #tpu.memory_space<vmem>>, vector<1x128xf32>
    %5 = vector.broadcast %4 : vector<1x128xf32> to vector<2x128xf32>
    %6 = arith.addf %3, %5 : vector<2x128xf32>
    %7 = arith.mulf %6, %6 : vector<2x128xf32>
    %8 = arith.mulf %6, %7 : vector<2x128xf32>
    %cst_7 = arith.constant 4.471500e-02 : f32
    %9 = vector.broadcast %cst_7 : f32 to vector<2x128xf32>
    %10 = arith.mulf %9, %8 : vector<2x128xf32>
    %11 = arith.addf %6, %10 : vector<2x128xf32>
    %cst_8 = arith.constant 0.797884583 : f32
    %12 = vector.broadcast %cst_8 : f32 to vector<2x128xf32>
    %13 = arith.mulf %12, %11 : vector<2x128xf32>
    %14 = math.tanh %13 : vector<2x128xf32>
    %cst_9 = arith.constant 1.000000e+00 : f32
    %15 = vector.broadcast %cst_9 : f32 to vector<2x128xf32>
    %16 = arith.addf %15, %14 : vector<2x128xf32>
    %cst_10 = arith.constant 5.000000e-01 : f32
    %17 = vector.broadcast %cst_10 : f32 to vector<2x128xf32>
    %18 = arith.mulf %17, %16 : vector<2x128xf32>
    %19 = arith.mulf %6, %18 : vector<2x128xf32>
    %c32 = arith.constant 32 : index
    %c0_11 = arith.constant 0 : index
    %20 = vector.load %arg4[%c32, %c0_11] : memref<160x128xf32, #tpu.memory_space<vmem>>, vector<128x128xf32>
    %cst_12 = arith.constant dense<0.000000e+00> : vector<2x128xf32>
    %21 = tpu.matmul %19, %20, %cst_12 {dimension_numbers = #tpu.dot_dimension_numbers<[1], [0], [0], [1], [0, 0, 1, 1], [], []>} : vector<2x128xf32>, vector<128x128xf32>, vector<2x128xf32> -> vector<2x128xf32>
    %c1 = arith.constant 1 : index
    %c0_13 = arith.constant 0 : index
    %22 = vector.load %arg5[%c1, %c0_13] : memref<2x128xf32, #tpu.memory_space<vmem>>, vector<1x128xf32>
    %23 = vector.broadcast %22 : vector<1x128xf32> to vector<2x128xf32>
    %24 = arith.addf %21, %23 : vector<2x128xf32>
    %25 = arith.mulf %24, %24 : vector<2x128xf32>
    %26 = arith.mulf %24, %25 : vector<2x128xf32>
    %cst_14 = arith.constant 4.471500e-02 : f32
    %27 = vector.broadcast %cst_14 : f32 to vector<2x128xf32>
    %28 = arith.mulf %27, %26 : vector<2x128xf32>
    %29 = arith.addf %24, %28 : vector<2x128xf32>
    %cst_15 = arith.constant 0.797884583 : f32
    %30 = vector.broadcast %cst_15 : f32 to vector<2x128xf32>
    %31 = arith.mulf %30, %29 : vector<2x128xf32>
    %32 = math.tanh %31 : vector<2x128xf32>
    %cst_16 = arith.constant 1.000000e+00 : f32
    %33 = vector.broadcast %cst_16 : f32 to vector<2x128xf32>
    %34 = arith.addf %33, %32 : vector<2x128xf32>
    %cst_17 = arith.constant 5.000000e-01 : f32
    %35 = vector.broadcast %cst_17 : f32 to vector<2x128xf32>
    %36 = arith.mulf %35, %34 : vector<2x128xf32>
    %37 = arith.mulf %24, %36 : vector<2x128xf32>
    %c0_18 = arith.constant 0 : index
    %c0_19 = arith.constant 0 : index
    %38 = vector.load %arg6[%c0_18, %c0_19] : memref<128x32xf32, #tpu.memory_space<vmem>>, vector<128x32xf32>
    %cst_20 = arith.constant dense<0.000000e+00> : vector<2x32xf32>
    %39 = tpu.matmul %37, %38, %cst_20 {dimension_numbers = #tpu.dot_dimension_numbers<[1], [0], [0], [1], [0, 0, 1, 1], [], []>} : vector<2x128xf32>, vector<128x32xf32>, vector<2x32xf32> -> vector<2x32xf32>
    %40 = vector.extract_strided_slice %0 {offsets = [0, 0], sizes = [1, 32], strides = [1, 1]} : vector<6x32xf32> to vector<1x32xf32>
    %41 = vector.broadcast %40 : vector<1x32xf32> to vector<2x32xf32>
    %42 = arith.addf %39, %41 : vector<2x32xf32>
    %43 = vector.extract_strided_slice %42 {offsets = [0, 0], sizes = [1, 32], strides = [1, 1]} : vector<2x32xf32> to vector<1x32xf32>
    %44 = vector.shape_cast %43 : vector<1x32xf32> to vector<1x32xf32>
    %45 = vector.broadcast %44 : vector<1x32xf32> to vector<8x32xf32>
    %46 = vector.extract_strided_slice %42 {offsets = [1, 0], sizes = [1, 32], strides = [1, 1]} : vector<2x32xf32> to vector<1x32xf32>
    %47 = vector.shape_cast %46 : vector<1x32xf32> to vector<1x32xf32>
    %48 = vector.broadcast %47 : vector<1x32xf32> to vector<8x32xf32>
    %49 = tpu.concatenate %45, %48 in 0 : vector<8x32xf32>, vector<8x32xf32> -> vector<16x32xf32>
    %c0_21 = arith.constant 0 : index
    %c0_22 = arith.constant 0 : index
    %50 = vector.load %arg0[%c0_21, %c0_22] : memref<16x16xf32, #tpu.memory_space<vmem>>, vector<16x16xf32>
    %c0_23 = arith.constant 0 : index
    %c0_24 = arith.constant 0 : index
    %51 = vector.load %arg7[%c0_23, %c0_24] : memref<16x32xf32, #tpu.memory_space<vmem>>, vector<16x32xf32>
    %cst_25 = arith.constant dense<0.000000e+00> : vector<16x32xf32>
    %52 = tpu.matmul %50, %51, %cst_25 {dimension_numbers = #tpu.dot_dimension_numbers<[1], [0], [0], [1], [0, 0, 1, 1], [], []>} : vector<16x16xf32>, vector<16x32xf32>, vector<16x32xf32> -> vector<16x32xf32>
    %53 = vector.extract_strided_slice %0 {offsets = [1, 0], sizes = [1, 32], strides = [1, 1]} : vector<6x32xf32> to vector<1x32xf32>
    %54 = vector.broadcast %53 : vector<1x32xf32> to vector<16x32xf32>
    %55 = arith.addf %52, %54 : vector<16x32xf32>
    %c0_26 = arith.constant 0 : index
    %c0_27 = arith.constant 0 : index
    %56 = vector.load %arg3[%c0_26, %c0_27] : memref<16x32xf32, #tpu.memory_space<vmem>>, vector<16x32xf32>
    %57 = arith.addf %55, %56 : vector<16x32xf32>
    %58 = arith.addf %57, %49 : vector<16x32xf32>
    %c0_28 = arith.constant 0 : index
    %c0_29 = arith.constant 0 : index
    %c0_30 = arith.constant 0 : index
    %59 = vector.load %arg2[%c0_28, %c0_29, %c0_30] : memref<4x16x16xf32, #tpu.memory_space<vmem>>, vector<4x16x16xf32>
    %c0_31 = arith.constant 0 : index
    %c0_32 = arith.constant 0 : index
    %c0_33 = arith.constant 0 : index
    %60 = vector.load %arg9[%c0_31, %c0_32, %c0_33] : memref<2x6x32xf32, #tpu.memory_space<vmem>>, vector<1x6x32xf32>
    %61 = vector.shape_cast %60 : vector<1x6x32xf32> to vector<6x32xf32>
    %62 = vector.extract_strided_slice %61 {offsets = [0, 0], sizes = [1, 32], strides = [1, 1]} : vector<6x32xf32> to vector<1x32xf32>
    %63 = vector.extract_strided_slice %61 {offsets = [1, 0], sizes = [1, 32], strides = [1, 1]} : vector<6x32xf32> to vector<1x32xf32>
    %cst_34 = arith.constant dense<0.000000e+00> : vector<16xf32>
    %64 = vector.multi_reduction <add>, %58, %cst_34 [1] : vector<16x32xf32> to vector<16xf32>
    %65 = vector.shape_cast %64 : vector<16xf32> to vector<16x1xf32>
    %cst_35 = arith.constant 3.200000e+01 : f32
    %66 = vector.broadcast %cst_35 : f32 to vector<16x1xf32>
    %67 = arith.divf %65, %66 : vector<16x1xf32>
    %68 = vector.broadcast %67 : vector<16x1xf32> to vector<16x32xf32>
    %69 = arith.subf %58, %68 : vector<16x32xf32>
    %70 = arith.mulf %69, %69 : vector<16x32xf32>
    %cst_36 = arith.constant dense<0.000000e+00> : vector<16xf32>
    %71 = vector.multi_reduction <add>, %70, %cst_36 [1] : vector<16x32xf32> to vector<16xf32>
    %72 = vector.shape_cast %71 : vector<16xf32> to vector<16x1xf32>
    %cst_37 = arith.constant 3.200000e+01 : f32
    %73 = vector.broadcast %cst_37 : f32 to vector<16x1xf32>
    %74 = arith.divf %72, %73 : vector<16x1xf32>
    %75 = vector.broadcast %67 : vector<16x1xf32> to vector<16x32xf32>
    %76 = arith.subf %58, %75 : vector<16x32xf32>
    %cst_38 = arith.constant 9.99999974E-6 : f32
    %77 = vector.broadcast %cst_38 : f32 to vector<16x1xf32>
    %78 = arith.addf %74, %77 : vector<16x1xf32>
    %79 = math.rsqrt %78 : vector<16x1xf32>
    %80 = vector.broadcast %79 : vector<16x1xf32> to vector<16x32xf32>
    %81 = arith.mulf %76, %80 : vector<16x32xf32>
    %82 = vector.broadcast %62 : vector<1x32xf32> to vector<16x32xf32>
    %83 = arith.mulf %81, %82 : vector<16x32xf32>
    %84 = vector.broadcast %63 : vector<1x32xf32> to vector<16x32xf32>
    %85 = arith.addf %83, %84 : vector<16x32xf32>
    %c0_39 = arith.constant 0 : index
    %c0_40 = arith.constant 0 : index
    %c0_41 = arith.constant 0 : index
    %86 = vector.load %arg10[%c0_39, %c0_40, %c0_41] : memref<2x32x1024xf32, #tpu.memory_space<vmem>>, vector<1x32x768xf32>
    %87 = vector.shape_cast %86 : vector<1x32x768xf32> to vector<32x768xf32>
    %cst_42 = arith.constant dense<0.000000e+00> : vector<16x768xf32>
    %88 = tpu.matmul %85, %87, %cst_42 {dimension_numbers = #tpu.dot_dimension_numbers<[1], [0], [0], [1], [0, 0, 1, 1], [], []>} : vector<16x32xf32>, vector<32x768xf32>, vector<16x768xf32> -> vector<16x768xf32>
    %89 = vector.extract_strided_slice %88 {offsets = [0, 0], sizes = [16, 64], strides = [1, 1]} : vector<16x768xf32> to vector<16x64xf32>
    %90 = vector.extract_strided_slice %88 {offsets = [0, 256], sizes = [16, 64], strides = [1, 1]} : vector<16x768xf32> to vector<16x64xf32>
    %91 = vector.extract_strided_slice %88 {offsets = [0, 512], sizes = [16, 64], strides = [1, 1]} : vector<16x768xf32> to vector<16x64xf32>
    %cst_43 = arith.constant dense<0.000000e+00> : vector<16x16xf32>
    %92 = tpu.matmul %89, %90, %cst_43 {dimension_numbers = #tpu.dot_dimension_numbers<[1], [1], [0], [0], [0, 0, 1, 0], [], []>} : vector<16x64xf32>, vector<16x64xf32>, vector<16x16xf32> -> vector<16x16xf32>
    %cst_44 = arith.constant 1.250000e-01 : f32
    %93 = vector.broadcast %cst_44 : f32 to vector<16x16xf32>
    %94 = arith.mulf %92, %93 : vector<16x16xf32>
    %95 = vector.extract_strided_slice %59 {offsets = [0, 0, 0], sizes = [1, 16, 16], strides = [1, 1, 1]} : vector<4x16x16xf32> to vector<1x16x16xf32>
    %96 = vector.shape_cast %95 : vector<1x16x16xf32> to vector<16x16xf32>
    %97 = arith.addf %94, %96 : vector<16x16xf32>
    %cst_45 = arith.constant dense<0xFF800000> : vector<16xf32>
    %98 = vector.multi_reduction <maximumf>, %97, %cst_45 [1] : vector<16x16xf32> to vector<16xf32>
    %99 = vector.shape_cast %98 : vector<16xf32> to vector<16x1xf32>
    %100 = vector.broadcast %99 : vector<16x1xf32> to vector<16x16xf32>
    %101 = arith.subf %97, %100 : vector<16x16xf32>
    %102 = math.exp %101 : vector<16x16xf32>
    %cst_46 = arith.constant dense<0.000000e+00> : vector<16xf32>
    %103 = vector.multi_reduction <add>, %102, %cst_46 [1] : vector<16x16xf32> to vector<16xf32>
    %104 = vector.shape_cast %103 : vector<16xf32> to vector<16x1xf32>
    %105 = vector.broadcast %104 : vector<16x1xf32> to vector<16x16xf32>
    %106 = arith.divf %102, %105 : vector<16x16xf32>
    %cst_47 = arith.constant dense<0.000000e+00> : vector<16x64xf32>
    %107 = tpu.matmul %106, %91, %cst_47 {dimension_numbers = #tpu.dot_dimension_numbers<[1], [0], [0], [1], [0, 0, 1, 1], [], []>} : vector<16x16xf32>, vector<16x64xf32>, vector<16x64xf32> -> vector<16x64xf32>
    %108 = vector.extract_strided_slice %88 {offsets = [0, 64], sizes = [16, 64], strides = [1, 1]} : vector<16x768xf32> to vector<16x64xf32>
    %109 = vector.extract_strided_slice %88 {offsets = [0, 320], sizes = [16, 64], strides = [1, 1]} : vector<16x768xf32> to vector<16x64xf32>
    %110 = vector.extract_strided_slice %88 {offsets = [0, 576], sizes = [16, 64], strides = [1, 1]} : vector<16x768xf32> to vector<16x64xf32>
    %cst_48 = arith.constant dense<0.000000e+00> : vector<16x16xf32>
    %111 = tpu.matmul %108, %109, %cst_48 {dimension_numbers = #tpu.dot_dimension_numbers<[1], [1], [0], [0], [0, 0, 1, 0], [], []>} : vector<16x64xf32>, vector<16x64xf32>, vector<16x16xf32> -> vector<16x16xf32>
    %cst_49 = arith.constant 1.250000e-01 : f32
    %112 = vector.broadcast %cst_49 : f32 to vector<16x16xf32>
    %113 = arith.mulf %111, %112 : vector<16x16xf32>
    %114 = vector.extract_strided_slice %59 {offsets = [1, 0, 0], sizes = [1, 16, 16], strides = [1, 1, 1]} : vector<4x16x16xf32> to vector<1x16x16xf32>
    %115 = vector.shape_cast %114 : vector<1x16x16xf32> to vector<16x16xf32>
    %116 = arith.addf %113, %115 : vector<16x16xf32>
    %cst_50 = arith.constant dense<0xFF800000> : vector<16xf32>
    %117 = vector.multi_reduction <maximumf>, %116, %cst_50 [1] : vector<16x16xf32> to vector<16xf32>
    %118 = vector.shape_cast %117 : vector<16xf32> to vector<16x1xf32>
    %119 = vector.broadcast %118 : vector<16x1xf32> to vector<16x16xf32>
    %120 = arith.subf %116, %119 : vector<16x16xf32>
    %121 = math.exp %120 : vector<16x16xf32>
    %cst_51 = arith.constant dense<0.000000e+00> : vector<16xf32>
    %122 = vector.multi_reduction <add>, %121, %cst_51 [1] : vector<16x16xf32> to vector<16xf32>
    %123 = vector.shape_cast %122 : vector<16xf32> to vector<16x1xf32>
    %124 = vector.broadcast %123 : vector<16x1xf32> to vector<16x16xf32>
    %125 = arith.divf %121, %124 : vector<16x16xf32>
    %cst_52 = arith.constant dense<0.000000e+00> : vector<16x64xf32>
    %126 = tpu.matmul %125, %110, %cst_52 {dimension_numbers = #tpu.dot_dimension_numbers<[1], [0], [0], [1], [0, 0, 1, 1], [], []>} : vector<16x16xf32>, vector<16x64xf32>, vector<16x64xf32> -> vector<16x64xf32>
    %127 = vector.extract_strided_slice %88 {offsets = [0, 128], sizes = [16, 64], strides = [1, 1]} : vector<16x768xf32> to vector<16x64xf32>
    %128 = vector.extract_strided_slice %88 {offsets = [0, 384], sizes = [16, 64], strides = [1, 1]} : vector<16x768xf32> to vector<16x64xf32>
    %129 = vector.extract_strided_slice %88 {offsets = [0, 640], sizes = [16, 64], strides = [1, 1]} : vector<16x768xf32> to vector<16x64xf32>
    %cst_53 = arith.constant dense<0.000000e+00> : vector<16x16xf32>
    %130 = tpu.matmul %127, %128, %cst_53 {dimension_numbers = #tpu.dot_dimension_numbers<[1], [1], [0], [0], [0, 0, 1, 0], [], []>} : vector<16x64xf32>, vector<16x64xf32>, vector<16x16xf32> -> vector<16x16xf32>
    %cst_54 = arith.constant 1.250000e-01 : f32
    %131 = vector.broadcast %cst_54 : f32 to vector<16x16xf32>
    %132 = arith.mulf %130, %131 : vector<16x16xf32>
    %133 = vector.extract_strided_slice %59 {offsets = [2, 0, 0], sizes = [1, 16, 16], strides = [1, 1, 1]} : vector<4x16x16xf32> to vector<1x16x16xf32>
    %134 = vector.shape_cast %133 : vector<1x16x16xf32> to vector<16x16xf32>
    %135 = arith.addf %132, %134 : vector<16x16xf32>
    %cst_55 = arith.constant dense<0xFF800000> : vector<16xf32>
    %136 = vector.multi_reduction <maximumf>, %135, %cst_55 [1] : vector<16x16xf32> to vector<16xf32>
    %137 = vector.shape_cast %136 : vector<16xf32> to vector<16x1xf32>
    %138 = vector.broadcast %137 : vector<16x1xf32> to vector<16x16xf32>
    %139 = arith.subf %135, %138 : vector<16x16xf32>
    %140 = math.exp %139 : vector<16x16xf32>
    %cst_56 = arith.constant dense<0.000000e+00> : vector<16xf32>
    %141 = vector.multi_reduction <add>, %140, %cst_56 [1] : vector<16x16xf32> to vector<16xf32>
    %142 = vector.shape_cast %141 : vector<16xf32> to vector<16x1xf32>
    %143 = vector.broadcast %142 : vector<16x1xf32> to vector<16x16xf32>
    %144 = arith.divf %140, %143 : vector<16x16xf32>
    %cst_57 = arith.constant dense<0.000000e+00> : vector<16x64xf32>
    %145 = tpu.matmul %144, %129, %cst_57 {dimension_numbers = #tpu.dot_dimension_numbers<[1], [0], [0], [1], [0, 0, 1, 1], [], []>} : vector<16x16xf32>, vector<16x64xf32>, vector<16x64xf32> -> vector<16x64xf32>
    %146 = vector.extract_strided_slice %88 {offsets = [0, 192], sizes = [16, 64], strides = [1, 1]} : vector<16x768xf32> to vector<16x64xf32>
    %147 = vector.extract_strided_slice %88 {offsets = [0, 448], sizes = [16, 64], strides = [1, 1]} : vector<16x768xf32> to vector<16x64xf32>
    %148 = vector.extract_strided_slice %88 {offsets = [0, 704], sizes = [16, 64], strides = [1, 1]} : vector<16x768xf32> to vector<16x64xf32>
    %cst_58 = arith.constant dense<0.000000e+00> : vector<16x16xf32>
    %149 = tpu.matmul %146, %147, %cst_58 {dimension_numbers = #tpu.dot_dimension_numbers<[1], [1], [0], [0], [0, 0, 1, 0], [], []>} : vector<16x64xf32>, vector<16x64xf32>, vector<16x16xf32> -> vector<16x16xf32>
    %cst_59 = arith.constant 1.250000e-01 : f32
    %150 = vector.broadcast %cst_59 : f32 to vector<16x16xf32>
    %151 = arith.mulf %149, %150 : vector<16x16xf32>
    %152 = vector.extract_strided_slice %59 {offsets = [3, 0, 0], sizes = [1, 16, 16], strides = [1, 1, 1]} : vector<4x16x16xf32> to vector<1x16x16xf32>
    %153 = vector.shape_cast %152 : vector<1x16x16xf32> to vector<16x16xf32>
    %154 = arith.addf %151, %153 : vector<16x16xf32>
    %cst_60 = arith.constant dense<0xFF800000> : vector<16xf32>
    %155 = vector.multi_reduction <maximumf>, %154, %cst_60 [1] : vector<16x16xf32> to vector<16xf32>
    %156 = vector.shape_cast %155 : vector<16xf32> to vector<16x1xf32>
    %157 = vector.broadcast %156 : vector<16x1xf32> to vector<16x16xf32>
    %158 = arith.subf %154, %157 : vector<16x16xf32>
    %159 = math.exp %158 : vector<16x16xf32>
    %cst_61 = arith.constant dense<0.000000e+00> : vector<16xf32>
    %160 = vector.multi_reduction <add>, %159, %cst_61 [1] : vector<16x16xf32> to vector<16xf32>
    %161 = vector.shape_cast %160 : vector<16xf32> to vector<16x1xf32>
    %162 = vector.broadcast %161 : vector<16x1xf32> to vector<16x16xf32>
    %163 = arith.divf %159, %162 : vector<16x16xf32>
    %cst_62 = arith.constant dense<0.000000e+00> : vector<16x64xf32>
    %164 = tpu.matmul %163, %148, %cst_62 {dimension_numbers = #tpu.dot_dimension_numbers<[1], [0], [0], [1], [0, 0, 1, 1], [], []>} : vector<16x16xf32>, vector<16x64xf32>, vector<16x64xf32> -> vector<16x64xf32>
    %165 = tpu.concatenate %107, %126, %145, %164 in 1 : vector<16x64xf32>, vector<16x64xf32>, vector<16x64xf32>, vector<16x64xf32> -> vector<16x256xf32>
    %c0_63 = arith.constant 0 : index
    %c0_64 = arith.constant 0 : index
    %c0_65 = arith.constant 0 : index
    %166 = vector.load %arg12[%c0_63, %c0_64, %c0_65] : memref<2x384x32xf32, #tpu.memory_space<vmem>>, vector<1x256x32xf32>
    %167 = vector.shape_cast %166 : vector<1x256x32xf32> to vector<256x32xf32>
    %cst_66 = arith.constant dense<0.000000e+00> : vector<16x32xf32>
    %168 = tpu.matmul %165, %167, %cst_66 {dimension_numbers = #tpu.dot_dimension_numbers<[1], [0], [0], [1], [0, 0, 1, 1], [], []>} : vector<16x256xf32>, vector<256x32xf32>, vector<16x32xf32> -> vector<16x32xf32>
    %169 = arith.addf %58, %168 : vector<16x32xf32>
    %170 = vector.extract_strided_slice %61 {offsets = [2, 0], sizes = [1, 32], strides = [1, 1]} : vector<6x32xf32> to vector<1x32xf32>
    %171 = vector.broadcast %170 : vector<1x32xf32> to vector<16x32xf32>
    %172 = arith.addf %169, %171 : vector<16x32xf32>
    %173 = vector.extract_strided_slice %61 {offsets = [3, 0], sizes = [1, 32], strides = [1, 1]} : vector<6x32xf32> to vector<1x32xf32>
    %174 = vector.extract_strided_slice %61 {offsets = [4, 0], sizes = [1, 32], strides = [1, 1]} : vector<6x32xf32> to vector<1x32xf32>
    %cst_67 = arith.constant dense<0.000000e+00> : vector<16xf32>
    %175 = vector.multi_reduction <add>, %172, %cst_67 [1] : vector<16x32xf32> to vector<16xf32>
    %176 = vector.shape_cast %175 : vector<16xf32> to vector<16x1xf32>
    %cst_68 = arith.constant 3.200000e+01 : f32
    %177 = vector.broadcast %cst_68 : f32 to vector<16x1xf32>
    %178 = arith.divf %176, %177 : vector<16x1xf32>
    %179 = vector.broadcast %178 : vector<16x1xf32> to vector<16x32xf32>
    %180 = arith.subf %172, %179 : vector<16x32xf32>
    %181 = arith.mulf %180, %180 : vector<16x32xf32>
    %cst_69 = arith.constant dense<0.000000e+00> : vector<16xf32>
    %182 = vector.multi_reduction <add>, %181, %cst_69 [1] : vector<16x32xf32> to vector<16xf32>
    %183 = vector.shape_cast %182 : vector<16xf32> to vector<16x1xf32>
    %cst_70 = arith.constant 3.200000e+01 : f32
    %184 = vector.broadcast %cst_70 : f32 to vector<16x1xf32>
    %185 = arith.divf %183, %184 : vector<16x1xf32>
    %186 = vector.broadcast %178 : vector<16x1xf32> to vector<16x32xf32>
    %187 = arith.subf %172, %186 : vector<16x32xf32>
    %cst_71 = arith.constant 9.99999974E-6 : f32
    %188 = vector.broadcast %cst_71 : f32 to vector<16x1xf32>
    %189 = arith.addf %185, %188 : vector<16x1xf32>
    %190 = math.rsqrt %189 : vector<16x1xf32>
    %191 = vector.broadcast %190 : vector<16x1xf32> to vector<16x32xf32>
    %192 = arith.mulf %187, %191 : vector<16x32xf32>
    %193 = vector.broadcast %173 : vector<1x32xf32> to vector<16x32xf32>
    %194 = arith.mulf %192, %193 : vector<16x32xf32>
    %195 = vector.broadcast %174 : vector<1x32xf32> to vector<16x32xf32>
    %196 = arith.addf %194, %195 : vector<16x32xf32>
    %c0_72 = arith.constant 0 : index
    %c0_73 = arith.constant 0 : index
    %c768 = arith.constant 768 : index
    %197 = vector.load %arg10[%c0_72, %c0_73, %c768] : memref<2x32x1024xf32, #tpu.memory_space<vmem>>, vector<1x32x256xf32>
    %198 = vector.shape_cast %197 : vector<1x32x256xf32> to vector<32x256xf32>
    %cst_74 = arith.constant dense<0.000000e+00> : vector<16x256xf32>
    %199 = tpu.matmul %196, %198, %cst_74 {dimension_numbers = #tpu.dot_dimension_numbers<[1], [0], [0], [1], [0, 0, 1, 1], [], []>} : vector<16x32xf32>, vector<32x256xf32>, vector<16x256xf32> -> vector<16x256xf32>
    %c0_75 = arith.constant 0 : index
    %c0_76 = arith.constant 0 : index
    %c0_77 = arith.constant 0 : index
    %200 = vector.load %arg11[%c0_75, %c0_76, %c0_77] : memref<2x1x256xf32, #tpu.memory_space<vmem>>, vector<1x1x256xf32>
    %201 = vector.shape_cast %200 : vector<1x1x256xf32> to vector<1x256xf32>
    %202 = vector.broadcast %201 : vector<1x256xf32> to vector<16x256xf32>
    %203 = arith.addf %199, %202 : vector<16x256xf32>
    %204 = vector.extract_strided_slice %203 {offsets = [0, 0], sizes = [16, 128], strides = [1, 1]} : vector<16x256xf32> to vector<16x128xf32>
    %205 = vector.extract_strided_slice %203 {offsets = [0, 128], sizes = [16, 128], strides = [1, 1]} : vector<16x256xf32> to vector<16x128xf32>
    %206 = arith.mulf %205, %205 : vector<16x128xf32>
    %207 = arith.mulf %205, %206 : vector<16x128xf32>
    %cst_78 = arith.constant 4.471500e-02 : f32
    %208 = vector.broadcast %cst_78 : f32 to vector<16x128xf32>
    %209 = arith.mulf %208, %207 : vector<16x128xf32>
    %210 = arith.addf %205, %209 : vector<16x128xf32>
    %cst_79 = arith.constant 0.797884583 : f32
    %211 = vector.broadcast %cst_79 : f32 to vector<16x128xf32>
    %212 = arith.mulf %211, %210 : vector<16x128xf32>
    %213 = math.tanh %212 : vector<16x128xf32>
    %cst_80 = arith.constant 1.000000e+00 : f32
    %214 = vector.broadcast %cst_80 : f32 to vector<16x128xf32>
    %215 = arith.addf %214, %213 : vector<16x128xf32>
    %cst_81 = arith.constant 5.000000e-01 : f32
    %216 = vector.broadcast %cst_81 : f32 to vector<16x128xf32>
    %217 = arith.mulf %216, %215 : vector<16x128xf32>
    %218 = arith.mulf %205, %217 : vector<16x128xf32>
    %219 = arith.mulf %204, %218 : vector<16x128xf32>
    %c0_82 = arith.constant 0 : index
    %c256 = arith.constant 256 : index
    %c0_83 = arith.constant 0 : index
    %220 = vector.load %arg12[%c0_82, %c256, %c0_83] : memref<2x384x32xf32, #tpu.memory_space<vmem>>, vector<1x128x32xf32>
    %221 = vector.shape_cast %220 : vector<1x128x32xf32> to vector<128x32xf32>
    %cst_84 = arith.constant dense<0.000000e+00> : vector<16x32xf32>
    %222 = tpu.matmul %219, %221, %cst_84 {dimension_numbers = #tpu.dot_dimension_numbers<[1], [0], [0], [1], [0, 0, 1, 1], [], []>} : vector<16x128xf32>, vector<128x32xf32>, vector<16x32xf32> -> vector<16x32xf32>
    %223 = arith.addf %172, %222 : vector<16x32xf32>
    %224 = vector.extract_strided_slice %61 {offsets = [5, 0], sizes = [1, 32], strides = [1, 1]} : vector<6x32xf32> to vector<1x32xf32>
    %225 = vector.broadcast %224 : vector<1x32xf32> to vector<16x32xf32>
    %226 = arith.addf %223, %225 : vector<16x32xf32>
    %c1_85 = arith.constant 1 : index
    %c0_86 = arith.constant 0 : index
    %c0_87 = arith.constant 0 : index
    %227 = vector.load %arg9[%c1_85, %c0_86, %c0_87] : memref<2x6x32xf32, #tpu.memory_space<vmem>>, vector<1x6x32xf32>
    %228 = vector.shape_cast %227 : vector<1x6x32xf32> to vector<6x32xf32>
    %229 = vector.extract_strided_slice %228 {offsets = [0, 0], sizes = [1, 32], strides = [1, 1]} : vector<6x32xf32> to vector<1x32xf32>
    %230 = vector.extract_strided_slice %228 {offsets = [1, 0], sizes = [1, 32], strides = [1, 1]} : vector<6x32xf32> to vector<1x32xf32>
    %cst_88 = arith.constant dense<0.000000e+00> : vector<16xf32>
    %231 = vector.multi_reduction <add>, %226, %cst_88 [1] : vector<16x32xf32> to vector<16xf32>
    %232 = vector.shape_cast %231 : vector<16xf32> to vector<16x1xf32>
    %cst_89 = arith.constant 3.200000e+01 : f32
    %233 = vector.broadcast %cst_89 : f32 to vector<16x1xf32>
    %234 = arith.divf %232, %233 : vector<16x1xf32>
    %235 = vector.broadcast %234 : vector<16x1xf32> to vector<16x32xf32>
    %236 = arith.subf %226, %235 : vector<16x32xf32>
    %237 = arith.mulf %236, %236 : vector<16x32xf32>
    %cst_90 = arith.constant dense<0.000000e+00> : vector<16xf32>
    %238 = vector.multi_reduction <add>, %237, %cst_90 [1] : vector<16x32xf32> to vector<16xf32>
    %239 = vector.shape_cast %238 : vector<16xf32> to vector<16x1xf32>
    %cst_91 = arith.constant 3.200000e+01 : f32
    %240 = vector.broadcast %cst_91 : f32 to vector<16x1xf32>
    %241 = arith.divf %239, %240 : vector<16x1xf32>
    %242 = vector.broadcast %234 : vector<16x1xf32> to vector<16x32xf32>
    %243 = arith.subf %226, %242 : vector<16x32xf32>
    %cst_92 = arith.constant 9.99999974E-6 : f32
    %244 = vector.broadcast %cst_92 : f32 to vector<16x1xf32>
    %245 = arith.addf %241, %244 : vector<16x1xf32>
    %246 = math.rsqrt %245 : vector<16x1xf32>
    %247 = vector.broadcast %246 : vector<16x1xf32> to vector<16x32xf32>
    %248 = arith.mulf %243, %247 : vector<16x32xf32>
    %249 = vector.broadcast %229 : vector<1x32xf32> to vector<16x32xf32>
    %250 = arith.mulf %248, %249 : vector<16x32xf32>
    %251 = vector.broadcast %230 : vector<1x32xf32> to vector<16x32xf32>
    %252 = arith.addf %250, %251 : vector<16x32xf32>
    %c1_93 = arith.constant 1 : index
    %c0_94 = arith.constant 0 : index
    %c0_95 = arith.constant 0 : index
    %253 = vector.load %arg10[%c1_93, %c0_94, %c0_95] : memref<2x32x1024xf32, #tpu.memory_space<vmem>>, vector<1x32x768xf32>
    %254 = vector.shape_cast %253 : vector<1x32x768xf32> to vector<32x768xf32>
    %cst_96 = arith.constant dense<0.000000e+00> : vector<16x768xf32>
    %255 = tpu.matmul %252, %254, %cst_96 {dimension_numbers = #tpu.dot_dimension_numbers<[1], [0], [0], [1], [0, 0, 1, 1], [], []>} : vector<16x32xf32>, vector<32x768xf32>, vector<16x768xf32> -> vector<16x768xf32>
    %256 = vector.extract_strided_slice %255 {offsets = [0, 0], sizes = [16, 64], strides = [1, 1]} : vector<16x768xf32> to vector<16x64xf32>
    %257 = vector.extract_strided_slice %255 {offsets = [0, 256], sizes = [16, 64], strides = [1, 1]} : vector<16x768xf32> to vector<16x64xf32>
    %258 = vector.extract_strided_slice %255 {offsets = [0, 512], sizes = [16, 64], strides = [1, 1]} : vector<16x768xf32> to vector<16x64xf32>
    %cst_97 = arith.constant dense<0.000000e+00> : vector<16x16xf32>
    %259 = tpu.matmul %256, %257, %cst_97 {dimension_numbers = #tpu.dot_dimension_numbers<[1], [1], [0], [0], [0, 0, 1, 0], [], []>} : vector<16x64xf32>, vector<16x64xf32>, vector<16x16xf32> -> vector<16x16xf32>
    %cst_98 = arith.constant 1.250000e-01 : f32
    %260 = vector.broadcast %cst_98 : f32 to vector<16x16xf32>
    %261 = arith.mulf %259, %260 : vector<16x16xf32>
    %262 = vector.extract_strided_slice %59 {offsets = [0, 0, 0], sizes = [1, 16, 16], strides = [1, 1, 1]} : vector<4x16x16xf32> to vector<1x16x16xf32>
    %263 = vector.shape_cast %262 : vector<1x16x16xf32> to vector<16x16xf32>
    %264 = arith.addf %261, %263 : vector<16x16xf32>
    %cst_99 = arith.constant dense<0xFF800000> : vector<16xf32>
    %265 = vector.multi_reduction <maximumf>, %264, %cst_99 [1] : vector<16x16xf32> to vector<16xf32>
    %266 = vector.shape_cast %265 : vector<16xf32> to vector<16x1xf32>
    %267 = vector.broadcast %266 : vector<16x1xf32> to vector<16x16xf32>
    %268 = arith.subf %264, %267 : vector<16x16xf32>
    %269 = math.exp %268 : vector<16x16xf32>
    %cst_100 = arith.constant dense<0.000000e+00> : vector<16xf32>
    %270 = vector.multi_reduction <add>, %269, %cst_100 [1] : vector<16x16xf32> to vector<16xf32>
    %271 = vector.shape_cast %270 : vector<16xf32> to vector<16x1xf32>
    %272 = vector.broadcast %271 : vector<16x1xf32> to vector<16x16xf32>
    %273 = arith.divf %269, %272 : vector<16x16xf32>
    %cst_101 = arith.constant dense<0.000000e+00> : vector<16x64xf32>
    %274 = tpu.matmul %273, %258, %cst_101 {dimension_numbers = #tpu.dot_dimension_numbers<[1], [0], [0], [1], [0, 0, 1, 1], [], []>} : vector<16x16xf32>, vector<16x64xf32>, vector<16x64xf32> -> vector<16x64xf32>
    %275 = vector.extract_strided_slice %255 {offsets = [0, 64], sizes = [16, 64], strides = [1, 1]} : vector<16x768xf32> to vector<16x64xf32>
    %276 = vector.extract_strided_slice %255 {offsets = [0, 320], sizes = [16, 64], strides = [1, 1]} : vector<16x768xf32> to vector<16x64xf32>
    %277 = vector.extract_strided_slice %255 {offsets = [0, 576], sizes = [16, 64], strides = [1, 1]} : vector<16x768xf32> to vector<16x64xf32>
    %cst_102 = arith.constant dense<0.000000e+00> : vector<16x16xf32>
    %278 = tpu.matmul %275, %276, %cst_102 {dimension_numbers = #tpu.dot_dimension_numbers<[1], [1], [0], [0], [0, 0, 1, 0], [], []>} : vector<16x64xf32>, vector<16x64xf32>, vector<16x16xf32> -> vector<16x16xf32>
    %cst_103 = arith.constant 1.250000e-01 : f32
    %279 = vector.broadcast %cst_103 : f32 to vector<16x16xf32>
    %280 = arith.mulf %278, %279 : vector<16x16xf32>
    %281 = vector.extract_strided_slice %59 {offsets = [1, 0, 0], sizes = [1, 16, 16], strides = [1, 1, 1]} : vector<4x16x16xf32> to vector<1x16x16xf32>
    %282 = vector.shape_cast %281 : vector<1x16x16xf32> to vector<16x16xf32>
    %283 = arith.addf %280, %282 : vector<16x16xf32>
    %cst_104 = arith.constant dense<0xFF800000> : vector<16xf32>
    %284 = vector.multi_reduction <maximumf>, %283, %cst_104 [1] : vector<16x16xf32> to vector<16xf32>
    %285 = vector.shape_cast %284 : vector<16xf32> to vector<16x1xf32>
    %286 = vector.broadcast %285 : vector<16x1xf32> to vector<16x16xf32>
    %287 = arith.subf %283, %286 : vector<16x16xf32>
    %288 = math.exp %287 : vector<16x16xf32>
    %cst_105 = arith.constant dense<0.000000e+00> : vector<16xf32>
    %289 = vector.multi_reduction <add>, %288, %cst_105 [1] : vector<16x16xf32> to vector<16xf32>
    %290 = vector.shape_cast %289 : vector<16xf32> to vector<16x1xf32>
    %291 = vector.broadcast %290 : vector<16x1xf32> to vector<16x16xf32>
    %292 = arith.divf %288, %291 : vector<16x16xf32>
    %cst_106 = arith.constant dense<0.000000e+00> : vector<16x64xf32>
    %293 = tpu.matmul %292, %277, %cst_106 {dimension_numbers = #tpu.dot_dimension_numbers<[1], [0], [0], [1], [0, 0, 1, 1], [], []>} : vector<16x16xf32>, vector<16x64xf32>, vector<16x64xf32> -> vector<16x64xf32>
    %294 = vector.extract_strided_slice %255 {offsets = [0, 128], sizes = [16, 64], strides = [1, 1]} : vector<16x768xf32> to vector<16x64xf32>
    %295 = vector.extract_strided_slice %255 {offsets = [0, 384], sizes = [16, 64], strides = [1, 1]} : vector<16x768xf32> to vector<16x64xf32>
    %296 = vector.extract_strided_slice %255 {offsets = [0, 640], sizes = [16, 64], strides = [1, 1]} : vector<16x768xf32> to vector<16x64xf32>
    %cst_107 = arith.constant dense<0.000000e+00> : vector<16x16xf32>
    %297 = tpu.matmul %294, %295, %cst_107 {dimension_numbers = #tpu.dot_dimension_numbers<[1], [1], [0], [0], [0, 0, 1, 0], [], []>} : vector<16x64xf32>, vector<16x64xf32>, vector<16x16xf32> -> vector<16x16xf32>
    %cst_108 = arith.constant 1.250000e-01 : f32
    %298 = vector.broadcast %cst_108 : f32 to vector<16x16xf32>
    %299 = arith.mulf %297, %298 : vector<16x16xf32>
    %300 = vector.extract_strided_slice %59 {offsets = [2, 0, 0], sizes = [1, 16, 16], strides = [1, 1, 1]} : vector<4x16x16xf32> to vector<1x16x16xf32>
    %301 = vector.shape_cast %300 : vector<1x16x16xf32> to vector<16x16xf32>
    %302 = arith.addf %299, %301 : vector<16x16xf32>
    %cst_109 = arith.constant dense<0xFF800000> : vector<16xf32>
    %303 = vector.multi_reduction <maximumf>, %302, %cst_109 [1] : vector<16x16xf32> to vector<16xf32>
    %304 = vector.shape_cast %303 : vector<16xf32> to vector<16x1xf32>
    %305 = vector.broadcast %304 : vector<16x1xf32> to vector<16x16xf32>
    %306 = arith.subf %302, %305 : vector<16x16xf32>
    %307 = math.exp %306 : vector<16x16xf32>
    %cst_110 = arith.constant dense<0.000000e+00> : vector<16xf32>
    %308 = vector.multi_reduction <add>, %307, %cst_110 [1] : vector<16x16xf32> to vector<16xf32>
    %309 = vector.shape_cast %308 : vector<16xf32> to vector<16x1xf32>
    %310 = vector.broadcast %309 : vector<16x1xf32> to vector<16x16xf32>
    %311 = arith.divf %307, %310 : vector<16x16xf32>
    %cst_111 = arith.constant dense<0.000000e+00> : vector<16x64xf32>
    %312 = tpu.matmul %311, %296, %cst_111 {dimension_numbers = #tpu.dot_dimension_numbers<[1], [0], [0], [1], [0, 0, 1, 1], [], []>} : vector<16x16xf32>, vector<16x64xf32>, vector<16x64xf32> -> vector<16x64xf32>
    %313 = vector.extract_strided_slice %255 {offsets = [0, 192], sizes = [16, 64], strides = [1, 1]} : vector<16x768xf32> to vector<16x64xf32>
    %314 = vector.extract_strided_slice %255 {offsets = [0, 448], sizes = [16, 64], strides = [1, 1]} : vector<16x768xf32> to vector<16x64xf32>
    %315 = vector.extract_strided_slice %255 {offsets = [0, 704], sizes = [16, 64], strides = [1, 1]} : vector<16x768xf32> to vector<16x64xf32>
    %cst_112 = arith.constant dense<0.000000e+00> : vector<16x16xf32>
    %316 = tpu.matmul %313, %314, %cst_112 {dimension_numbers = #tpu.dot_dimension_numbers<[1], [1], [0], [0], [0, 0, 1, 0], [], []>} : vector<16x64xf32>, vector<16x64xf32>, vector<16x16xf32> -> vector<16x16xf32>
    %cst_113 = arith.constant 1.250000e-01 : f32
    %317 = vector.broadcast %cst_113 : f32 to vector<16x16xf32>
    %318 = arith.mulf %316, %317 : vector<16x16xf32>
    %319 = vector.extract_strided_slice %59 {offsets = [3, 0, 0], sizes = [1, 16, 16], strides = [1, 1, 1]} : vector<4x16x16xf32> to vector<1x16x16xf32>
    %320 = vector.shape_cast %319 : vector<1x16x16xf32> to vector<16x16xf32>
    %321 = arith.addf %318, %320 : vector<16x16xf32>
    %cst_114 = arith.constant dense<0xFF800000> : vector<16xf32>
    %322 = vector.multi_reduction <maximumf>, %321, %cst_114 [1] : vector<16x16xf32> to vector<16xf32>
    %323 = vector.shape_cast %322 : vector<16xf32> to vector<16x1xf32>
    %324 = vector.broadcast %323 : vector<16x1xf32> to vector<16x16xf32>
    %325 = arith.subf %321, %324 : vector<16x16xf32>
    %326 = math.exp %325 : vector<16x16xf32>
    %cst_115 = arith.constant dense<0.000000e+00> : vector<16xf32>
    %327 = vector.multi_reduction <add>, %326, %cst_115 [1] : vector<16x16xf32> to vector<16xf32>
    %328 = vector.shape_cast %327 : vector<16xf32> to vector<16x1xf32>
    %329 = vector.broadcast %328 : vector<16x1xf32> to vector<16x16xf32>
    %330 = arith.divf %326, %329 : vector<16x16xf32>
    %cst_116 = arith.constant dense<0.000000e+00> : vector<16x64xf32>
    %331 = tpu.matmul %330, %315, %cst_116 {dimension_numbers = #tpu.dot_dimension_numbers<[1], [0], [0], [1], [0, 0, 1, 1], [], []>} : vector<16x16xf32>, vector<16x64xf32>, vector<16x64xf32> -> vector<16x64xf32>
    %332 = tpu.concatenate %274, %293, %312, %331 in 1 : vector<16x64xf32>, vector<16x64xf32>, vector<16x64xf32>, vector<16x64xf32> -> vector<16x256xf32>
    %c1_117 = arith.constant 1 : index
    %c0_118 = arith.constant 0 : index
    %c0_119 = arith.constant 0 : index
    %333 = vector.load %arg12[%c1_117, %c0_118, %c0_119] : memref<2x384x32xf32, #tpu.memory_space<vmem>>, vector<1x256x32xf32>
    %334 = vector.shape_cast %333 : vector<1x256x32xf32> to vector<256x32xf32>
    %cst_120 = arith.constant dense<0.000000e+00> : vector<16x32xf32>
    %335 = tpu.matmul %332, %334, %cst_120 {dimension_numbers = #tpu.dot_dimension_numbers<[1], [0], [0], [1], [0, 0, 1, 1], [], []>} : vector<16x256xf32>, vector<256x32xf32>, vector<16x32xf32> -> vector<16x32xf32>
    %336 = arith.addf %226, %335 : vector<16x32xf32>
    %337 = vector.extract_strided_slice %228 {offsets = [2, 0], sizes = [1, 32], strides = [1, 1]} : vector<6x32xf32> to vector<1x32xf32>
    %338 = vector.broadcast %337 : vector<1x32xf32> to vector<16x32xf32>
    %339 = arith.addf %336, %338 : vector<16x32xf32>
    %340 = vector.extract_strided_slice %228 {offsets = [3, 0], sizes = [1, 32], strides = [1, 1]} : vector<6x32xf32> to vector<1x32xf32>
    %341 = vector.extract_strided_slice %228 {offsets = [4, 0], sizes = [1, 32], strides = [1, 1]} : vector<6x32xf32> to vector<1x32xf32>
    %cst_121 = arith.constant dense<0.000000e+00> : vector<16xf32>
    %342 = vector.multi_reduction <add>, %339, %cst_121 [1] : vector<16x32xf32> to vector<16xf32>
    %343 = vector.shape_cast %342 : vector<16xf32> to vector<16x1xf32>
    %cst_122 = arith.constant 3.200000e+01 : f32
    %344 = vector.broadcast %cst_122 : f32 to vector<16x1xf32>
    %345 = arith.divf %343, %344 : vector<16x1xf32>
    %346 = vector.broadcast %345 : vector<16x1xf32> to vector<16x32xf32>
    %347 = arith.subf %339, %346 : vector<16x32xf32>
    %348 = arith.mulf %347, %347 : vector<16x32xf32>
    %cst_123 = arith.constant dense<0.000000e+00> : vector<16xf32>
    %349 = vector.multi_reduction <add>, %348, %cst_123 [1] : vector<16x32xf32> to vector<16xf32>
    %350 = vector.shape_cast %349 : vector<16xf32> to vector<16x1xf32>
    %cst_124 = arith.constant 3.200000e+01 : f32
    %351 = vector.broadcast %cst_124 : f32 to vector<16x1xf32>
    %352 = arith.divf %350, %351 : vector<16x1xf32>
    %353 = vector.broadcast %345 : vector<16x1xf32> to vector<16x32xf32>
    %354 = arith.subf %339, %353 : vector<16x32xf32>
    %cst_125 = arith.constant 9.99999974E-6 : f32
    %355 = vector.broadcast %cst_125 : f32 to vector<16x1xf32>
    %356 = arith.addf %352, %355 : vector<16x1xf32>
    %357 = math.rsqrt %356 : vector<16x1xf32>
    %358 = vector.broadcast %357 : vector<16x1xf32> to vector<16x32xf32>
    %359 = arith.mulf %354, %358 : vector<16x32xf32>
    %360 = vector.broadcast %340 : vector<1x32xf32> to vector<16x32xf32>
    %361 = arith.mulf %359, %360 : vector<16x32xf32>
    %362 = vector.broadcast %341 : vector<1x32xf32> to vector<16x32xf32>
    %363 = arith.addf %361, %362 : vector<16x32xf32>
    %c1_126 = arith.constant 1 : index
    %c0_127 = arith.constant 0 : index
    %c768_128 = arith.constant 768 : index
    %364 = vector.load %arg10[%c1_126, %c0_127, %c768_128] : memref<2x32x1024xf32, #tpu.memory_space<vmem>>, vector<1x32x256xf32>
    %365 = vector.shape_cast %364 : vector<1x32x256xf32> to vector<32x256xf32>
    %cst_129 = arith.constant dense<0.000000e+00> : vector<16x256xf32>
    %366 = tpu.matmul %363, %365, %cst_129 {dimension_numbers = #tpu.dot_dimension_numbers<[1], [0], [0], [1], [0, 0, 1, 1], [], []>} : vector<16x32xf32>, vector<32x256xf32>, vector<16x256xf32> -> vector<16x256xf32>
    %c1_130 = arith.constant 1 : index
    %c0_131 = arith.constant 0 : index
    %c0_132 = arith.constant 0 : index
    %367 = vector.load %arg11[%c1_130, %c0_131, %c0_132] : memref<2x1x256xf32, #tpu.memory_space<vmem>>, vector<1x1x256xf32>
    %368 = vector.shape_cast %367 : vector<1x1x256xf32> to vector<1x256xf32>
    %369 = vector.broadcast %368 : vector<1x256xf32> to vector<16x256xf32>
    %370 = arith.addf %366, %369 : vector<16x256xf32>
    %371 = vector.extract_strided_slice %370 {offsets = [0, 0], sizes = [16, 128], strides = [1, 1]} : vector<16x256xf32> to vector<16x128xf32>
    %372 = vector.extract_strided_slice %370 {offsets = [0, 128], sizes = [16, 128], strides = [1, 1]} : vector<16x256xf32> to vector<16x128xf32>
    %373 = arith.mulf %372, %372 : vector<16x128xf32>
    %374 = arith.mulf %372, %373 : vector<16x128xf32>
    %cst_133 = arith.constant 4.471500e-02 : f32
    %375 = vector.broadcast %cst_133 : f32 to vector<16x128xf32>
    %376 = arith.mulf %375, %374 : vector<16x128xf32>
    %377 = arith.addf %372, %376 : vector<16x128xf32>
    %cst_134 = arith.constant 0.797884583 : f32
    %378 = vector.broadcast %cst_134 : f32 to vector<16x128xf32>
    %379 = arith.mulf %378, %377 : vector<16x128xf32>
    %380 = math.tanh %379 : vector<16x128xf32>
    %cst_135 = arith.constant 1.000000e+00 : f32
    %381 = vector.broadcast %cst_135 : f32 to vector<16x128xf32>
    %382 = arith.addf %381, %380 : vector<16x128xf32>
    %cst_136 = arith.constant 5.000000e-01 : f32
    %383 = vector.broadcast %cst_136 : f32 to vector<16x128xf32>
    %384 = arith.mulf %383, %382 : vector<16x128xf32>
    %385 = arith.mulf %372, %384 : vector<16x128xf32>
    %386 = arith.mulf %371, %385 : vector<16x128xf32>
    %c1_137 = arith.constant 1 : index
    %c256_138 = arith.constant 256 : index
    %c0_139 = arith.constant 0 : index
    %387 = vector.load %arg12[%c1_137, %c256_138, %c0_139] : memref<2x384x32xf32, #tpu.memory_space<vmem>>, vector<1x128x32xf32>
    %388 = vector.shape_cast %387 : vector<1x128x32xf32> to vector<128x32xf32>
    %cst_140 = arith.constant dense<0.000000e+00> : vector<16x32xf32>
    %389 = tpu.matmul %386, %388, %cst_140 {dimension_numbers = #tpu.dot_dimension_numbers<[1], [0], [0], [1], [0, 0, 1, 1], [], []>} : vector<16x128xf32>, vector<128x32xf32>, vector<16x32xf32> -> vector<16x32xf32>
    %390 = arith.addf %339, %389 : vector<16x32xf32>
    %391 = vector.extract_strided_slice %228 {offsets = [5, 0], sizes = [1, 32], strides = [1, 1]} : vector<6x32xf32> to vector<1x32xf32>
    %392 = vector.broadcast %391 : vector<1x32xf32> to vector<16x32xf32>
    %393 = arith.addf %390, %392 : vector<16x32xf32>
    %394 = vector.extract_strided_slice %0 {offsets = [2, 0], sizes = [1, 32], strides = [1, 1]} : vector<6x32xf32> to vector<1x32xf32>
    %395 = vector.extract_strided_slice %0 {offsets = [3, 0], sizes = [1, 32], strides = [1, 1]} : vector<6x32xf32> to vector<1x32xf32>
    %cst_141 = arith.constant dense<0.000000e+00> : vector<16xf32>
    %396 = vector.multi_reduction <add>, %393, %cst_141 [1] : vector<16x32xf32> to vector<16xf32>
    %397 = vector.shape_cast %396 : vector<16xf32> to vector<16x1xf32>
    %cst_142 = arith.constant 3.200000e+01 : f32
    %398 = vector.broadcast %cst_142 : f32 to vector<16x1xf32>
    %399 = arith.divf %397, %398 : vector<16x1xf32>
    %400 = vector.broadcast %399 : vector<16x1xf32> to vector<16x32xf32>
    %401 = arith.subf %393, %400 : vector<16x32xf32>
    %402 = arith.mulf %401, %401 : vector<16x32xf32>
    %cst_143 = arith.constant dense<0.000000e+00> : vector<16xf32>
    %403 = vector.multi_reduction <add>, %402, %cst_143 [1] : vector<16x32xf32> to vector<16xf32>
    %404 = vector.shape_cast %403 : vector<16xf32> to vector<16x1xf32>
    %cst_144 = arith.constant 3.200000e+01 : f32
    %405 = vector.broadcast %cst_144 : f32 to vector<16x1xf32>
    %406 = arith.divf %404, %405 : vector<16x1xf32>
    %407 = vector.broadcast %399 : vector<16x1xf32> to vector<16x32xf32>
    %408 = arith.subf %393, %407 : vector<16x32xf32>
    %cst_145 = arith.constant 9.99999974E-6 : f32
    %409 = vector.broadcast %cst_145 : f32 to vector<16x1xf32>
    %410 = arith.addf %406, %409 : vector<16x1xf32>
    %411 = math.rsqrt %410 : vector<16x1xf32>
    %412 = vector.broadcast %411 : vector<16x1xf32> to vector<16x32xf32>
    %413 = arith.mulf %408, %412 : vector<16x32xf32>
    %414 = vector.broadcast %394 : vector<1x32xf32> to vector<16x32xf32>
    %415 = arith.mulf %413, %414 : vector<16x32xf32>
    %416 = vector.broadcast %395 : vector<1x32xf32> to vector<16x32xf32>
    %417 = arith.addf %415, %416 : vector<16x32xf32>
    %418 = vector.extract_strided_slice %0 {offsets = [4, 0], sizes = [1, 32], strides = [1, 1]} : vector<6x32xf32> to vector<1x32xf32>
    %419 = vector.extract_strided_slice %0 {offsets = [5, 0], sizes = [1, 32], strides = [1, 1]} : vector<6x32xf32> to vector<1x32xf32>
    %cst_146 = arith.constant dense<0.000000e+00> : vector<16xf32>
    %420 = vector.multi_reduction <add>, %417, %cst_146 [1] : vector<16x32xf32> to vector<16xf32>
    %421 = vector.shape_cast %420 : vector<16xf32> to vector<16x1xf32>
    %cst_147 = arith.constant 3.200000e+01 : f32
    %422 = vector.broadcast %cst_147 : f32 to vector<16x1xf32>
    %423 = arith.divf %421, %422 : vector<16x1xf32>
    %424 = vector.broadcast %423 : vector<16x1xf32> to vector<16x32xf32>
    %425 = arith.subf %417, %424 : vector<16x32xf32>
    %426 = arith.mulf %425, %425 : vector<16x32xf32>
    %cst_148 = arith.constant dense<0.000000e+00> : vector<16xf32>
    %427 = vector.multi_reduction <add>, %426, %cst_148 [1] : vector<16x32xf32> to vector<16xf32>
    %428 = vector.shape_cast %427 : vector<16xf32> to vector<16x1xf32>
    %cst_149 = arith.constant 3.200000e+01 : f32
    %429 = vector.broadcast %cst_149 : f32 to vector<16x1xf32>
    %430 = arith.divf %428, %429 : vector<16x1xf32>
    %431 = vector.broadcast %423 : vector<16x1xf32> to vector<16x32xf32>
    %432 = arith.subf %417, %431 : vector<16x32xf32>
    %cst_150 = arith.constant 9.99999974E-6 : f32
    %433 = vector.broadcast %cst_150 : f32 to vector<16x1xf32>
    %434 = arith.addf %430, %433 : vector<16x1xf32>
    %435 = math.rsqrt %434 : vector<16x1xf32>
    %436 = vector.broadcast %435 : vector<16x1xf32> to vector<16x32xf32>
    %437 = arith.mulf %432, %436 : vector<16x32xf32>
    %438 = vector.broadcast %418 : vector<1x32xf32> to vector<16x32xf32>
    %439 = arith.mulf %437, %438 : vector<16x32xf32>
    %440 = vector.broadcast %419 : vector<1x32xf32> to vector<16x32xf32>
    %441 = arith.addf %439, %440 : vector<16x32xf32>
    %c0_151 = arith.constant 0 : index
    %c0_152 = arith.constant 0 : index
    %442 = vector.load %arg13[%c0_151, %c0_152] : memref<32x16xf32, #tpu.memory_space<vmem>>, vector<32x16xf32>
    %cst_153 = arith.constant dense<0.000000e+00> : vector<16x16xf32>
    %443 = tpu.matmul %441, %442, %cst_153 {dimension_numbers = #tpu.dot_dimension_numbers<[1], [0], [0], [1], [0, 0, 1, 1], [], []>} : vector<16x32xf32>, vector<32x16xf32>, vector<16x16xf32> -> vector<16x16xf32>
    %c0_154 = arith.constant 0 : index
    %c0_155 = arith.constant 0 : index
    %444 = vector.load %arg14[%c0_154, %c0_155] : memref<1x16xf32, #tpu.memory_space<vmem>>, vector<1x16xf32>
    %445 = vector.broadcast %444 : vector<1x16xf32> to vector<16x16xf32>
    %446 = arith.addf %443, %445 : vector<16x16xf32>
    %c0_156 = arith.constant 0 : index
    %c0_157 = arith.constant 0 : index
    %447 = vector.load %arg15[%c0_156, %c0_157] : memref<16x16xf32, #tpu.memory_space<vmem>>, vector<16x16xf32>
    tpu.vector_store %arg15[%c0_156, %c0_157], %446 {strides = array<i32>} : memref<16x16xf32, #tpu.memory_space<vmem>>, vector<16x16xf32>,
    return
  }
}

</mosaic_0001>

<llo_original>
// kernel: forward.1
$region0: #{forward.1}
  #allocation0 [shape = 'u32[]', space=smem, size = 0x4, offset = 0x4, fixed_abs, tag = 'smem constant byte address 0x4 - core index']
  #allocation1 [shape = 'u32[144,128]{1,0:T(1,128)}', space=vmem, size = 0x12000, scoped, tag = 'internal scratch']
  %s0 = inlined_call_operand.vmem [shape: f32[16,16], index: 0, kind: input, shape index: {}]
  %s1 = inlined_call_operand.vmem [shape: f32[2,32], index: 1, kind: input, shape index: {}]
  %s2 = inlined_call_operand.vmem [shape: f32[4,16,16], index: 2, kind: input, shape index: {}]
  %s3 = inlined_call_operand.vmem [shape: f32[16,32], index: 3, kind: input, shape index: {}]
  %s4 = inlined_call_operand.vmem [shape: f32[160,128], index: 4, kind: input, shape index: {}]
  %s5 = inlined_call_operand.vmem [shape: f32[2,128], index: 5, kind: input, shape index: {}]
  %s6 = inlined_call_operand.vmem [shape: f32[128,32], index: 6, kind: input, shape index: {}]
  %s7 = inlined_call_operand.vmem [shape: f32[16,32], index: 7, kind: input, shape index: {}]
  %s8 = inlined_call_operand.vmem [shape: f32[6,32], index: 8, kind: input, shape index: {}]
  %s9 = inlined_call_operand.vmem [shape: f32[2,6,32], index: 9, kind: input, shape index: {}]
  %s10 = inlined_call_operand.vmem [shape: f32[2,32,1024], index: 10, kind: input, shape index: {}]
  %s11 = inlined_call_operand.vmem [shape: f32[2,1,256], index: 11, kind: input, shape index: {}]
  %s12 = inlined_call_operand.vmem [shape: f32[2,384,32], index: 12, kind: input, shape index: {}]
  %s13 = inlined_call_operand.vmem [shape: f32[32,16], index: 13, kind: input, shape index: {}]
  %s14 = inlined_call_operand.vmem [shape: f32[1,16], index: 14, kind: input, shape index: {}]
  %s15 = inlined_call_operand.hbm [shape: f32[16,16], index: 15, kind: output, shape index: {}]
  %s16 = sld [smem:[#allocation0]]
  $region70: #{forward.1} parent=0
    _
  %s18 = ssub.s32 1, %s16
  %s19 = scalar_select 0, %s18, %s16
  $region1: #{forward.1} parent=0
    #allocation2 [shape = 'u8[8192]{0}', space=vmem, size = 0x2000, scoped, tag = 'output window, operand 0, single buffered']
    #allocation3 [shape = 's32[1]{0}', space=sflag, size = 0x4, scoped, tag = 'scoped memory for forward.1']
    %20 = vsyncpa [#allocation3], 0
    // Predicated region
    $region2: #{forward.1} parent=1 // pred_check
      _
    $region3: #{forward.1} parent=1 // pred_check_branch
      %22 = sbr.rel (0) target = $region5
    $region4: #{forward.1} parent=1 // pred_region
      _
    $region5: #{forward.1} parent=1 // pred_fallthru
      _
    // Predicated region
    $region6: #{forward.1} parent=1 // pred_check
      _
    $region7: #{forward.1} parent=1 // pred_check_branch
      %24 = sbr.rel (0) target = $region9
    $region8: #{forward.1} parent=1 // pred_region
      _
    $region9: #{forward.1} parent=1 // pred_fallthru
      _
    // Predicated region
    $region10: #{forward.1} parent=1 // pred_check
      _
    $region11: #{forward.1} parent=1 // pred_check_branch
      %26 = sbr.rel (0) target = $region13
    $region12: #{forward.1} parent=1 // pred_region
      _
    $region13: #{forward.1} parent=1 // pred_fallthru
      _
    // Predicated region
    $region14: #{forward.1} parent=1 // pred_check
      _
    $region15: #{forward.1} parent=1 // pred_check_branch
      %28 = sbr.rel (0) target = $region17
    $region16: #{forward.1} parent=1 // pred_region
      _
    $region17: #{forward.1} parent=1 // pred_fallthru
      _
    // Predicated region
    $region18: #{forward.1} parent=1 // pred_check
      _
    $region19: #{forward.1} parent=1 // pred_check_branch
      %30 = sbr.rel (0) target = $region21
    $region20: #{forward.1} parent=1 // pred_region
      _
    $region21: #{forward.1} parent=1 // pred_fallthru
      _
    // Predicated region
    $region22: #{forward.1} parent=1 // pred_check
      _
    $region23: #{forward.1} parent=1 // pred_check_branch
      %32 = sbr.rel (0) target = $region25
    $region24: #{forward.1} parent=1 // pred_region
      _
    $region25: #{forward.1} parent=1 // pred_fallthru
      _
    // Predicated region
    $region26: #{forward.1} parent=1 // pred_check
      _
    $region27: #{forward.1} parent=1 // pred_check_branch
      %34 = sbr.rel (0) target = $region29
    $region28: #{forward.1} parent=1 // pred_region
      _
    $region29: #{forward.1} parent=1 // pred_fallthru
      _
    // Predicated region
    $region30: #{forward.1} parent=1 // pred_check
      _
    $region31: #{forward.1} parent=1 // pred_check_branch
      %36 = sbr.rel (0) target = $region33
    $region32: #{forward.1} parent=1 // pred_region
      _
    $region33: #{forward.1} parent=1 // pred_fallthru
      _
    // Predicated region
    $region34: #{forward.1} parent=1 // pred_check
      _
    $region35: #{forward.1} parent=1 // pred_check_branch
      %38 = sbr.rel (0) target = $region37
    $region36: #{forward.1} parent=1 // pred_region
      _
    $region37: #{forward.1} parent=1 // pred_fallthru
      _
    // Predicated region
    $region38: #{forward.1} parent=1 // pred_check
      _
    $region39: #{forward.1} parent=1 // pred_check_branch
      %40 = sbr.rel (0) target = $region41
    $region40: #{forward.1} parent=1 // pred_region
      _
    $region41: #{forward.1} parent=1 // pred_fallthru
      _
    // Predicated region
    $region42: #{forward.1} parent=1 // pred_check
      _
    $region43: #{forward.1} parent=1 // pred_check_branch
      %42 = sbr.rel (0) target = $region45
    $region44: #{forward.1} parent=1 // pred_region
      _
    $region45: #{forward.1} parent=1 // pred_fallthru
      _
    // Predicated region
    $region46: #{forward.1} parent=1 // pred_check
      _
    $region47: #{forward.1} parent=1 // pred_check_branch
      %44 = sbr.rel (0) target = $region49
    $region48: #{forward.1} parent=1 // pred_region
      _
    $region49: #{forward.1} parent=1 // pred_fallthru
      _
    // Predicated region
    $region50: #{forward.1} parent=1 // pred_check
      _
    $region51: #{forward.1} parent=1 // pred_check_branch
      %46 = sbr.rel (0) target = $region53
    $region52: #{forward.1} parent=1 // pred_region
      _
    $region53: #{forward.1} parent=1 // pred_fallthru
      _
    // Predicated region
    $region54: #{forward.1} parent=1 // pred_check
      _
    $region55: #{forward.1} parent=1 // pred_check_branch
      %48 = sbr.rel (0) target = $region57
    $region56: #{forward.1} parent=1 // pred_region
      _
    $region57: #{forward.1} parent=1 // pred_fallthru
      _
    // Predicated region
    $region58: #{forward.1} parent=1 // pred_check
      _
    $region59: #{forward.1} parent=1 // pred_check_branch
      %50 = sbr.rel (0) target = $region61
    $region60: #{forward.1} parent=1 // pred_region
      _
    $region61: #{forward.1} parent=1 // pred_fallthru
      _
    %v51 = vld [vmem:[%s8] sm:$0x3f]
    %v52 = vld [vmem:[%s1] sm:$0x3]
    %v53 = vld [vmem:[%s4] sm:$0xff]
    %v54 = vld [vmem:[%s4 + $0x8] sm:$0xff]
    %v55 = vld [vmem:[%s4 + $0x10] sm:$0xff]
    %v56 = vld [vmem:[%s4 + $0x18] sm:$0xff]
    %v57 = vld [vmem:[%s5] sm:$0x1]
    %v58 = vlaneseq
    %v59 = vshrl.u32 %v58, 7
    %v60 = vsub.s32 0, %v59
    %v61 = vrot.slane %v57, %v60
    %vm62 = vcmask 261120
    %v64 = vsel %vm62, %v52, 0
    %66 = vmatprep.subr.mxu0 0.0
    %67 = vmatpush1.msra.mxu0 %v53
    %68 = vmatprep.subr.mxu0 0.0
    %69 = vmatpush1.msra.mxu0 %v54
    %70 = vmatprep.subr.mxu0 0.0
    %71 = vmatpush1.msra.mxu0 %v55
    %72 = vmatprep.subr.mxu0 0.0
    %73 = vmatpush1.msra.mxu0 %v56
    %74 = vmatprep.subr.mxu0 0.0
    %75 = vmatpush1.msra.mxu0 0.0
    %76 = vmatprep.subr.mxu0 0.0
    %77 = vmatpush1.msra.mxu0 0.0
    %78 = vmatprep.subr.mxu0 0.0
    %79 = vmatpush1.msra.mxu0 0.0
    %80 = vmatprep.subr.mxu0 0.0
    %81 = vmatpush1.msra.mxu0 0.0
    %82 = vmatprep.subr.mxu0 0.0
    %83 = vmatpush1.msra.mxu0 0.0
    %84 = vmatprep.subr.mxu0 0.0
    %85 = vmatpush1.msra.mxu0 0.0
    %86 = vmatprep.subr.mxu0 0.0
    %87 = vmatpush1.msra.mxu0 0.0
    %88 = vmatprep.subr.mxu0 0.0
    %89 = vmatpush1.msra.mxu0 0.0
    %90 = vmatprep.subr.mxu0 0.0
    %91 = vmatpush1.msra.mxu0 0.0
    %92 = vmatprep.subr.mxu0 0.0
    %93 = vmatpush1.msra.mxu0 0.0
    %94 = vmatprep.subr.mxu0 0.0
    %95 = vmatpush1.msra.mxu0 0.0
    %96 = vmatprep.subr.mxu0 0.0
    %97 = vmatpush1.msra.mxu0 0.0
    %98 = vmatprep.subr.mxu0 0.0
    %99 = vmatpush1.msra.mxu0 0.0
    %100 = vmatprep.subr.mxu0 0.0
    %101 = vmatpush1.msra.mxu0 0.0
    %102 = vmatprep.subr.mxu0 0.0
    %103 = vmatpush1.msra.mxu0 0.0
    %104 = vmatprep.subr.mxu0 0.0
    %105 = vmatpush1.msra.mxu0 0.0
    %106 = vmatprep.subr.mxu0 0.0
    %107 = vmatpush1.msra.mxu0 0.0
    %108 = vmatprep.subr.mxu0 0.0
    %109 = vmatpush1.msra.mxu0 0.0
    %110 = vmatprep.subr.mxu0 0.0
    %111 = vmatpush1.msra.mxu0 0.0
    %112 = vmatprep.subr.mxu0 0.0
    %113 = vmatpush1.msra.mxu0 0.0
    %114 = vmatprep.subr.mxu0 0.0
    %115 = vmatpush1.msra.mxu0 0.0
    %116 = vmatprep.subr.mxu0 0.0
    %117 = vmatpush1.msra.mxu0 0.0
    %118 = vmatprep.subr.mxu0 0.0
    %119 = vmatpush1.msra.mxu0 0.0
    %120 = vmatprep.subr.mxu0 0.0
    %121 = vmatpush1.msra.mxu0 0.0
    %122 = vmatprep.subr.mxu0 0.0
    %123 = vmatpush1.msra.mxu0 0.0
    %124 = vmatprep.subr.mxu0 0.0
    %125 = vmatpush1.msra.mxu0 0.0
    %126 = vmatprep.subr.mxu0 0.0
    %127 = vmatpush1.msra.mxu0 0.0
    %128 = vmatprep.subr.mxu0 0.0
    %129 = vmatpush1.msra.mxu0 0.0
    %130 = vmatprep.mubr.f32.mxu0 0.0
    %131 = vmatmul.mubr.f32.gmra.mrb[0].mxu0 %v64
    %v132 = vpop.f32.mrb[0].mxu0
    %v133 = vadd.f32 %v61, %v132
    %v134 = vpop.f32.mrb[0].mxu0
    %135 = vdwg.mxu0
    %v136 = vmul.f32 %v133, %v133
    %v137 = vmul.f32 %v133, %v136
    %v138 = vmul.f32 %v137, 0.044715
    %v139 = vadd.f32 %v133, %v138
    %v140 = vmul.f32 %v139, 0.7978846
    %v141 = vtanh.pop %v140
    %v142 = vadd.f32 %v141, 1.0
    %v143 = vmul.f32 %v142, 0.5
    %v144 = vmul.f32 %v133, %v143
    %v145 = vld [vmem:[%s4 + $0x20] sm:$0xff]
    %v146 = vld [vmem:[%s4 + $0x28] sm:$0xff]
    %v147 = vld [vmem:[%s4 + $0x30] sm:$0xff]
    %v148 = vld [vmem:[%s4 + $0x38] sm:$0xff]
    %v149 = vld [vmem:[%s4 + $0x40] sm:$0xff]
    %v150 = vld [vmem:[%s4 + $0x48] sm:$0xff]
    %v151 = vld [vmem:[%s4 + $0x50] sm:$0xff]
    %v152 = vld [vmem:[%s4 + $0x58] sm:$0xff]
    %v153 = vld [vmem:[%s4 + $0x60] sm:$0xff]
    %v154 = vld [vmem:[%s4 + $0x68] sm:$0xff]
    %v155 = vld [vmem:[%s4 + $0x70] sm:$0xff]
    %v156 = vld [vmem:[%s4 + $0x78] sm:$0xff]
    %v157 = vld [vmem:[%s4 + $0x80] sm:$0xff]
    %v158 = vld [vmem:[%s4 + $0x88] sm:$0xff]
    %v159 = vld [vmem:[%s4 + $0x90] sm:$0xff]
    %v160 = vld [vmem:[%s4 + $0x98] sm:$0xff]
    %v161 = vld [vmem:[%s5 + $0x1] sm:$0x1]
    %v162 = vlaneseq
    %v163 = vshrl.u32 %v162, 7
    %v164 = vsub.s32 0, %v163
    %v165 = vrot.slane %v161, %v164
    %166 = vmatprep.subr.mxu0 0.0
    %167 = vmatpush1.msra.mxu0 %v145
    %168 = vmatprep.subr.mxu0 0.0
    %169 = vmatpush1.msra.mxu0 %v146
    %170 = vmatprep.subr.mxu0 0.0
    %171 = vmatpush1.msra.mxu0 %v147
    %172 = vmatprep.subr.mxu0 0.0
    %173 = vmatpush1.msra.mxu0 %v148
    %174 = vmatprep.subr.mxu0 0.0
    %175 = vmatpush1.msra.mxu0 %v149
    %176 = vmatprep.subr.mxu0 0.0
    %177 = vmatpush1.msra.mxu0 %v150
    %178 = vmatprep.subr.mxu0 0.0
    %179 = vmatpush1.msra.mxu0 %v151
    %180 = vmatprep.subr.mxu0 0.0
    %181 = vmatpush1.msra.mxu0 %v152
    %182 = vmatprep.subr.mxu0 0.0
    %183 = vmatpush1.msra.mxu0 %v153
    %184 = vmatprep.subr.mxu0 0.0
    %185 = vmatpush1.msra.mxu0 %v154
    %186 = vmatprep.subr.mxu0 0.0
    %187 = vmatpush1.msra.mxu0 %v155
    %188 = vmatprep.subr.mxu0 0.0
    %189 = vmatpush1.msra.mxu0 %v156
    %190 = vmatprep.subr.mxu0 0.0
    %191 = vmatpush1.msra.mxu0 %v157
    %192 = vmatprep.subr.mxu0 0.0
    %193 = vmatpush1.msra.mxu0 %v158
    %194 = vmatprep.subr.mxu0 0.0
    %195 = vmatpush1.msra.mxu0 %v159
    %196 = vmatprep.subr.mxu0 0.0
    %197 = vmatpush1.msra.mxu0 %v160
    %198 = vmatprep.subr.mxu0 0.0
    %199 = vmatpush1.msra.mxu0 0.0
    %200 = vmatprep.subr.mxu0 0.0
    %201 = vmatpush1.msra.mxu0 0.0
    %202 = vmatprep.subr.mxu0 0.0
    %203 = vmatpush1.msra.mxu0 0.0
    %204 = vmatprep.subr.mxu0 0.0
    %205 = vmatpush1.msra.mxu0 0.0
    %206 = vmatprep.subr.mxu0 0.0
    %207 = vmatpush1.msra.mxu0 0.0
    %208 = vmatprep.subr.mxu0 0.0
    %209 = vmatpush1.msra.mxu0 0.0
    %210 = vmatprep.subr.mxu0 0.0
    %211 = vmatpush1.msra.mxu0 0.0
    %212 = vmatprep.subr.mxu0 0.0
    %213 = vmatpush1.msra.mxu0 0.0
    %214 = vmatprep.subr.mxu0 0.0
    %215 = vmatpush1.msra.mxu0 0.0
    %216 = vmatprep.subr.mxu0 0.0
    %217 = vmatpush1.msra.mxu0 0.0
    %218 = vmatprep.subr.mxu0 0.0
    %219 = vmatpush1.msra.mxu0 0.0
    %220 = vmatprep.subr.mxu0 0.0
    %221 = vmatpush1.msra.mxu0 0.0
    %222 = vmatprep.subr.mxu0 0.0
    %223 = vmatpush1.msra.mxu0 0.0
    %224 = vmatprep.subr.mxu0 0.0
    %225 = vmatpush1.msra.mxu0 0.0
    %226 = vmatprep.subr.mxu0 0.0
    %227 = vmatpush1.msra.mxu0 0.0
    %228 = vmatprep.subr.mxu0 0.0
    %229 = vmatpush1.msra.mxu0 0.0
    %230 = vmatprep.mubr.f32.mxu0 0.0
    %231 = vmatmul.mubr.f32.gmra.mrb[0].mxu0 %v144
    %v232 = vpop.f32.mrb[0].mxu0
    %v233 = vadd.f32 %v165, %v232
    %v234 = vpop.f32.mrb[0].mxu0
    %235 = vdwg.mxu0
    %v236 = vmul.f32 %v233, %v233
    %v237 = vmul.f32 %v233, %v236
    %v238 = vmul.f32 %v237, 0.044715
    %v239 = vadd.f32 %v233, %v238
    %v240 = vmul.f32 %v239, 0.7978846
    %v241 = vtanh.pop %v240
    %v242 = vadd.f32 %v241, 1.0
    %v243 = vmul.f32 %v242, 0.5
    %v244 = vmul.f32 %v233, %v243
    %v245 = vld [vmem:[%s6] sm:$0xff]
    %v246 = vld [vmem:[%s6 + $0x8] sm:$0xff]
    %v247 = vld [vmem:[%s6 + $0x10] sm:$0xff]
    %v248 = vld [vmem:[%s6 + $0x18] sm:$0xff]
    %v249 = vld [vmem:[%s6 + $0x20] sm:$0xff]
    %v250 = vld [vmem:[%s6 + $0x28] sm:$0xff]
    %v251 = vld [vmem:[%s6 + $0x30] sm:$0xff]
    %v252 = vld [vmem:[%s6 + $0x38] sm:$0xff]
    %v253 = vld [vmem:[%s6 + $0x40] sm:$0xff]
    %v254 = vld [vmem:[%s6 + $0x48] sm:$0xff]
    %v255 = vld [vmem:[%s6 + $0x50] sm:$0xff]
    %v256 = vld [vmem:[%s6 + $0x58] sm:$0xff]
    %v257 = vld [vmem:[%s6 + $0x60] sm:$0xff]
    %v258 = vld [vmem:[%s6 + $0x68] sm:$0xff]
    %v259 = vld [vmem:[%s6 + $0x70] sm:$0xff]
    %v260 = vld [vmem:[%s6 + $0x78] sm:$0xff]
    %v261 = vlaneseq
    %v262 = vshrl.u32 %v261, 7
    %v263 = vsub.s32 0, %v262
    %v264 = vrot.slane %v51, %v263
    %265 = vmatprep.subr.mxu0 0.0
    %266 = vmatpush1.msra.mxu0 %v245
    %267 = vmatprep.subr.mxu0 0.0
    %268 = vmatpush1.msra.mxu0 %v246
    %269 = vmatprep.subr.mxu0 0.0
    %270 = vmatpush1.msra.mxu0 %v247
    %271 = vmatprep.subr.mxu0 0.0
    %272 = vmatpush1.msra.mxu0 %v248
    %273 = vmatprep.subr.mxu0 0.0
    %274 = vmatpush1.msra.mxu0 %v249
    %275 = vmatprep.subr.mxu0 0.0
    %276 = vmatpush1.msra.mxu0 %v250
    %277 = vmatprep.subr.mxu0 0.0
    %278 = vmatpush1.msra.mxu0 %v251
    %279 = vmatprep.subr.mxu0 0.0
    %280 = vmatpush1.msra.mxu0 %v252
    %281 = vmatprep.subr.mxu0 0.0
    %282 = vmatpush1.msra.mxu0 %v253
    %283 = vmatprep.subr.mxu0 0.0
    %284 = vmatpush1.msra.mxu0 %v254
    %285 = vmatprep.subr.mxu0 0.0
    %286 = vmatpush1.msra.mxu0 %v255
    %287 = vmatprep.subr.mxu0 0.0
    %288 = vmatpush1.msra.mxu0 %v256
    %289 = vmatprep.subr.mxu0 0.0
    %290 = vmatpush1.msra.mxu0 %v257
    %291 = vmatprep.subr.mxu0 0.0
    %292 = vmatpush1.msra.mxu0 %v258
    %293 = vmatprep.subr.mxu0 0.0
    %294 = vmatpush1.msra.mxu0 %v259
    %295 = vmatprep.subr.mxu0 0.0
    %296 = vmatpush1.msra.mxu0 %v260
    %297 = vmatprep.subr.mxu0 0.0
    %298 = vmatpush1.msra.mxu0 0.0
    %299 = vmatprep.subr.mxu0 0.0
    %300 = vmatpush1.msra.mxu0 0.0
    %301 = vmatprep.subr.mxu0 0.0
    %302 = vmatpush1.msra.mxu0 0.0
    %303 = vmatprep.subr.mxu0 0.0
    %304 = vmatpush1.msra.mxu0 0.0
    %305 = vmatprep.subr.mxu0 0.0
    %306 = vmatpush1.msra.mxu0 0.0
    %307 = vmatprep.subr.mxu0 0.0
    %308 = vmatpush1.msra.mxu0 0.0
    %309 = vmatprep.subr.mxu0 0.0
    %310 = vmatpush1.msra.mxu0 0.0
    %311 = vmatprep.subr.mxu0 0.0
    %312 = vmatpush1.msra.mxu0 0.0
    %313 = vmatprep.subr.mxu0 0.0
    %314 = vmatpush1.msra.mxu0 0.0
    %315 = vmatprep.subr.mxu0 0.0
    %316 = vmatpush1.msra.mxu0 0.0
    %317 = vmatprep.subr.mxu0 0.0
    %318 = vmatpush1.msra.mxu0 0.0
    %319 = vmatprep.subr.mxu0 0.0
    %320 = vmatpush1.msra.mxu0 0.0
    %321 = vmatprep.subr.mxu0 0.0
    %322 = vmatpush1.msra.mxu0 0.0
    %323 = vmatprep.subr.mxu0 0.0
    %324 = vmatpush1.msra.mxu0 0.0
    %325 = vmatprep.subr.mxu0 0.0
    %326 = vmatpush1.msra.mxu0 0.0
    %327 = vmatprep.subr.mxu0 0.0
    %328 = vmatpush1.msra.mxu0 0.0
    %329 = vmatprep.mubr.f32.mxu0 0.0
    %330 = vmatmul.mubr.f32.gmra.mrb[0].mxu0 %v244
    %v331 = vpop.f32.mrb[0].mxu0
    %v332 = vadd.f32 %v264, %v331
    %v333 = vpop.f32.mrb[0].mxu0
    %334 = vdwg.mxu0
    %v335 = vlaneseq
    %v336 = vshrl.u32 %v335, 7
    %v337 = vsub.s32 0, %v336
    %v338 = vrot.slane %v332, %v337
    %v339 = vlaneseq
    %v340 = vshrl.u32 %v339, 7
    %v341 = vsub.s32 1, %v340
    %v342 = vrot.slane %v332, %v341
    %v343 = vld [vmem:[%s0] sm:$0xff]
    %v344 = vld [vmem:[%s0 + $0x8] sm:$0xff]
    %v345 = vld [vmem:[%s7] sm:$0xff]
    %v346 = vld [vmem:[%s7 + $0x8] sm:$0xff]
    %v347 = vlaneseq
    %v348 = vshrl.u32 %v347, 7
    %v349 = vsub.s32 1, %v348
    %v350 = vrot.slane %v51, %v349
    %vm351 = vcmask 130048
    %v353 = vsel %vm351, %v343, 0
    %v356 = vsel %vm351, %v344, 0
    %358 = vmatprep.subr.mxu0 0.0
    %359 = vmatpush1.msra.mxu0 %v345
    %360 = vmatprep.subr.mxu0 0.0
    %361 = vmatpush1.msra.mxu0 %v346
    %362 = vmatprep.subr.mxu0 0.0
    %363 = vmatpush1.msra.mxu0 0.0
    %364 = vmatprep.subr.mxu0 0.0
    %365 = vmatpush1.msra.mxu0 0.0
    %366 = vmatprep.subr.mxu0 0.0
    %367 = vmatpush1.msra.mxu0 0.0
    %368 = vmatprep.subr.mxu0 0.0
    %369 = vmatpush1.msra.mxu0 0.0
    %370 = vmatprep.subr.mxu0 0.0
    %371 = vmatpush1.msra.mxu0 0.0
    %372 = vmatprep.subr.mxu0 0.0
    %373 = vmatpush1.msra.mxu0 0.0
    %374 = vmatprep.subr.mxu0 0.0
    %375 = vmatpush1.msra.mxu0 0.0
    %376 = vmatprep.subr.mxu0 0.0
    %377 = vmatpush1.msra.mxu0 0.0
    %378 = vmatprep.subr.mxu0 0.0
    %379 = vmatpush1.msra.mxu0 0.0
    %380 = vmatprep.subr.mxu0 0.0
    %381 = vmatpush1.msra.mxu0 0.0
    %382 = vmatprep.subr.mxu0 0.0
    %383 = vmatpush1.msra.mxu0 0.0
    %384 = vmatprep.subr.mxu0 0.0
    %385 = vmatpush1.msra.mxu0 0.0
    %386 = vmatprep.subr.mxu0 0.0
    %387 = vmatpush1.msra.mxu0 0.0
    %388 = vmatprep.subr.mxu0 0.0
    %389 = vmatpush1.msra.mxu0 0.0
    %390 = vmatprep.subr.mxu0 0.0
    %391 = vmatpush1.msra.mxu0 0.0
    %392 = vmatprep.subr.mxu0 0.0
    %393 = vmatpush1.msra.mxu0 0.0
    %394 = vmatprep.subr.mxu0 0.0
    %395 = vmatpush1.msra.mxu0 0.0
    %396 = vmatprep.subr.mxu0 0.0
    %397 = vmatpush1.msra.mxu0 0.0
    %398 = vmatprep.subr.mxu0 0.0
    %399 = vmatpush1.msra.mxu0 0.0
    %400 = vmatprep.subr.mxu0 0.0
    %401 = vmatpush1.msra.mxu0 0.0
    %402 = vmatprep.subr.mxu0 0.0
    %403 = vmatpush1.msra.mxu0 0.0
    %404 = vmatprep.subr.mxu0 0.0
    %405 = vmatpush1.msra.mxu0 0.0
    %406 = vmatprep.subr.mxu0 0.0
    %407 = vmatpush1.msra.mxu0 0.0
    %408 = vmatprep.subr.mxu0 0.0
    %409 = vmatpush1.msra.mxu0 0.0
    %410 = vmatprep.subr.mxu0 0.0
    %411 = vmatpush1.msra.mxu0 0.0
    %412 = vmatprep.subr.mxu0 0.0
    %413 = vmatpush1.msra.mxu0 0.0
    %414 = vmatprep.subr.mxu0 0.0
    %415 = vmatpush1.msra.mxu0 0.0
    %416 = vmatprep.subr.mxu0 0.0
    %417 = vmatpush1.msra.mxu0 0.0
    %418 = vmatprep.subr.mxu0 0.0
    %419 = vmatpush1.msra.mxu0 0.0
    %420 = vmatprep.subr.mxu0 0.0
    %421 = vmatpush1.msra.mxu0 0.0
    %422 = vmatprep.mubr.f32.mxu0 0.0
    %423 = vmatmul.mubr.f32.gmra.mrb[0].mxu0 %v353
    %v424 = vpop.f32.mrb[0].mxu0
    %v425 = vadd.f32 %v350, %v424
    %v426 = vpop.f32.mrb[0].mxu0
    %427 = vmatprep.mubr.f32.mxu0 0.0
    %428 = vmatmul.mubr.f32.gmra.mrb[0].mxu0 %v356
    %v429 = vpop.f32.mrb[0].mxu0
    %v430 = vadd.f32 %v350, %v429
    %v431 = vpop.f32.mrb[0].mxu0
    %432 = vdwg.mxu0
    %v433 = vld [vmem:[%s3] sm:$0xff]
    %v434 = vld [vmem:[%s3 + $0x8] sm:$0xff]
    %v435 = vadd.f32 %v425, %v433
    %v436 = vadd.f32 %v430, %v434
    %v437 = vadd.f32 %v435, %v338
    %v438 = vadd.f32 %v436, %v342
    %v439 = vld [vmem:[%s2] sm:$0xff]
    %v440 = vld [vmem:[%s2 + $0x8] sm:$0xff]
    %v441 = vld [vmem:[%s2 + $0x10] sm:$0xff]
    %v442 = vld [vmem:[%s2 + $0x18] sm:$0xff]
    %v443 = vld [vmem:[%s2 + $0x20] sm:$0xff]
    %v444 = vld [vmem:[%s2 + $0x28] sm:$0xff]
    %v445 = vld [vmem:[%s2 + $0x30] sm:$0xff]
    %v446 = vld [vmem:[%s2 + $0x38] sm:$0xff]
    %v447 = vld [vmem:[%s9] sm:$0x3f]
    %v448 = vsel %vm62, %v437, 0.0
    %449 = vadd.xlane.f32.xlu0 %v448
    %v450 = vpop.xlane.xlu0 %449
    %v451 = vsel %vm62, %v438, 0.0
    %452 = vadd.xlane.f32.xlu0 %v451
    %v453 = vpop.xlane.xlu0 %452
    %v454 = vrcp.pop 32.0
    %v455 = vmul.f32 %v450, %v454
    %v456 = vmul.f32 %v453, %v454
    %v457 = vsub.f32 %v437, %v455
    %v458 = vsub.f32 %v438, %v456
    %v459 = vmul.f32 %v457, %v457
    %v460 = vmul.f32 %v458, %v458
    %v461 = vsel %vm62, %v459, 0.0
    %462 = vadd.xlane.f32.xlu0 %v461
    %v463 = vpop.xlane.xlu0 %462
    %v464 = vsel %vm62, %v460, 0.0
    %465 = vadd.xlane.f32.xlu0 %v464
    %v466 = vpop.xlane.xlu0 %465
    %v467 = vmul.f32 %v463, %v454
    %v468 = vmul.f32 %v466, %v454
    %v469 = vadd.f32 %v467, 1e-05
    %v470 = vadd.f32 %v468, 1e-05
    %v471 = vrsqrt.pop %v469
    %v472 = vrsqrt.pop %v470
    %v473 = vmul.f32 %v457, %v471
    %v474 = vmul.f32 %v458, %v472
    %v475 = vlaneseq
    %v476 = vshrl.u32 %v475, 7
    %v477 = vsub.s32 0, %v476
    %v478 = vrot.slane %v447, %v477
    %v479 = vmul.f32 %v473, %v478
    %v480 = vmul.f32 %v474, %v478
    %v481 = vlaneseq
    %v482 = vshrl.u32 %v481, 7
    %v483 = vsub.s32 1, %v482
    %v484 = vrot.slane %v447, %v483
    %v485 = vadd.f32 %v479, %v484
    %v486 = vadd.f32 %v480, %v484
    %v487 = vld [vmem:[%s10] sm:$0xff]
    %v488 = vld [vmem:[%s10 + $0x8] sm:$0xff]
    %v489 = vld [vmem:[%s10 + $0x10] sm:$0xff]
    %v490 = vld [vmem:[%s10 + $0x18] sm:$0xff]
    %v491 = vld [vmem:[%s10 + $0x20] sm:$0xff]
    %v492 = vld [vmem:[%s10 + $0x28] sm:$0xff]
    %v493 = vld [vmem:[%s10 + $0x40] sm:$0xff]
    %v494 = vld [vmem:[%s10 + $0x48] sm:$0xff]
    %v495 = vld [vmem:[%s10 + $0x50] sm:$0xff]
    %v496 = vld [vmem:[%s10 + $0x58] sm:$0xff]
    %v497 = vld [vmem:[%s10 + $0x60] sm:$0xff]
    %v498 = vld [vmem:[%s10 + $0x68] sm:$0xff]
    %v499 = vld [vmem:[%s10 + $0x80] sm:$0xff]
    %v500 = vld [vmem:[%s10 + $0x88] sm:$0xff]
    %v501 = vld [vmem:[%s10 + $0x90] sm:$0xff]
    %v502 = vld [vmem:[%s10 + $0x98] sm:$0xff]
    %v503 = vld [vmem:[%s10 + $0xa0] sm:$0xff]
    %v504 = vld [vmem:[%s10 + $0xa8] sm:$0xff]
    %v505 = vld [vmem:[%s10 + $0xc0] sm:$0xff]
    %v506 = vld [vmem:[%s10 + $0xc8] sm:$0xff]
    %v507 = vld [vmem:[%s10 + $0xd0] sm:$0xff]
    %v508 = vld [vmem:[%s10 + $0xd8] sm:$0xff]
    %v509 = vld [vmem:[%s10 + $0xe0] sm:$0xff]
    %v510 = vld [vmem:[%s10 + $0xe8] sm:$0xff]
    %v512 = vsel %vm62, %v485, 0
    %v515 = vsel %vm62, %v486, 0
    %517 = vmatprep.subr.mxu0 %v488
    %518 = vmatpush1.msra.mxu0 %v487
    %519 = vmatprep.subr.mxu0 %v494
    %520 = vmatpush1.msra.mxu0 %v493
    %521 = vmatprep.subr.mxu0 %v500
    %522 = vmatpush1.msra.mxu0 %v499
    %523 = vmatprep.subr.mxu0 %v506
    %524 = vmatpush1.msra.mxu0 %v505
    %525 = vmatprep.subr.mxu0 0.0
    %526 = vmatpush1.msra.mxu0 0.0
    %527 = vmatprep.subr.mxu0 0.0
    %528 = vmatpush1.msra.mxu0 0.0
    %529 = vmatprep.subr.mxu0 0.0
    %530 = vmatpush1.msra.mxu0 0.0
    %531 = vmatprep.subr.mxu0 0.0
    %532 = vmatpush1.msra.mxu0 0.0
    %533 = vmatprep.subr.mxu0 0.0
    %534 = vmatpush1.msra.mxu0 0.0
    %535 = vmatprep.subr.mxu0 0.0
    %536 = vmatpush1.msra.mxu0 0.0
    %537 = vmatprep.subr.mxu0 0.0
    %538 = vmatpush1.msra.mxu0 0.0
    %539 = vmatprep.subr.mxu0 0.0
    %540 = vmatpush1.msra.mxu0 0.0
    %541 = vmatprep.subr.mxu0 0.0
    %542 = vmatpush1.msra.mxu0 0.0
    %543 = vmatprep.subr.mxu0 0.0
    %544 = vmatpush1.msra.mxu0 0.0
    %545 = vmatprep.subr.mxu0 0.0
    %546 = vmatpush1.msra.mxu0 0.0
    %547 = vmatprep.subr.mxu0 0.0
    %548 = vmatpush1.msra.mxu0 0.0
    %549 = vmatprep.subr.mxu0 0.0
    %550 = vmatpush1.msra.mxu0 0.0
    %551 = vmatprep.subr.mxu0 0.0
    %552 = vmatpush1.msra.mxu0 0.0
    %553 = vmatprep.subr.mxu0 0.0
    %554 = vmatpush1.msra.mxu0 0.0
    %555 = vmatprep.subr.mxu0 0.0
    %556 = vmatpush1.msra.mxu0 0.0
    %557 = vmatprep.subr.mxu0 0.0
    %558 = vmatpush1.msra.mxu0 0.0
    %559 = vmatprep.subr.mxu0 0.0
    %560 = vmatpush1.msra.mxu0 0.0
    %561 = vmatprep.subr.mxu0 0.0
    %562 = vmatpush1.msra.mxu0 0.0
    %563 = vmatprep.subr.mxu0 0.0
    %564 = vmatpush1.msra.mxu0 0.0
    %565 = vmatprep.subr.mxu0 0.0
    %566 = vmatpush1.msra.mxu0 0.0
    %567 = vmatprep.subr.mxu0 0.0
    %568 = vmatpush1.msra.mxu0 0.0
    %569 = vmatprep.subr.mxu0 0.0
    %570 = vmatpush1.msra.mxu0 0.0
    %571 = vmatprep.subr.mxu0 0.0
    %572 = vmatpush1.msra.mxu0 0.0
    %573 = vmatprep.subr.mxu0 0.0
    %574 = vmatpush1.msra.mxu0 0.0
    %575 = vmatprep.subr.mxu0 0.0
    %576 = vmatpush1.msra.mxu0 0.0
    %577 = vmatprep.subr.mxu0 0.0
    %578 = vmatpush1.msra.mxu0 0.0
    %579 = vmatprep.subr.mxu0 0.0
    %580 = vmatpush1.msra.mxu0 0.0
    %581 = vmatprep.mubr.f32.mxu0 0.0
    %582 = vmatmul.mubr.f32.gmra.mrb[0].mxu0 %v512
    %v583 = vpop.f32.mrb[0].mxu0
    %v584 = vadd.f32 0.0, %v583
    %v585 = vpop.f32.mrb[0].mxu0
    %v586 = vadd.f32 0.0, %v585
    %587 = vmatprep.mubr.f32.mxu0 0.0
    %588 = vmatmul.mubr.f32.gmra.mrb[0].mxu0 %v515
    %v589 = vpop.f32.mrb[0].mxu0
    %v590 = vadd.f32 0.0, %v589
    %v591 = vpop.f32.mrb[0].mxu0
    %v592 = vadd.f32 0.0, %v591
    %593 = vdwg.mxu0
    %594 = vmatprep.subr.mxu0 %v490
    %595 = vmatpush1.msra.mxu0 %v489
    %596 = vmatprep.subr.mxu0 %v496
    %597 = vmatpush1.msra.mxu0 %v495
    %598 = vmatprep.subr.mxu0 %v502
    %599 = vmatpush1.msra.mxu0 %v501
    %600 = vmatprep.subr.mxu0 %v508
    %601 = vmatpush1.msra.mxu0 %v507
    %602 = vmatprep.subr.mxu0 0.0
    %603 = vmatpush1.msra.mxu0 0.0
    %604 = vmatprep.subr.mxu0 0.0
    %605 = vmatpush1.msra.mxu0 0.0
    %606 = vmatprep.subr.mxu0 0.0
    %607 = vmatpush1.msra.mxu0 0.0
    %608 = vmatprep.subr.mxu0 0.0
    %609 = vmatpush1.msra.mxu0 0.0
    %610 = vmatprep.subr.mxu0 0.0
    %611 = vmatpush1.msra.mxu0 0.0
    %612 = vmatprep.subr.mxu0 0.0
    %613 = vmatpush1.msra.mxu0 0.0
    %614 = vmatprep.subr.mxu0 0.0
    %615 = vmatpush1.msra.mxu0 0.0
    %616 = vmatprep.subr.mxu0 0.0
    %617 = vmatpush1.msra.mxu0 0.0
    %618 = vmatprep.subr.mxu0 0.0
    %619 = vmatpush1.msra.mxu0 0.0
    %620 = vmatprep.subr.mxu0 0.0
    %621 = vmatpush1.msra.mxu0 0.0
    %622 = vmatprep.subr.mxu0 0.0
    %623 = vmatpush1.msra.mxu0 0.0
    %624 = vmatprep.subr.mxu0 0.0
    %625 = vmatpush1.msra.mxu0 0.0
    %626 = vmatprep.subr.mxu0 0.0
    %627 = vmatpush1.msra.mxu0 0.0
    %628 = vmatprep.subr.mxu0 0.0
    %629 = vmatpush1.msra.mxu0 0.0
    %630 = vmatprep.subr.mxu0 0.0
    %631 = vmatpush1.msra.mxu0 0.0
    %632 = vmatprep.subr.mxu0 0.0
    %633 = vmatpush1.msra.mxu0 0.0
    %634 = vmatprep.subr.mxu0 0.0
    %635 = vmatpush1.msra.mxu0 0.0
    %636 = vmatprep.subr.mxu0 0.0
    %637 = vmatpush1.msra.mxu0 0.0
    %638 = vmatprep.subr.mxu0 0.0
    %639 = vmatpush1.msra.mxu0 0.0
    %640 = vmatprep.subr.mxu0 0.0
    %641 = vmatpush1.msra.mxu0 0.0
    %642 = vmatprep.subr.mxu0 0.0
    %643 = vmatpush1.msra.mxu0 0.0
    %644 = vmatprep.subr.mxu0 0.0
    %645 = vmatpush1.msra.mxu0 0.0
    %646 = vmatprep.subr.mxu0 0.0
    %647 = vmatpush1.msra.mxu0 0.0
    %648 = vmatprep.subr.mxu0 0.0
    %649 = vmatpush1.msra.mxu0 0.0
    %650 = vmatprep.subr.mxu0 0.0
    %651 = vmatpush1.msra.mxu0 0.0
    %652 = vmatprep.subr.mxu0 0.0
    %653 = vmatpush1.msra.mxu0 0.0
    %654 = vmatprep.subr.mxu0 0.0
    %655 = vmatpush1.msra.mxu0 0.0
    %656 = vmatprep.subr.mxu0 0.0
    %657 = vmatpush1.msra.mxu0 0.0
    %658 = vmatprep.mubr.f32.mxu0 0.0
    %659 = vmatmul.mubr.f32.gmra.mrb[0].mxu0 %v512
    %v660 = vpop.f32.mrb[0].mxu0
    %v661 = vadd.f32 0.0, %v660
    %v662 = vpop.f32.mrb[0].mxu0
    %v663 = vadd.f32 0.0, %v662
    %664 = vmatprep.mubr.f32.mxu0 0.0
    %665 = vmatmul.mubr.f32.gmra.mrb[0].mxu0 %v515
    %v666 = vpop.f32.mrb[0].mxu0
    %v667 = vadd.f32 0.0, %v666
    %v668 = vpop.f32.mrb[0].mxu0
    %v669 = vadd.f32 0.0, %v668
    %670 = vdwg.mxu0
    %671 = vmatprep.subr.mxu0 %v492
    %672 = vmatpush1.msra.mxu0 %v491
    %673 = vmatprep.subr.mxu0 %v498
    %674 = vmatpush1.msra.mxu0 %v497
    %675 = vmatprep.subr.mxu0 %v504
    %676 = vmatpush1.msra.mxu0 %v503
    %677 = vmatprep.subr.mxu0 %v510
    %678 = vmatpush1.msra.mxu0 %v509
    %679 = vmatprep.subr.mxu0 0.0
    %680 = vmatpush1.msra.mxu0 0.0
    %681 = vmatprep.subr.mxu0 0.0
    %682 = vmatpush1.msra.mxu0 0.0
    %683 = vmatprep.subr.mxu0 0.0
    %684 = vmatpush1.msra.mxu0 0.0
    %685 = vmatprep.subr.mxu0 0.0
    %686 = vmatpush1.msra.mxu0 0.0
    %687 = vmatprep.subr.mxu0 0.0
    %688 = vmatpush1.msra.mxu0 0.0
    %689 = vmatprep.subr.mxu0 0.0
    %690 = vmatpush1.msra.mxu0 0.0
    %691 = vmatprep.subr.mxu0 0.0
    %692 = vmatpush1.msra.mxu0 0.0
    %693 = vmatprep.subr.mxu0 0.0
    %694 = vmatpush1.msra.mxu0 0.0
    %695 = vmatprep.subr.mxu0 0.0
    %696 = vmatpush1.msra.mxu0 0.0
    %697 = vmatprep.subr.mxu0 0.0
    %698 = vmatpush1.msra.mxu0 0.0
    %699 = vmatprep.subr.mxu0 0.0
    %700 = vmatpush1.msra.mxu0 0.0
    %701 = vmatprep.subr.mxu0 0.0
    %702 = vmatpush1.msra.mxu0 0.0
    %703 = vmatprep.subr.mxu0 0.0
    %704 = vmatpush1.msra.mxu0 0.0
    %705 = vmatprep.subr.mxu0 0.0
    %706 = vmatpush1.msra.mxu0 0.0
    %707 = vmatprep.subr.mxu0 0.0
    %708 = vmatpush1.msra.mxu0 0.0
    %709 = vmatprep.subr.mxu0 0.0
    %710 = vmatpush1.msra.mxu0 0.0
    %711 = vmatprep.subr.mxu0 0.0
    %712 = vmatpush1.msra.mxu0 0.0
    %713 = vmatprep.subr.mxu0 0.0
    %714 = vmatpush1.msra.mxu0 0.0
    %715 = vmatprep.subr.mxu0 0.0
    %716 = vmatpush1.msra.mxu0 0.0
    %717 = vmatprep.subr.mxu0 0.0
    %718 = vmatpush1.msra.mxu0 0.0
    %719 = vmatprep.subr.mxu0 0.0
    %720 = vmatpush1.msra.mxu0 0.0
    %721 = vmatprep.subr.mxu0 0.0
    %722 = vmatpush1.msra.mxu0 0.0
    %723 = vmatprep.subr.mxu0 0.0
    %724 = vmatpush1.msra.mxu0 0.0
    %725 = vmatprep.subr.mxu0 0.0
    %726 = vmatpush1.msra.mxu0 0.0
    %727 = vmatprep.subr.mxu0 0.0
    %728 = vmatpush1.msra.mxu0 0.0
    %729 = vmatprep.subr.mxu0 0.0
    %730 = vmatpush1.msra.mxu0 0.0
    %731 = vmatprep.subr.mxu0 0.0
    %732 = vmatpush1.msra.mxu0 0.0
    %733 = vmatprep.subr.mxu0 0.0
    %734 = vmatpush1.msra.mxu0 0.0
    %735 = vmatprep.mubr.f32.mxu0 0.0
    %736 = vmatmul.mubr.f32.gmra.mrb[0].mxu0 %v512
    %v737 = vpop.f32.mrb[0].mxu0
    %v738 = vadd.f32 0.0, %v737
    %v739 = vpop.f32.mrb[0].mxu0
    %v740 = vadd.f32 0.0, %v739
    %741 = vmatprep.mubr.f32.mxu0 0.0
    %742 = vmatmul.mubr.f32.gmra.mrb[0].mxu0 %v515
    %v743 = vpop.f32.mrb[0].mxu0
    %v744 = vadd.f32 0.0, %v743
    %v745 = vpop.f32.mrb[0].mxu0
    %v746 = vadd.f32 0.0, %v745
    %747 = vdwg.mxu0
    %vm748 = vcmask 523264
    %v750 = vsel %vm748, %v584, 0
    %v753 = vsel %vm748, %v590, 0
    %v756 = vsel %vm748, %v661, 0
    %v759 = vsel %vm748, %v667, 0
    %761 = vmatprep.subr.mxu0 0.0
    %762 = vmatpush1.xpose.msra.mxu0 %v756
    %763 = vmatprep.subr.mxu0 0.0
    %764 = vmatpush1.xpose.msra.mxu0 %v759
    %765 = vmatprep.subr.mxu0 0.0
    %766 = vmatpush1.xpose.msra.mxu0 0.0
    %767 = vmatprep.subr.mxu0 0.0
    %768 = vmatpush1.xpose.msra.mxu0 0.0
    %769 = vmatprep.subr.mxu0 0.0
    %770 = vmatpush1.xpose.msra.mxu0 0.0
    %771 = vmatprep.subr.mxu0 0.0
    %772 = vmatpush1.xpose.msra.mxu0 0.0
    %773 = vmatprep.subr.mxu0 0.0
    %774 = vmatpush1.xpose.msra.mxu0 0.0
    %775 = vmatprep.subr.mxu0 0.0
    %776 = vmatpush1.xpose.msra.mxu0 0.0
    %777 = vmatprep.subr.mxu0 0.0
    %778 = vmatpush1.xpose.msra.mxu0 0.0
    %779 = vmatprep.subr.mxu0 0.0
    %780 = vmatpush1.xpose.msra.mxu0 0.0
    %781 = vmatprep.subr.mxu0 0.0
    %782 = vmatpush1.xpose.msra.mxu0 0.0
    %783 = vmatprep.subr.mxu0 0.0
    %784 = vmatpush1.xpose.msra.mxu0 0.0
    %785 = vmatprep.subr.mxu0 0.0
    %786 = vmatpush1.xpose.msra.mxu0 0.0
    %787 = vmatprep.subr.mxu0 0.0
    %788 = vmatpush1.xpose.msra.mxu0 0.0
    %789 = vmatprep.subr.mxu0 0.0
    %790 = vmatpush1.xpose.msra.mxu0 0.0
    %791 = vmatprep.subr.mxu0 0.0
    %792 = vmatpush1.xpose.msra.mxu0 0.0
    %793 = vmatprep.subr.mxu0 0.0
    %794 = vmatpush1.xpose.msra.mxu0 0.0
    %795 = vmatprep.subr.mxu0 0.0
    %796 = vmatpush1.xpose.msra.mxu0 0.0
    %797 = vmatprep.subr.mxu0 0.0
    %798 = vmatpush1.xpose.msra.mxu0 0.0
    %799 = vmatprep.subr.mxu0 0.0
    %800 = vmatpush1.xpose.msra.mxu0 0.0
    %801 = vmatprep.subr.mxu0 0.0
    %802 = vmatpush1.xpose.msra.mxu0 0.0
    %803 = vmatprep.subr.mxu0 0.0
    %804 = vmatpush1.xpose.msra.mxu0 0.0
    %805 = vmatprep.subr.mxu0 0.0
    %806 = vmatpush1.xpose.msra.mxu0 0.0
    %807 = vmatprep.subr.mxu0 0.0
    %808 = vmatpush1.xpose.msra.mxu0 0.0
    %809 = vmatprep.subr.mxu0 0.0
    %810 = vmatpush1.xpose.msra.mxu0 0.0
    %811 = vmatprep.subr.mxu0 0.0
    %812 = vmatpush1.xpose.msra.mxu0 0.0
    %813 = vmatprep.subr.mxu0 0.0
    %814 = vmatpush1.xpose.msra.mxu0 0.0
    %815 = vmatprep.subr.mxu0 0.0
    %816 = vmatpush1.xpose.msra.mxu0 0.0
    %817 = vmatprep.subr.mxu0 0.0
    %818 = vmatpush1.xpose.msra.mxu0 0.0
    %819 = vmatprep.subr.mxu0 0.0
    %820 = vmatpush1.xpose.msra.mxu0 0.0
    %821 = vmatprep.subr.mxu0 0.0
    %822 = vmatpush1.xpose.msra.mxu0 0.0
    %823 = vmatprep.subr.mxu0 0.0
    %824 = vmatpush1.xpose.msra.mxu0 0.0
    %825 = vmatprep.mubr.f32.mxu0 0.0
    %826 = vmatmul.mubr.f32.gmra.mrb[0].mxu0 %v750
    %v827 = vpop.f32.mrb[0].mxu0
    %v828 = vadd.f32 0.0, %v827
    %v829 = vpop.f32.mrb[0].mxu0
    %830 = vmatprep.mubr.f32.mxu0 0.0
    %831 = vmatmul.mubr.f32.gmra.mrb[0].mxu0 %v753
    %v832 = vpop.f32.mrb[0].mxu0
    %v833 = vadd.f32 0.0, %v832
    %v834 = vpop.f32.mrb[0].mxu0
    %835 = vdwg.mxu0
    %v836 = vmul.f32 %v828, 0.125
    %v837 = vmul.f32 %v833, 0.125
    %v838 = vadd.f32 %v836, %v439
    %v839 = vadd.f32 %v837, %v440
    %v840 = vsel %vm351, %v838, -inf
    %841 = vmax.xlane.f32.xlu0 %v840
    %v842 = vpop.xlane.xlu0 %841
    %v843 = vsel %vm351, %v839, -inf
    %844 = vmax.xlane.f32.xlu0 %v843
    %v845 = vpop.xlane.xlu0 %844
    %v846 = vsub.f32 %v838, %v842
    %v847 = vsub.f32 %v839, %v845
    %v848 = vmul.f32 %v846, 1.442695
    %v849 = vpow.pop %v848
    %v850 = vmul.f32 %v847, 1.442695
    %v851 = vpow.pop %v850
    %v852 = vsel %vm351, %v849, 0.0
    %853 = vadd.xlane.f32.xlu0 %v852
    %v854 = vpop.xlane.xlu0 %853
    %v855 = vsel %vm351, %v851, 0.0
    %856 = vadd.xlane.f32.xlu0 %v855
    %v857 = vpop.xlane.xlu0 %856
    %v858 = vrcp.pop %v854
    %v859 = vmul.f32 %v849, %v858
    %v860 = vrcp.pop %v857
    %v861 = vmul.f32 %v851, %v860
    %v863 = vsel %vm351, %v859, 0
    %v866 = vsel %vm351, %v861, 0
    %868 = vmatprep.subr.mxu0 0.0
    %869 = vmatpush1.msra.mxu0 %v738
    %870 = vmatprep.subr.mxu0 0.0
    %871 = vmatpush1.msra.mxu0 %v744
    %872 = vmatprep.subr.mxu0 0.0
    %873 = vmatpush1.msra.mxu0 0.0
    %874 = vmatprep.subr.mxu0 0.0
    %875 = vmatpush1.msra.mxu0 0.0
    %876 = vmatprep.subr.mxu0 0.0
    %877 = vmatpush1.msra.mxu0 0.0
    %878 = vmatprep.subr.mxu0 0.0
    %879 = vmatpush1.msra.mxu0 0.0
    %880 = vmatprep.subr.mxu0 0.0
    %881 = vmatpush1.msra.mxu0 0.0
    %882 = vmatprep.subr.mxu0 0.0
    %883 = vmatpush1.msra.mxu0 0.0
    %884 = vmatprep.subr.mxu0 0.0
    %885 = vmatpush1.msra.mxu0 0.0
    %886 = vmatprep.subr.mxu0 0.0
    %887 = vmatpush1.msra.mxu0 0.0
    %888 = vmatprep.subr.mxu0 0.0
    %889 = vmatpush1.msra.mxu0 0.0
    %890 = vmatprep.subr.mxu0 0.0
    %891 = vmatpush1.msra.mxu0 0.0
    %892 = vmatprep.subr.mxu0 0.0
    %893 = vmatpush1.msra.mxu0 0.0
    %894 = vmatprep.subr.mxu0 0.0
    %895 = vmatpush1.msra.mxu0 0.0
    %896 = vmatprep.subr.mxu0 0.0
    %897 = vmatpush1.msra.mxu0 0.0
    %898 = vmatprep.subr.mxu0 0.0
    %899 = vmatpush1.msra.mxu0 0.0
    %900 = vmatprep.subr.mxu0 0.0
    %901 = vmatpush1.msra.mxu0 0.0
    %902 = vmatprep.subr.mxu0 0.0
    %903 = vmatpush1.msra.mxu0 0.0
    %904 = vmatprep.subr.mxu0 0.0
    %905 = vmatpush1.msra.mxu0 0.0
    %906 = vmatprep.subr.mxu0 0.0
    %907 = vmatpush1.msra.mxu0 0.0
    %908 = vmatprep.subr.mxu0 0.0
    %909 = vmatpush1.msra.mxu0 0.0
    %910 = vmatprep.subr.mxu0 0.0
    %911 = vmatpush1.msra.mxu0 0.0
    %912 = vmatprep.subr.mxu0 0.0
    %913 = vmatpush1.msra.mxu0 0.0
    %914 = vmatprep.subr.mxu0 0.0
    %915 = vmatpush1.msra.mxu0 0.0
    %916 = vmatprep.subr.mxu0 0.0
    %917 = vmatpush1.msra.mxu0 0.0
    %918 = vmatprep.subr.mxu0 0.0
    %919 = vmatpush1.msra.mxu0 0.0
    %920 = vmatprep.subr.mxu0 0.0
    %921 = vmatpush1.msra.mxu0 0.0
    %922 = vmatprep.subr.mxu0 0.0
    %923 = vmatpush1.msra.mxu0 0.0
    %924 = vmatprep.subr.mxu0 0.0
    %925 = vmatpush1.msra.mxu0 0.0
    %926 = vmatprep.subr.mxu0 0.0
    %927 = vmatpush1.msra.mxu0 0.0
    %928 = vmatprep.subr.mxu0 0.0
    %929 = vmatpush1.msra.mxu0 0.0
    %930 = vmatprep.subr.mxu0 0.0
    %931 = vmatpush1.msra.mxu0 0.0
    %932 = vmatprep.mubr.f32.mxu0 0.0
    %933 = vmatmul.mubr.f32.gmra.mrb[0].mxu0 %v863
    %v934 = vpop.f32.mrb[0].mxu0
    %v935 = vadd.f32 0.0, %v934
    %v936 = vpop.f32.mrb[0].mxu0
    %937 = vmatprep.mubr.f32.mxu0 0.0
    %938 = vmatmul.mubr.f32.gmra.mrb[0].mxu0 %v866
    %v939 = vpop.f32.mrb[0].mxu0
    %v940 = vadd.f32 0.0, %v939
    %v941 = vpop.f32.mrb[0].mxu0
    %942 = vdwg.mxu0
    %943 = vrot.lane.b32.xlu0 %v584, 64
    %v944 = vpop.permute.xlu0 %943
    %945 = vrot.lane.b32.xlu0 %v590, 64
    %v946 = vpop.permute.xlu0 %945
    %947 = vrot.lane.b32.xlu0 %v661, 64
    %v948 = vpop.permute.xlu0 %947
    %949 = vrot.lane.b32.xlu0 %v667, 64
    %v950 = vpop.permute.xlu0 %949
    %v951 = vsel %vm748, %v944, 0
    %v953 = vsel %vm748, %v946, 0
    %v955 = vsel %vm748, %v948, 0
    %v957 = vsel %vm748, %v950, 0
    %959 = vmatprep.subr.mxu0 0.0
    %960 = vmatpush1.xpose.msra.mxu0 %v955
    %961 = vmatprep.subr.mxu0 0.0
    %962 = vmatpush1.xpose.msra.mxu0 %v957
    %963 = vmatprep.subr.mxu0 0.0
    %964 = vmatpush1.xpose.msra.mxu0 0.0
    %965 = vmatprep.subr.mxu0 0.0
    %966 = vmatpush1.xpose.msra.mxu0 0.0
    %967 = vmatprep.subr.mxu0 0.0
    %968 = vmatpush1.xpose.msra.mxu0 0.0
    %969 = vmatprep.subr.mxu0 0.0
    %970 = vmatpush1.xpose.msra.mxu0 0.0
    %971 = vmatprep.subr.mxu0 0.0
    %972 = vmatpush1.xpose.msra.mxu0 0.0
    %973 = vmatprep.subr.mxu0 0.0
    %974 = vmatpush1.xpose.msra.mxu0 0.0
    %975 = vmatprep.subr.mxu0 0.0
    %976 = vmatpush1.xpose.msra.mxu0 0.0
    %977 = vmatprep.subr.mxu0 0.0
    %978 = vmatpush1.xpose.msra.mxu0 0.0
    %979 = vmatprep.subr.mxu0 0.0
    %980 = vmatpush1.xpose.msra.mxu0 0.0
    %981 = vmatprep.subr.mxu0 0.0
    %982 = vmatpush1.xpose.msra.mxu0 0.0
    %983 = vmatprep.subr.mxu0 0.0
    %984 = vmatpush1.xpose.msra.mxu0 0.0
    %985 = vmatprep.subr.mxu0 0.0
    %986 = vmatpush1.xpose.msra.mxu0 0.0
    %987 = vmatprep.subr.mxu0 0.0
    %988 = vmatpush1.xpose.msra.mxu0 0.0
    %989 = vmatprep.subr.mxu0 0.0
    %990 = vmatpush1.xpose.msra.mxu0 0.0
    %991 = vmatprep.subr.mxu0 0.0
    %992 = vmatpush1.xpose.msra.mxu0 0.0
    %993 = vmatprep.subr.mxu0 0.0
    %994 = vmatpush1.xpose.msra.mxu0 0.0
    %995 = vmatprep.subr.mxu0 0.0
    %996 = vmatpush1.xpose.msra.mxu0 0.0
    %997 = vmatprep.subr.mxu0 0.0
    %998 = vmatpush1.xpose.msra.mxu0 0.0
    %999 = vmatprep.subr.mxu0 0.0
    %1000 = vmatpush1.xpose.msra.mxu0 0.0
    %1001 = vmatprep.subr.mxu0 0.0
    %1002 = vmatpush1.xpose.msra.mxu0 0.0
    %1003 = vmatprep.subr.mxu0 0.0
    %1004 = vmatpush1.xpose.msra.mxu0 0.0
    %1005 = vmatprep.subr.mxu0 0.0
    %1006 = vmatpush1.xpose.msra.mxu0 0.0
    %1007 = vmatprep.subr.mxu0 0.0
    %1008 = vmatpush1.xpose.msra.mxu0 0.0
    %1009 = vmatprep.subr.mxu0 0.0
    %1010 = vmatpush1.xpose.msra.mxu0 0.0
    %1011 = vmatprep.subr.mxu0 0.0
    %1012 = vmatpush1.xpose.msra.mxu0 0.0
    %1013 = vmatprep.subr.mxu0 0.0
    %1014 = vmatpush1.xpose.msra.mxu0 0.0
    %1015 = vmatprep.subr.mxu0 0.0
    %1016 = vmatpush1.xpose.msra.mxu0 0.0
    %1017 = vmatprep.subr.mxu0 0.0
    %1018 = vmatpush1.xpose.msra.mxu0 0.0
    %1019 = vmatprep.subr.mxu0 0.0
    %1020 = vmatpush1.xpose.msra.mxu0 0.0
    %1021 = vmatprep.subr.mxu0 0.0
    %1022 = vmatpush1.xpose.msra.mxu0 0.0
    %1023 = vmatprep.mubr.f32.mxu0 0.0
    %1024 = vmatmul.mubr.f32.gmra.mrb[0].mxu0 %v951
    %v1025 = vpop.f32.mrb[0].mxu0
    %v1026 = vadd.f32 0.0, %v1025
    %v1027 = vpop.f32.mrb[0].mxu0
    %1028 = vmatprep.mubr.f32.mxu0 0.0
    %1029 = vmatmul.mubr.f32.gmra.mrb[0].mxu0 %v953
    %v1030 = vpop.f32.mrb[0].mxu0
    %v1031 = vadd.f32 0.0, %v1030
    %v1032 = vpop.f32.mrb[0].mxu0
    %1033 = vdwg.mxu0
    %v1034 = vmul.f32 %v1026, 0.125
    %v1035 = vmul.f32 %v1031, 0.125
    %v1036 = vadd.f32 %v1034, %v441
    %v1037 = vadd.f32 %v1035, %v442
    %v1038 = vsel %vm351, %v1036, -inf
    %1039 = vmax.xlane.f32.xlu0 %v1038
    %v1040 = vpop.xlane.xlu0 %1039
    %v1041 = vsel %vm351, %v1037, -inf
    %1042 = vmax.xlane.f32.xlu0 %v1041
    %v1043 = vpop.xlane.xlu0 %1042
    %v1044 = vsub.f32 %v1036, %v1040
    %v1045 = vsub.f32 %v1037, %v1043
    %v1046 = vmul.f32 %v1044, 1.442695
    %v1047 = vpow.pop %v1046
    %v1048 = vmul.f32 %v1045, 1.442695
    %v1049 = vpow.pop %v1048
    %v1050 = vsel %vm351, %v1047, 0.0
    %1051 = vadd.xlane.f32.xlu0 %v1050
    %v1052 = vpop.xlane.xlu0 %1051
    %v1053 = vsel %vm351, %v1049, 0.0
    %1054 = vadd.xlane.f32.xlu0 %v1053
    %v1055 = vpop.xlane.xlu0 %1054
    %v1056 = vrcp.pop %v1052
    %v1057 = vmul.f32 %v1047, %v1056
    %v1058 = vrcp.pop %v1055
    %v1059 = vmul.f32 %v1049, %v1058
    %1062 = vrot.lane.b32.xlu0 %v738, 64
    %v1063 = vpop.permute.xlu0 %1062
    %1064 = vrot.lane.b32.xlu0 %v744, 64
    %v1065 = vpop.permute.xlu0 %1064
    %v1069 = vsel %vm351, %v1057, 0
    %v1072 = vsel %vm351, %v1059, 0
    %1074 = vmatprep.subr.mxu0 0.0
    %1075 = vmatpush1.msra.mxu0 %v1063
    %1076 = vmatprep.subr.mxu0 0.0
    %1077 = vmatpush1.msra.mxu0 %v1065
    %1078 = vmatprep.subr.mxu0 0.0
    %1079 = vmatpush1.msra.mxu0 0.0
    %1080 = vmatprep.subr.mxu0 0.0
    %1081 = vmatpush1.msra.mxu0 0.0
    %1082 = vmatprep.subr.mxu0 0.0
    %1083 = vmatpush1.msra.mxu0 0.0
    %1084 = vmatprep.subr.mxu0 0.0
    %1085 = vmatpush1.msra.mxu0 0.0
    %1086 = vmatprep.subr.mxu0 0.0
    %1087 = vmatpush1.msra.mxu0 0.0
    %1088 = vmatprep.subr.mxu0 0.0
    %1089 = vmatpush1.msra.mxu0 0.0
    %1090 = vmatprep.subr.mxu0 0.0
    %1091 = vmatpush1.msra.mxu0 0.0
    %1092 = vmatprep.subr.mxu0 0.0
    %1093 = vmatpush1.msra.mxu0 0.0
    %1094 = vmatprep.subr.mxu0 0.0
    %1095 = vmatpush1.msra.mxu0 0.0
    %1096 = vmatprep.subr.mxu0 0.0
    %1097 = vmatpush1.msra.mxu0 0.0
    %1098 = vmatprep.subr.mxu0 0.0
    %1099 = vmatpush1.msra.mxu0 0.0
    %1100 = vmatprep.subr.mxu0 0.0
    %1101 = vmatpush1.msra.mxu0 0.0
    %1102 = vmatprep.subr.mxu0 0.0
    %1103 = vmatpush1.msra.mxu0 0.0
    %1104 = vmatprep.subr.mxu0 0.0
    %1105 = vmatpush1.msra.mxu0 0.0
    %1106 = vmatprep.subr.mxu0 0.0
    %1107 = vmatpush1.msra.mxu0 0.0
    %1108 = vmatprep.subr.mxu0 0.0
    %1109 = vmatpush1.msra.mxu0 0.0
    %1110 = vmatprep.subr.mxu0 0.0
    %1111 = vmatpush1.msra.mxu0 0.0
    %1112 = vmatprep.subr.mxu0 0.0
    %1113 = vmatpush1.msra.mxu0 0.0
    %1114 = vmatprep.subr.mxu0 0.0
    %1115 = vmatpush1.msra.mxu0 0.0
    %1116 = vmatprep.subr.mxu0 0.0
    %1117 = vmatpush1.msra.mxu0 0.0
    %1118 = vmatprep.subr.mxu0 0.0
    %1119 = vmatpush1.msra.mxu0 0.0
    %1120 = vmatprep.subr.mxu0 0.0
    %1121 = vmatpush1.msra.mxu0 0.0
    %1122 = vmatprep.subr.mxu0 0.0
    %1123 = vmatpush1.msra.mxu0 0.0
    %1124 = vmatprep.subr.mxu0 0.0
    %1125 = vmatpush1.msra.mxu0 0.0
    %1126 = vmatprep.subr.mxu0 0.0
    %1127 = vmatpush1.msra.mxu0 0.0
    %1128 = vmatprep.subr.mxu0 0.0
    %1129 = vmatpush1.msra.mxu0 0.0
    %1130 = vmatprep.subr.mxu0 0.0
    %1131 = vmatpush1.msra.mxu0 0.0
    %1132 = vmatprep.subr.mxu0 0.0
    %1133 = vmatpush1.msra.mxu0 0.0
    %1134 = vmatprep.subr.mxu0 0.0
    %1135 = vmatpush1.msra.mxu0 0.0
    %1136 = vmatprep.subr.mxu0 0.0
    %1137 = vmatpush1.msra.mxu0 0.0
    %1138 = vmatprep.mubr.f32.mxu0 0.0
    %1139 = vmatmul.mubr.f32.gmra.mrb[0].mxu0 %v1069
    %v1140 = vpop.f32.mrb[0].mxu0
    %v1141 = vadd.f32 0.0, %v1140
    %v1142 = vpop.f32.mrb[0].mxu0
    %1143 = vmatprep.mubr.f32.mxu0 0.0
    %1144 = vmatmul.mubr.f32.gmra.mrb[0].mxu0 %v1072
    %v1145 = vpop.f32.mrb[0].mxu0
    %v1146 = vadd.f32 0.0, %v1145
    %v1147 = vpop.f32.mrb[0].mxu0
    %1148 = vdwg.mxu0
    %v1150 = vsel %vm748, %v586, 0
    %v1153 = vsel %vm748, %v592, 0
    %v1156 = vsel %vm748, %v663, 0
    %v1159 = vsel %vm748, %v669, 0
    %1161 = vmatprep.subr.mxu0 0.0
    %1162 = vmatpush1.xpose.msra.mxu0 %v1156
    %1163 = vmatprep.subr.mxu0 0.0
    %1164 = vmatpush1.xpose.msra.mxu0 %v1159
    %1165 = vmatprep.subr.mxu0 0.0
    %1166 = vmatpush1.xpose.msra.mxu0 0.0
    %1167 = vmatprep.subr.mxu0 0.0
    %1168 = vmatpush1.xpose.msra.mxu0 0.0
    %1169 = vmatprep.subr.mxu0 0.0
    %1170 = vmatpush1.xpose.msra.mxu0 0.0
    %1171 = vmatprep.subr.mxu0 0.0
    %1172 = vmatpush1.xpose.msra.mxu0 0.0
    %1173 = vmatprep.subr.mxu0 0.0
    %1174 = vmatpush1.xpose.msra.mxu0 0.0
    %1175 = vmatprep.subr.mxu0 0.0
    %1176 = vmatpush1.xpose.msra.mxu0 0.0
    %1177 = vmatprep.subr.mxu0 0.0
    %1178 = vmatpush1.xpose.msra.mxu0 0.0
    %1179 = vmatprep.subr.mxu0 0.0
    %1180 = vmatpush1.xpose.msra.mxu0 0.0
    %1181 = vmatprep.subr.mxu0 0.0
    %1182 = vmatpush1.xpose.msra.mxu0 0.0
    %1183 = vmatprep.subr.mxu0 0.0
    %1184 = vmatpush1.xpose.msra.mxu0 0.0
    %1185 = vmatprep.subr.mxu0 0.0
    %1186 = vmatpush1.xpose.msra.mxu0 0.0
    %1187 = vmatprep.subr.mxu0 0.0
    %1188 = vmatpush1.xpose.msra.mxu0 0.0
    %1189 = vmatprep.subr.mxu0 0.0
    %1190 = vmatpush1.xpose.msra.mxu0 0.0
    %1191 = vmatprep.subr.mxu0 0.0
    %1192 = vmatpush1.xpose.msra.mxu0 0.0
    %1193 = vmatprep.subr.mxu0 0.0
    %1194 = vmatpush1.xpose.msra.mxu0 0.0
    %1195 = vmatprep.subr.mxu0 0.0
    %1196 = vmatpush1.xpose.msra.mxu0 0.0
    %1197 = vmatprep.subr.mxu0 0.0
    %1198 = vmatpush1.xpose.msra.mxu0 0.0
    %1199 = vmatprep.subr.mxu0 0.0
    %1200 = vmatpush1.xpose.msra.mxu0 0.0
    %1201 = vmatprep.subr.mxu0 0.0
    %1202 = vmatpush1.xpose.msra.mxu0 0.0
    %1203 = vmatprep.subr.mxu0 0.0
    %1204 = vmatpush1.xpose.msra.mxu0 0.0
    %1205 = vmatprep.subr.mxu0 0.0
    %1206 = vmatpush1.xpose.msra.mxu0 0.0
    %1207 = vmatprep.subr.mxu0 0.0
    %1208 = vmatpush1.xpose.msra.mxu0 0.0
    %1209 = vmatprep.subr.mxu0 0.0
    %1210 = vmatpush1.xpose.msra.mxu0 0.0
    %1211 = vmatprep.subr.mxu0 0.0
    %1212 = vmatpush1.xpose.msra.mxu0 0.0
    %1213 = vmatprep.subr.mxu0 0.0
    %1214 = vmatpush1.xpose.msra.mxu0 0.0
    %1215 = vmatprep.subr.mxu0 0.0
    %1216 = vmatpush1.xpose.msra.mxu0 0.0
    %1217 = vmatprep.subr.mxu0 0.0
    %1218 = vmatpush1.xpose.msra.mxu0 0.0
    %1219 = vmatprep.subr.mxu0 0.0
    %1220 = vmatpush1.xpose.msra.mxu0 0.0
    %1221 = vmatprep.subr.mxu0 0.0
    %1222 = vmatpush1.xpose.msra.mxu0 0.0
    %1223 = vmatprep.subr.mxu0 0.0
    %1224 = vmatpush1.xpose.msra.mxu0 0.0
    %1225 = vmatprep.mubr.f32.mxu0 0.0
    %1226 = vmatmul.mubr.f32.gmra.mrb[0].mxu0 %v1150
    %v1227 = vpop.f32.mrb[0].mxu0
    %v1228 = vadd.f32 0.0, %v1227
    %v1229 = vpop.f32.mrb[0].mxu0
    %1230 = vmatprep.mubr.f32.mxu0 0.0
    %1231 = vmatmul.mubr.f32.gmra.mrb[0].mxu0 %v1153
    %v1232 = vpop.f32.mrb[0].mxu0
    %v1233 = vadd.f32 0.0, %v1232
    %v1234 = vpop.f32.mrb[0].mxu0
    %1235 = vdwg.mxu0
    %v1236 = vmul.f32 %v1228, 0.125
    %v1237 = vmul.f32 %v1233, 0.125
    %v1238 = vadd.f32 %v1236, %v443
    %v1239 = vadd.f32 %v1237, %v444
    %v1240 = vsel %vm351, %v1238, -inf
    %1241 = vmax.xlane.f32.xlu0 %v1240
    %v1242 = vpop.xlane.xlu0 %1241
    %v1243 = vsel %vm351, %v1239, -inf
    %1244 = vmax.xlane.f32.xlu0 %v1243
    %v1245 = vpop.xlane.xlu0 %1244
    %v1246 = vsub.f32 %v1238, %v1242
    %v1247 = vsub.f32 %v1239, %v1245
    %v1248 = vmul.f32 %v1246, 1.442695
    %v1249 = vpow.pop %v1248
    %v1250 = vmul.f32 %v1247, 1.442695
    %v1251 = vpow.pop %v1250
    %v1252 = vsel %vm351, %v1249, 0.0
    %1253 = vadd.xlane.f32.xlu0 %v1252
    %v1254 = vpop.xlane.xlu0 %1253
    %v1255 = vsel %vm351, %v1251, 0.0
    %1256 = vadd.xlane.f32.xlu0 %v1255
    %v1257 = vpop.xlane.xlu0 %1256
    %v1258 = vrcp.pop %v1254
    %v1259 = vmul.f32 %v1249, %v1258
    %v1260 = vrcp.pop %v1257
    %v1261 = vmul.f32 %v1251, %v1260
    %v1263 = vsel %vm351, %v1259, 0
    %v1266 = vsel %vm351, %v1261, 0
    %1268 = vmatprep.subr.mxu0 0.0
    %1269 = vmatpush1.msra.mxu0 %v740
    %1270 = vmatprep.subr.mxu0 0.0
    %1271 = vmatpush1.msra.mxu0 %v746
    %1272 = vmatprep.subr.mxu0 0.0
    %1273 = vmatpush1.msra.mxu0 0.0
    %1274 = vmatprep.subr.mxu0 0.0
    %1275 = vmatpush1.msra.mxu0 0.0
    %1276 = vmatprep.subr.mxu0 0.0
    %1277 = vmatpush1.msra.mxu0 0.0
    %1278 = vmatprep.subr.mxu0 0.0
    %1279 = vmatpush1.msra.mxu0 0.0
    %1280 = vmatprep.subr.mxu0 0.0
    %1281 = vmatpush1.msra.mxu0 0.0
    %1282 = vmatprep.subr.mxu0 0.0
    %1283 = vmatpush1.msra.mxu0 0.0
    %1284 = vmatprep.subr.mxu0 0.0
    %1285 = vmatpush1.msra.mxu0 0.0
    %1286 = vmatprep.subr.mxu0 0.0
    %1287 = vmatpush1.msra.mxu0 0.0
    %1288 = vmatprep.subr.mxu0 0.0
    %1289 = vmatpush1.msra.mxu0 0.0
    %1290 = vmatprep.subr.mxu0 0.0
    %1291 = vmatpush1.msra.mxu0 0.0
    %1292 = vmatprep.subr.mxu0 0.0
    %1293 = vmatpush1.msra.mxu0 0.0
    %1294 = vmatprep.subr.mxu0 0.0
    %1295 = vmatpush1.msra.mxu0 0.0
    %1296 = vmatprep.subr.mxu0 0.0
    %1297 = vmatpush1.msra.mxu0 0.0
    %1298 = vmatprep.subr.mxu0 0.0
    %1299 = vmatpush1.msra.mxu0 0.0
    %1300 = vmatprep.subr.mxu0 0.0
    %1301 = vmatpush1.msra.mxu0 0.0
    %1302 = vmatprep.subr.mxu0 0.0
    %1303 = vmatpush1.msra.mxu0 0.0
    %1304 = vmatprep.subr.mxu0 0.0
    %1305 = vmatpush1.msra.mxu0 0.0
    %1306 = vmatprep.subr.mxu0 0.0
    %1307 = vmatpush1.msra.mxu0 0.0
    %1308 = vmatprep.subr.mxu0 0.0
    %1309 = vmatpush1.msra.mxu0 0.0
    %1310 = vmatprep.subr.mxu0 0.0
    %1311 = vmatpush1.msra.mxu0 0.0
    %1312 = vmatprep.subr.mxu0 0.0
    %1313 = vmatpush1.msra.mxu0 0.0
    %1314 = vmatprep.subr.mxu0 0.0
    %1315 = vmatpush1.msra.mxu0 0.0
    %1316 = vmatprep.subr.mxu0 0.0
    %1317 = vmatpush1.msra.mxu0 0.0
    %1318 = vmatprep.subr.mxu0 0.0
    %1319 = vmatpush1.msra.mxu0 0.0
    %1320 = vmatprep.subr.mxu0 0.0
    %1321 = vmatpush1.msra.mxu0 0.0
    %1322 = vmatprep.subr.mxu0 0.0
    %1323 = vmatpush1.msra.mxu0 0.0
    %1324 = vmatprep.subr.mxu0 0.0
    %1325 = vmatpush1.msra.mxu0 0.0
    %1326 = vmatprep.subr.mxu0 0.0
    %1327 = vmatpush1.msra.mxu0 0.0
    %1328 = vmatprep.subr.mxu0 0.0
    %1329 = vmatpush1.msra.mxu0 0.0
    %1330 = vmatprep.subr.mxu0 0.0
    %1331 = vmatpush1.msra.mxu0 0.0
    %1332 = vmatprep.mubr.f32.mxu0 0.0
    %1333 = vmatmul.mubr.f32.gmra.mrb[0].mxu0 %v1263
    %v1334 = vpop.f32.mrb[0].mxu0
    %v1335 = vadd.f32 0.0, %v1334
    %v1336 = vpop.f32.mrb[0].mxu0
    %1337 = vmatprep.mubr.f32.mxu0 0.0
    %1338 = vmatmul.mubr.f32.gmra.mrb[0].mxu0 %v1266
    %v1339 = vpop.f32.mrb[0].mxu0
    %v1340 = vadd.f32 0.0, %v1339
    %v1341 = vpop.f32.mrb[0].mxu0
    %1342 = vdwg.mxu0
    %1343 = vrot.lane.b32.xlu0 %v586, 64
    %v1344 = vpop.permute.xlu0 %1343
    %1345 = vrot.lane.b32.xlu0 %v592, 64
    %v1346 = vpop.permute.xlu0 %1345
    %1347 = vrot.lane.b32.xlu0 %v663, 64
    %v1348 = vpop.permute.xlu0 %1347
    %1349 = vrot.lane.b32.xlu0 %v669, 64
    %v1350 = vpop.permute.xlu0 %1349
    %v1351 = vsel %vm748, %v1344, 0
    %v1353 = vsel %vm748, %v1346, 0
    %v1355 = vsel %vm748, %v1348, 0
    %v1357 = vsel %vm748, %v1350, 0
    %1359 = vmatprep.subr.mxu0 0.0
    %1360 = vmatpush1.xpose.msra.mxu0 %v1355
    %1361 = vmatprep.subr.mxu0 0.0
    %1362 = vmatpush1.xpose.msra.mxu0 %v1357
    %1363 = vmatprep.subr.mxu0 0.0
    %1364 = vmatpush1.xpose.msra.mxu0 0.0
    %1365 = vmatprep.subr.mxu0 0.0
    %1366 = vmatpush1.xpose.msra.mxu0 0.0
    %1367 = vmatprep.subr.mxu0 0.0
    %1368 = vmatpush1.xpose.msra.mxu0 0.0
    %1369 = vmatprep.subr.mxu0 0.0
    %1370 = vmatpush1.xpose.msra.mxu0 0.0
    %1371 = vmatprep.subr.mxu0 0.0
    %1372 = vmatpush1.xpose.msra.mxu0 0.0
    %1373 = vmatprep.subr.mxu0 0.0
    %1374 = vmatpush1.xpose.msra.mxu0 0.0
    %1375 = vmatprep.subr.mxu0 0.0
    %1376 = vmatpush1.xpose.msra.mxu0 0.0
    %1377 = vmatprep.subr.mxu0 0.0
    %1378 = vmatpush1.xpose.msra.mxu0 0.0
    %1379 = vmatprep.subr.mxu0 0.0
    %1380 = vmatpush1.xpose.msra.mxu0 0.0
    %1381 = vmatprep.subr.mxu0 0.0
    %1382 = vmatpush1.xpose.msra.mxu0 0.0
    %1383 = vmatprep.subr.mxu0 0.0
    %1384 = vmatpush1.xpose.msra.mxu0 0.0
    %1385 = vmatprep.subr.mxu0 0.0
    %1386 = vmatpush1.xpose.msra.mxu0 0.0
    %1387 = vmatprep.subr.mxu0 0.0
    %1388 = vmatpush1.xpose.msra.mxu0 0.0
    %1389 = vmatprep.subr.mxu0 0.0
    %1390 = vmatpush1.xpose.msra.mxu0 0.0
    %1391 = vmatprep.subr.mxu0 0.0
    %1392 = vmatpush1.xpose.msra.mxu0 0.0
    %1393 = vmatprep.subr.mxu0 0.0
    %1394 = vmatpush1.xpose.msra.mxu0 0.0
    %1395 = vmatprep.subr.mxu0 0.0
    %1396 = vmatpush1.xpose.msra.mxu0 0.0
    %1397 = vmatprep.subr.mxu0 0.0
    %1398 = vmatpush1.xpose.msra.mxu0 0.0
    %1399 = vmatprep.subr.mxu0 0.0
    %1400 = vmatpush1.xpose.msra.mxu0 0.0
    %1401 = vmatprep.subr.mxu0 0.0
    %1402 = vmatpush1.xpose.msra.mxu0 0.0
    %1403 = vmatprep.subr.mxu0 0.0
    %1404 = vmatpush1.xpose.msra.mxu0 0.0
    %1405 = vmatprep.subr.mxu0 0.0
    %1406 = vmatpush1.xpose.msra.mxu0 0.0
    %1407 = vmatprep.subr.mxu0 0.0
    %1408 = vmatpush1.xpose.msra.mxu0 0.0
    %1409 = vmatprep.subr.mxu0 0.0
    %1410 = vmatpush1.xpose.msra.mxu0 0.0
    %1411 = vmatprep.subr.mxu0 0.0
    %1412 = vmatpush1.xpose.msra.mxu0 0.0
    %1413 = vmatprep.subr.mxu0 0.0
    %1414 = vmatpush1.xpose.msra.mxu0 0.0
    %1415 = vmatprep.subr.mxu0 0.0
    %1416 = vmatpush1.xpose.msra.mxu0 0.0
    %1417 = vmatprep.subr.mxu0 0.0
    %1418 = vmatpush1.xpose.msra.mxu0 0.0
    %1419 = vmatprep.subr.mxu0 0.0
    %1420 = vmatpush1.xpose.msra.mxu0 0.0
    %1421 = vmatprep.subr.mxu0 0.0
    %1422 = vmatpush1.xpose.msra.mxu0 0.0
    %1423 = vmatprep.mubr.f32.mxu0 0.0
    %1424 = vmatmul.mubr.f32.gmra.mrb[0].mxu0 %v1351
    %v1425 = vpop.f32.mrb[0].mxu0
    %v1426 = vadd.f32 0.0, %v1425
    %v1427 = vpop.f32.mrb[0].mxu0
    %1428 = vmatprep.mubr.f32.mxu0 0.0
    %1429 = vmatmul.mubr.f32.gmra.mrb[0].mxu0 %v1353
    %v1430 = vpop.f32.mrb[0].mxu0
    %v1431 = vadd.f32 0.0, %v1430
    %v1432 = vpop.f32.mrb[0].mxu0
    %1433 = vdwg.mxu0
    %v1434 = vmul.f32 %v1426, 0.125
    %v1435 = vmul.f32 %v1431, 0.125
    %v1436 = vadd.f32 %v1434, %v445
    %v1437 = vadd.f32 %v1435, %v446
    %v1438 = vsel %vm351, %v1436, -inf
    %1439 = vmax.xlane.f32.xlu0 %v1438
    %v1440 = vpop.xlane.xlu0 %1439
    %v1441 = vsel %vm351, %v1437, -inf
    %1442 = vmax.xlane.f32.xlu0 %v1441
    %v1443 = vpop.xlane.xlu0 %1442
    %v1444 = vsub.f32 %v1436, %v1440
    %v1445 = vsub.f32 %v1437, %v1443
    %v1446 = vmul.f32 %v1444, 1.442695
    %v1447 = vpow.pop %v1446
    %v1448 = vmul.f32 %v1445, 1.442695
    %v1449 = vpow.pop %v1448
    %v1450 = vsel %vm351, %v1447, 0.0
    %1451 = vadd.xlane.f32.xlu0 %v1450
    %v1452 = vpop.xlane.xlu0 %1451
    %v1453 = vsel %vm351, %v1449, 0.0
    %1454 = vadd.xlane.f32.xlu0 %v1453
    %v1455 = vpop.xlane.xlu0 %1454
    %v1456 = vrcp.pop %v1452
    %v1457 = vmul.f32 %v1447, %v1456
    %v1458 = vrcp.pop %v1455
    %v1459 = vmul.f32 %v1449, %v1458
    %1462 = vrot.lane.b32.xlu0 %v740, 64
    %v1463 = vpop.permute.xlu0 %1462
    %1464 = vrot.lane.b32.xlu0 %v746, 64
    %v1465 = vpop.permute.xlu0 %1464
    %v1469 = vsel %vm351, %v1457, 0
    %v1472 = vsel %vm351, %v1459, 0
    %1474 = vmatprep.subr.mxu0 0.0
    %1475 = vmatpush1.msra.mxu0 %v1463
    %1476 = vmatprep.subr.mxu0 0.0
    %1477 = vmatpush1.msra.mxu0 %v1465
    %1478 = vmatprep.subr.mxu0 0.0
    %1479 = vmatpush1.msra.mxu0 0.0
    %1480 = vmatprep.subr.mxu0 0.0
    %1481 = vmatpush1.msra.mxu0 0.0
    %1482 = vmatprep.subr.mxu0 0.0
    %1483 = vmatpush1.msra.mxu0 0.0
    %1484 = vmatprep.subr.mxu0 0.0
    %1485 = vmatpush1.msra.mxu0 0.0
    %1486 = vmatprep.subr.mxu0 0.0
    %1487 = vmatpush1.msra.mxu0 0.0
    %1488 = vmatprep.subr.mxu0 0.0
    %1489 = vmatpush1.msra.mxu0 0.0
    %1490 = vmatprep.subr.mxu0 0.0
    %1491 = vmatpush1.msra.mxu0 0.0
    %1492 = vmatprep.subr.mxu0 0.0
    %1493 = vmatpush1.msra.mxu0 0.0
    %1494 = vmatprep.subr.mxu0 0.0
    %1495 = vmatpush1.msra.mxu0 0.0
    %1496 = vmatprep.subr.mxu0 0.0
    %1497 = vmatpush1.msra.mxu0 0.0
    %1498 = vmatprep.subr.mxu0 0.0
    %1499 = vmatpush1.msra.mxu0 0.0
    %1500 = vmatprep.subr.mxu0 0.0
    %1501 = vmatpush1.msra.mxu0 0.0
    %1502 = vmatprep.subr.mxu0 0.0
    %1503 = vmatpush1.msra.mxu0 0.0
    %1504 = vmatprep.subr.mxu0 0.0
    %1505 = vmatpush1.msra.mxu0 0.0
    %1506 = vmatprep.subr.mxu0 0.0
    %1507 = vmatpush1.msra.mxu0 0.0
    %1508 = vmatprep.subr.mxu0 0.0
    %1509 = vmatpush1.msra.mxu0 0.0
    %1510 = vmatprep.subr.mxu0 0.0
    %1511 = vmatpush1.msra.mxu0 0.0
    %1512 = vmatprep.subr.mxu0 0.0
    %1513 = vmatpush1.msra.mxu0 0.0
    %1514 = vmatprep.subr.mxu0 0.0
    %1515 = vmatpush1.msra.mxu0 0.0
    %1516 = vmatprep.subr.mxu0 0.0
    %1517 = vmatpush1.msra.mxu0 0.0
    %1518 = vmatprep.subr.mxu0 0.0
    %1519 = vmatpush1.msra.mxu0 0.0
    %1520 = vmatprep.subr.mxu0 0.0
    %1521 = vmatpush1.msra.mxu0 0.0
    %1522 = vmatprep.subr.mxu0 0.0
    %1523 = vmatpush1.msra.mxu0 0.0
    %1524 = vmatprep.subr.mxu0 0.0
    %1525 = vmatpush1.msra.mxu0 0.0
    %1526 = vmatprep.subr.mxu0 0.0
    %1527 = vmatpush1.msra.mxu0 0.0
    %1528 = vmatprep.subr.mxu0 0.0
    %1529 = vmatpush1.msra.mxu0 0.0
    %1530 = vmatprep.subr.mxu0 0.0
    %1531 = vmatpush1.msra.mxu0 0.0
    %1532 = vmatprep.subr.mxu0 0.0
    %1533 = vmatpush1.msra.mxu0 0.0
    %1534 = vmatprep.subr.mxu0 0.0
    %1535 = vmatpush1.msra.mxu0 0.0
    %1536 = vmatprep.subr.mxu0 0.0
    %1537 = vmatpush1.msra.mxu0 0.0
    %1538 = vmatprep.mubr.f32.mxu0 0.0
    %1539 = vmatmul.mubr.f32.gmra.mrb[0].mxu0 %v1469
    %v1540 = vpop.f32.mrb[0].mxu0
    %v1541 = vadd.f32 0.0, %v1540
    %v1542 = vpop.f32.mrb[0].mxu0
    %1543 = vmatprep.mubr.f32.mxu0 0.0
    %1544 = vmatmul.mubr.f32.gmra.mrb[0].mxu0 %v1472
    %v1545 = vpop.f32.mrb[0].mxu0
    %v1546 = vadd.f32 0.0, %v1545
    %v1547 = vpop.f32.mrb[0].mxu0
    %1548 = vdwg.mxu0
    %1551 = vrot.lane.b32.xlu0 %v1141, 64
    %v1552 = vpop.permute.xlu0 %1551
    %1553 = vrot.lane.b32.xlu0 %v1146, 64
    %v1554 = vpop.permute.xlu0 %1553
    %1559 = vrot.lane.b32.xlu0 %v1541, 64
    %v1560 = vpop.permute.xlu0 %1559
    %1561 = vrot.lane.b32.xlu0 %v1546, 64
    %v1562 = vpop.permute.xlu0 %1561
    %v1565 = vsel %vm748, %v935, %v1552
    %v1566 = vsel %vm748, %v940, %v1554
    %v1567 = vsel %vm748, %v1335, %v1560
    %v1568 = vsel %vm748, %v1340, %v1562
    %v1569 = vld [vmem:[%s12] sm:$0xff]
    %v1570 = vld [vmem:[%s12 + $0x8] sm:$0xff]
    %v1571 = vld [vmem:[%s12 + $0x10] sm:$0xff]
    %v1572 = vld [vmem:[%s12 + $0x18] sm:$0xff]
    %v1573 = vld [vmem:[%s12 + $0x20] sm:$0xff]
    %v1574 = vld [vmem:[%s12 + $0x28] sm:$0xff]
    %v1575 = vld [vmem:[%s12 + $0x30] sm:$0xff]
    %v1576 = vld [vmem:[%s12 + $0x38] sm:$0xff]
    %v1577 = vld [vmem:[%s12 + $0x40] sm:$0xff]
    %v1578 = vld [vmem:[%s12 + $0x48] sm:$0xff]
    %v1579 = vld [vmem:[%s12 + $0x50] sm:$0xff]
    %v1580 = vld [vmem:[%s12 + $0x58] sm:$0xff]
    %v1581 = vld [vmem:[%s12 + $0x60] sm:$0xff]
    %v1582 = vld [vmem:[%s12 + $0x68] sm:$0xff]
    %v1583 = vld [vmem:[%s12 + $0x70] sm:$0xff]
    %v1584 = vld [vmem:[%s12 + $0x78] sm:$0xff]
    %v1585 = vld [vmem:[%s12 + $0x80] sm:$0xff]
    %v1586 = vld [vmem:[%s12 + $0x88] sm:$0xff]
    %v1587 = vld [vmem:[%s12 + $0x90] sm:$0xff]
    %v1588 = vld [vmem:[%s12 + $0x98] sm:$0xff]
    %v1589 = vld [vmem:[%s12 + $0xa0] sm:$0xff]
    %v1590 = vld [vmem:[%s12 + $0xa8] sm:$0xff]
    %v1591 = vld [vmem:[%s12 + $0xb0] sm:$0xff]
    %v1592 = vld [vmem:[%s12 + $0xb8] sm:$0xff]
    %v1593 = vld [vmem:[%s12 + $0xc0] sm:$0xff]
    %v1594 = vld [vmem:[%s12 + $0xc8] sm:$0xff]
    %v1595 = vld [vmem:[%s12 + $0xd0] sm:$0xff]
    %v1596 = vld [vmem:[%s12 + $0xd8] sm:$0xff]
    %v1597 = vld [vmem:[%s12 + $0xe0] sm:$0xff]
    %v1598 = vld [vmem:[%s12 + $0xe8] sm:$0xff]
    %v1599 = vld [vmem:[%s12 + $0xf0] sm:$0xff]
    %v1600 = vld [vmem:[%s12 + $0xf8] sm:$0xff]
    %1601 = vmatprep.subr.mxu0 0.0
    %1602 = vmatpush1.msra.mxu0 %v1569
    %1603 = vmatprep.subr.mxu0 0.0
    %1604 = vmatpush1.msra.mxu0 %v1570
    %1605 = vmatprep.subr.mxu0 0.0
    %1606 = vmatpush1.msra.mxu0 %v1571
    %1607 = vmatprep.subr.mxu0 0.0
    %1608 = vmatpush1.msra.mxu0 %v1572
    %1609 = vmatprep.subr.mxu0 0.0
    %1610 = vmatpush1.msra.mxu0 %v1573
    %1611 = vmatprep.subr.mxu0 0.0
    %1612 = vmatpush1.msra.mxu0 %v1574
    %1613 = vmatprep.subr.mxu0 0.0
    %1614 = vmatpush1.msra.mxu0 %v1575
    %1615 = vmatprep.subr.mxu0 0.0
    %1616 = vmatpush1.msra.mxu0 %v1576
    %1617 = vmatprep.subr.mxu0 0.0
    %1618 = vmatpush1.msra.mxu0 %v1577
    %1619 = vmatprep.subr.mxu0 0.0
    %1620 = vmatpush1.msra.mxu0 %v1578
    %1621 = vmatprep.subr.mxu0 0.0
    %1622 = vmatpush1.msra.mxu0 %v1579
    %1623 = vmatprep.subr.mxu0 0.0
    %1624 = vmatpush1.msra.mxu0 %v1580
    %1625 = vmatprep.subr.mxu0 0.0
    %1626 = vmatpush1.msra.mxu0 %v1581
    %1627 = vmatprep.subr.mxu0 0.0
    %1628 = vmatpush1.msra.mxu0 %v1582
    %1629 = vmatprep.subr.mxu0 0.0
    %1630 = vmatpush1.msra.mxu0 %v1583
    %1631 = vmatprep.subr.mxu0 0.0
    %1632 = vmatpush1.msra.mxu0 %v1584
    %1633 = vmatprep.subr.mxu0 0.0
    %1634 = vmatpush1.msra.mxu0 %v1585
    %1635 = vmatprep.subr.mxu0 0.0
    %1636 = vmatpush1.msra.mxu0 %v1586
    %1637 = vmatprep.subr.mxu0 0.0
    %1638 = vmatpush1.msra.mxu0 %v1587
    %1639 = vmatprep.subr.mxu0 0.0
    %1640 = vmatpush1.msra.mxu0 %v1588
    %1641 = vmatprep.subr.mxu0 0.0
    %1642 = vmatpush1.msra.mxu0 %v1589
    %1643 = vmatprep.subr.mxu0 0.0
    %1644 = vmatpush1.msra.mxu0 %v1590
    %1645 = vmatprep.subr.mxu0 0.0
    %1646 = vmatpush1.msra.mxu0 %v1591
    %1647 = vmatprep.subr.mxu0 0.0
    %1648 = vmatpush1.msra.mxu0 %v1592
    %1649 = vmatprep.subr.mxu0 0.0
    %1650 = vmatpush1.msra.mxu0 %v1593
    %1651 = vmatprep.subr.mxu0 0.0
    %1652 = vmatpush1.msra.mxu0 %v1594
    %1653 = vmatprep.subr.mxu0 0.0
    %1654 = vmatpush1.msra.mxu0 %v1595
    %1655 = vmatprep.subr.mxu0 0.0
    %1656 = vmatpush1.msra.mxu0 %v1596
    %1657 = vmatprep.subr.mxu0 0.0
    %1658 = vmatpush1.msra.mxu0 %v1597
    %1659 = vmatprep.subr.mxu0 0.0
    %1660 = vmatpush1.msra.mxu0 %v1598
    %1661 = vmatprep.subr.mxu0 0.0
    %1662 = vmatpush1.msra.mxu0 %v1599
    %1663 = vmatprep.subr.mxu0 0.0
    %1664 = vmatpush1.msra.mxu0 %v1600
    %1665 = vmatprep.mubr.f32.mxu0 %v1567
    %1666 = vmatmul.mubr.f32.gmra.mrb[0].mxu0 %v1565
    %v1667 = vpop.f32.mrb[0].mxu0
    %v1668 = vadd.f32 0.0, %v1667
    %v1669 = vpop.f32.mrb[0].mxu0
    %1670 = vmatprep.mubr.f32.mxu0 %v1568
    %1671 = vmatmul.mubr.f32.gmra.mrb[0].mxu0 %v1566
    %v1672 = vpop.f32.mrb[0].mxu0
    %v1673 = vadd.f32 0.0, %v1672
    %v1674 = vpop.f32.mrb[0].mxu0
    %1675 = vdwg.mxu0
    %v1676 = vadd.f32 %v437, %v1668
    %v1677 = vadd.f32 %v438, %v1673
    %v1678 = vlaneseq
    %v1679 = vshrl.u32 %v1678, 7
    %v1680 = vsub.s32 2, %v1679
    %v1681 = vrot.slane %v447, %v1680
    %v1682 = vadd.f32 %v1676, %v1681
    %v1683 = vadd.f32 %v1677, %v1681
    %v1684 = vsel %vm62, %v1682, 0.0
    %1685 = vadd.xlane.f32.xlu0 %v1684
    %v1686 = vpop.xlane.xlu0 %1685
    %v1687 = vsel %vm62, %v1683, 0.0
    %1688 = vadd.xlane.f32.xlu0 %v1687
    %v1689 = vpop.xlane.xlu0 %1688
    %v1690 = vmul.f32 %v1686, %v454
    %v1691 = vmul.f32 %v1689, %v454
    %v1692 = vsub.f32 %v1682, %v1690
    %v1693 = vsub.f32 %v1683, %v1691
    %v1694 = vmul.f32 %v1692, %v1692
    %v1695 = vmul.f32 %v1693, %v1693
    %v1696 = vsel %vm62, %v1694, 0.0
    %1697 = vadd.xlane.f32.xlu0 %v1696
    %v1698 = vpop.xlane.xlu0 %1697
    %v1699 = vsel %vm62, %v1695, 0.0
    %1700 = vadd.xlane.f32.xlu0 %v1699
    %v1701 = vpop.xlane.xlu0 %1700
    %v1702 = vmul.f32 %v1698, %v454
    %v1703 = vmul.f32 %v1701, %v454
    %v1704 = vadd.f32 %v1702, 1e-05
    %v1705 = vadd.f32 %v1703, 1e-05
    %v1706 = vrsqrt.pop %v1704
    %v1707 = vrsqrt.pop %v1705
    %v1708 = vmul.f32 %v1692, %v1706
    %v1709 = vmul.f32 %v1693, %v1707
    %v1710 = vlaneseq
    %v1711 = vshrl.u32 %v1710, 7
    %v1712 = vsub.s32 3, %v1711
    %v1713 = vrot.slane %v447, %v1712
    %v1714 = vmul.f32 %v1708, %v1713
    %v1715 = vmul.f32 %v1709, %v1713
    %v1716 = vlaneseq
    %v1717 = vshrl.u32 %v1716, 7
    %v1718 = vsub.s32 4, %v1717
    %v1719 = vrot.slane %v447, %v1718
    %v1720 = vadd.f32 %v1714, %v1719
    %v1721 = vadd.f32 %v1715, %v1719
    %v1722 = vld [vmem:[%s10 + $0x30] sm:$0xff]
    %v1723 = vld [vmem:[%s10 + $0x38] sm:$0xff]
    %v1724 = vld [vmem:[%s10 + $0x70] sm:$0xff]
    %v1725 = vld [vmem:[%s10 + $0x78] sm:$0xff]
    %v1726 = vld [vmem:[%s10 + $0xb0] sm:$0xff]
    %v1727 = vld [vmem:[%s10 + $0xb8] sm:$0xff]
    %v1728 = vld [vmem:[%s10 + $0xf0] sm:$0xff]
    %v1729 = vld [vmem:[%s10 + $0xf8] sm:$0xff]
    %v1730 = vld [vmem:[%s11] sm:$0x3]
    %v1732 = vlaneseq
    %v1733 = vshrl.u32 %v1732, 7
    %v1734 = vsub.s32 0, %v1733
    %v1735 = vrot.slane %v1730, %v1734
    %v1736 = vlaneseq
    %v1737 = vshrl.u32 %v1736, 7
    %v1738 = vsub.s32 1, %v1737
    %v1739 = vrot.slane %v1730, %v1738
    %v1743 = vsel %vm62, %v1720, 0
    %v1746 = vsel %vm62, %v1721, 0
    %1748 = vmatprep.subr.mxu0 %v1723
    %1749 = vmatpush1.msra.mxu0 %v1722
    %1750 = vmatprep.subr.mxu0 %v1725
    %1751 = vmatpush1.msra.mxu0 %v1724
    %1752 = vmatprep.subr.mxu0 %v1727
    %1753 = vmatpush1.msra.mxu0 %v1726
    %1754 = vmatprep.subr.mxu0 %v1729
    %1755 = vmatpush1.msra.mxu0 %v1728
    %1756 = vmatprep.subr.mxu0 0.0
    %1757 = vmatpush1.msra.mxu0 0.0
    %1758 = vmatprep.subr.mxu0 0.0
    %1759 = vmatpush1.msra.mxu0 0.0
    %1760 = vmatprep.subr.mxu0 0.0
    %1761 = vmatpush1.msra.mxu0 0.0
    %1762 = vmatprep.subr.mxu0 0.0
    %1763 = vmatpush1.msra.mxu0 0.0
    %1764 = vmatprep.subr.mxu0 0.0
    %1765 = vmatpush1.msra.mxu0 0.0
    %1766 = vmatprep.subr.mxu0 0.0
    %1767 = vmatpush1.msra.mxu0 0.0
    %1768 = vmatprep.subr.mxu0 0.0
    %1769 = vmatpush1.msra.mxu0 0.0
    %1770 = vmatprep.subr.mxu0 0.0
    %1771 = vmatpush1.msra.mxu0 0.0
    %1772 = vmatprep.subr.mxu0 0.0
    %1773 = vmatpush1.msra.mxu0 0.0
    %1774 = vmatprep.subr.mxu0 0.0
    %1775 = vmatpush1.msra.mxu0 0.0
    %1776 = vmatprep.subr.mxu0 0.0
    %1777 = vmatpush1.msra.mxu0 0.0
    %1778 = vmatprep.subr.mxu0 0.0
    %1779 = vmatpush1.msra.mxu0 0.0
    %1780 = vmatprep.subr.mxu0 0.0
    %1781 = vmatpush1.msra.mxu0 0.0
    %1782 = vmatprep.subr.mxu0 0.0
    %1783 = vmatpush1.msra.mxu0 0.0
    %1784 = vmatprep.subr.mxu0 0.0
    %1785 = vmatpush1.msra.mxu0 0.0
    %1786 = vmatprep.subr.mxu0 0.0
    %1787 = vmatpush1.msra.mxu0 0.0
    %1788 = vmatprep.subr.mxu0 0.0
    %1789 = vmatpush1.msra.mxu0 0.0
    %1790 = vmatprep.subr.mxu0 0.0
    %1791 = vmatpush1.msra.mxu0 0.0
    %1792 = vmatprep.subr.mxu0 0.0
    %1793 = vmatpush1.msra.mxu0 0.0
    %1794 = vmatprep.subr.mxu0 0.0
    %1795 = vmatpush1.msra.mxu0 0.0
    %1796 = vmatprep.subr.mxu0 0.0
    %1797 = vmatpush1.msra.mxu0 0.0
    %1798 = vmatprep.subr.mxu0 0.0
    %1799 = vmatpush1.msra.mxu0 0.0
    %1800 = vmatprep.subr.mxu0 0.0
    %1801 = vmatpush1.msra.mxu0 0.0
    %1802 = vmatprep.subr.mxu0 0.0
    %1803 = vmatpush1.msra.mxu0 0.0
    %1804 = vmatprep.subr.mxu0 0.0
    %1805 = vmatpush1.msra.mxu0 0.0
    %1806 = vmatprep.subr.mxu0 0.0
    %1807 = vmatpush1.msra.mxu0 0.0
    %1808 = vmatprep.subr.mxu0 0.0
    %1809 = vmatpush1.msra.mxu0 0.0
    %1810 = vmatprep.subr.mxu0 0.0
    %1811 = vmatpush1.msra.mxu0 0.0
    %1812 = vmatprep.mubr.f32.mxu0 0.0
    %1813 = vmatmul.mubr.f32.gmra.mrb[0].mxu0 %v1743
    %v1814 = vpop.f32.mrb[0].mxu0
    %v1815 = vadd.f32 %v1735, %v1814
    %v1816 = vpop.f32.mrb[0].mxu0
    %v1817 = vadd.f32 %v1739, %v1816
    %1818 = vmatprep.mubr.f32.mxu0 0.0
    %1819 = vmatmul.mubr.f32.gmra.mrb[0].mxu0 %v1746
    %v1820 = vpop.f32.mrb[0].mxu0
    %v1821 = vadd.f32 %v1735, %v1820
    %v1822 = vpop.f32.mrb[0].mxu0
    %v1823 = vadd.f32 %v1739, %v1822
    %1824 = vdwg.mxu0
    %v1825 = vmul.f32 %v1817, %v1817
    %v1826 = vmul.f32 %v1823, %v1823
    %v1827 = vmul.f32 %v1817, %v1825
    %v1828 = vmul.f32 %v1823, %v1826
    %v1829 = vmul.f32 %v1827, 0.044715
    %v1830 = vmul.f32 %v1828, 0.044715
    %v1831 = vadd.f32 %v1817, %v1829
    %v1832 = vadd.f32 %v1823, %v1830
    %v1833 = vmul.f32 %v1831, 0.7978846
    %v1834 = vmul.f32 %v1832, 0.7978846
    %v1835 = vtanh.pop %v1833
    %v1836 = vtanh.pop %v1834
    %v1837 = vadd.f32 %v1835, 1.0
    %v1838 = vadd.f32 %v1836, 1.0
    %v1839 = vmul.f32 %v1837, 0.5
    %v1840 = vmul.f32 %v1838, 0.5
    %v1841 = vmul.f32 %v1817, %v1839
    %v1842 = vmul.f32 %v1823, %v1840
    %v1843 = vmul.f32 %v1815, %v1841
    %v1844 = vmul.f32 %v1821, %v1842
    %v1845 = vld [vmem:[%s12 + $0x100] sm:$0xff]
    %v1846 = vld [vmem:[%s12 + $0x108] sm:$0xff]
    %v1847 = vld [vmem:[%s12 + $0x110] sm:$0xff]
    %v1848 = vld [vmem:[%s12 + $0x118] sm:$0xff]
    %v1849 = vld [vmem:[%s12 + $0x120] sm:$0xff]
    %v1850 = vld [vmem:[%s12 + $0x128] sm:$0xff]
    %v1851 = vld [vmem:[%s12 + $0x130] sm:$0xff]
    %v1852 = vld [vmem:[%s12 + $0x138] sm:$0xff]
    %v1853 = vld [vmem:[%s12 + $0x140] sm:$0xff]
    %v1854 = vld [vmem:[%s12 + $0x148] sm:$0xff]
    %v1855 = vld [vmem:[%s12 + $0x150] sm:$0xff]
    %v1856 = vld [vmem:[%s12 + $0x158] sm:$0xff]
    %v1857 = vld [vmem:[%s12 + $0x160] sm:$0xff]
    %v1858 = vld [vmem:[%s12 + $0x168] sm:$0xff]
    %v1859 = vld [vmem:[%s12 + $0x170] sm:$0xff]
    %v1860 = vld [vmem:[%s12 + $0x178] sm:$0xff]
    %1861 = vmatprep.subr.mxu0 0.0
    %1862 = vmatpush1.msra.mxu0 %v1845
    %1863 = vmatprep.subr.mxu0 0.0
    %1864 = vmatpush1.msra.mxu0 %v1846
    %1865 = vmatprep.subr.mxu0 0.0
    %1866 = vmatpush1.msra.mxu0 %v1847
    %1867 = vmatprep.subr.mxu0 0.0
    %1868 = vmatpush1.msra.mxu0 %v1848
    %1869 = vmatprep.subr.mxu0 0.0
    %1870 = vmatpush1.msra.mxu0 %v1849
    %1871 = vmatprep.subr.mxu0 0.0
    %1872 = vmatpush1.msra.mxu0 %v1850
    %1873 = vmatprep.subr.mxu0 0.0
    %1874 = vmatpush1.msra.mxu0 %v1851
    %1875 = vmatprep.subr.mxu0 0.0
    %1876 = vmatpush1.msra.mxu0 %v1852
    %1877 = vmatprep.subr.mxu0 0.0
    %1878 = vmatpush1.msra.mxu0 %v1853
    %1879 = vmatprep.subr.mxu0 0.0
    %1880 = vmatpush1.msra.mxu0 %v1854
    %1881 = vmatprep.subr.mxu0 0.0
    %1882 = vmatpush1.msra.mxu0 %v1855
    %1883 = vmatprep.subr.mxu0 0.0
    %1884 = vmatpush1.msra.mxu0 %v1856
    %1885 = vmatprep.subr.mxu0 0.0
    %1886 = vmatpush1.msra.mxu0 %v1857
    %1887 = vmatprep.subr.mxu0 0.0
    %1888 = vmatpush1.msra.mxu0 %v1858
    %1889 = vmatprep.subr.mxu0 0.0
    %1890 = vmatpush1.msra.mxu0 %v1859
    %1891 = vmatprep.subr.mxu0 0.0
    %1892 = vmatpush1.msra.mxu0 %v1860
    %1893 = vmatprep.subr.mxu0 0.0
    %1894 = vmatpush1.msra.mxu0 0.0
    %1895 = vmatprep.subr.mxu0 0.0
    %1896 = vmatpush1.msra.mxu0 0.0
    %1897 = vmatprep.subr.mxu0 0.0
    %1898 = vmatpush1.msra.mxu0 0.0
    %1899 = vmatprep.subr.mxu0 0.0
    %1900 = vmatpush1.msra.mxu0 0.0
    %1901 = vmatprep.subr.mxu0 0.0
    %1902 = vmatpush1.msra.mxu0 0.0
    %1903 = vmatprep.subr.mxu0 0.0
    %1904 = vmatpush1.msra.mxu0 0.0
    %1905 = vmatprep.subr.mxu0 0.0
    %1906 = vmatpush1.msra.mxu0 0.0
    %1907 = vmatprep.subr.mxu0 0.0
    %1908 = vmatpush1.msra.mxu0 0.0
    %1909 = vmatprep.subr.mxu0 0.0
    %1910 = vmatpush1.msra.mxu0 0.0
    %1911 = vmatprep.subr.mxu0 0.0
    %1912 = vmatpush1.msra.mxu0 0.0
    %1913 = vmatprep.subr.mxu0 0.0
    %1914 = vmatpush1.msra.mxu0 0.0
    %1915 = vmatprep.subr.mxu0 0.0
    %1916 = vmatpush1.msra.mxu0 0.0
    %1917 = vmatprep.subr.mxu0 0.0
    %1918 = vmatpush1.msra.mxu0 0.0
    %1919 = vmatprep.subr.mxu0 0.0
    %1920 = vmatpush1.msra.mxu0 0.0
    %1921 = vmatprep.subr.mxu0 0.0
    %1922 = vmatpush1.msra.mxu0 0.0
    %1923 = vmatprep.subr.mxu0 0.0
    %1924 = vmatpush1.msra.mxu0 0.0
    %1925 = vmatprep.mubr.f32.mxu0 0.0
    %1926 = vmatmul.mubr.f32.gmra.mrb[0].mxu0 %v1843
    %v1927 = vpop.f32.mrb[0].mxu0
    %v1928 = vadd.f32 0.0, %v1927
    %v1929 = vpop.f32.mrb[0].mxu0
    %1930 = vmatprep.mubr.f32.mxu0 0.0
    %1931 = vmatmul.mubr.f32.gmra.mrb[0].mxu0 %v1844
    %v1932 = vpop.f32.mrb[0].mxu0
    %v1933 = vadd.f32 0.0, %v1932
    %v1934 = vpop.f32.mrb[0].mxu0
    %1935 = vdwg.mxu0
    %v1936 = vadd.f32 %v1682, %v1928
    %v1937 = vadd.f32 %v1683, %v1933
    %v1938 = vlaneseq
    %v1939 = vshrl.u32 %v1938, 7
    %v1940 = vsub.s32 5, %v1939
    %v1941 = vrot.slane %v447, %v1940
    %v1942 = vadd.f32 %v1936, %v1941
    %v1943 = vadd.f32 %v1937, %v1941
    %s1944 = scalar_lea.vmem %s9, 8
    %v1945 = vld [vmem:[%s1944] sm:$0x3f]
    %v1946 = vsel %vm62, %v1942, 0.0
    %1947 = vadd.xlane.f32.xlu0 %v1946
    %v1948 = vpop.xlane.xlu0 %1947
    %v1949 = vsel %vm62, %v1943, 0.0
    %1950 = vadd.xlane.f32.xlu0 %v1949
    %v1951 = vpop.xlane.xlu0 %1950
    %v1952 = vmul.f32 %v1948, %v454
    %v1953 = vmul.f32 %v1951, %v454
    %v1954 = vsub.f32 %v1942, %v1952
    %v1955 = vsub.f32 %v1943, %v1953
    %v1956 = vmul.f32 %v1954, %v1954
    %v1957 = vmul.f32 %v1955, %v1955
    %v1958 = vsel %vm62, %v1956, 0.0
    %1959 = vadd.xlane.f32.xlu0 %v1958
    %v1960 = vpop.xlane.xlu0 %1959
    %v1961 = vsel %vm62, %v1957, 0.0
    %1962 = vadd.xlane.f32.xlu0 %v1961
    %v1963 = vpop.xlane.xlu0 %1962
    %v1964 = vmul.f32 %v1960, %v454
    %v1965 = vmul.f32 %v1963, %v454
    %v1966 = vadd.f32 %v1964, 1e-05
    %v1967 = vadd.f32 %v1965, 1e-05
    %v1968 = vrsqrt.pop %v1966
    %v1969 = vrsqrt.pop %v1967
    %v1970 = vmul.f32 %v1954, %v1968
    %v1971 = vmul.f32 %v1955, %v1969
    %v1972 = vlaneseq
    %v1973 = vshrl.u32 %v1972, 7
    %v1974 = vsub.s32 0, %v1973
    %v1975 = vrot.slane %v1945, %v1974
    %v1976 = vmul.f32 %v1970, %v1975
    %v1977 = vmul.f32 %v1971, %v1975
    %v1978 = vlaneseq
    %v1979 = vshrl.u32 %v1978, 7
    %v1980 = vsub.s32 1, %v1979
    %v1981 = vrot.slane %v1945, %v1980
    %v1982 = vadd.f32 %v1976, %v1981
    %v1983 = vadd.f32 %v1977, %v1981
    %s1984 = scalar_lea.vmem %s10, 256
    %v1985 = vld [vmem:[%s1984] sm:$0xff]
    %v1986 = vld [vmem:[%s1984 + $0x8] sm:$0xff]
    %v1987 = vld [vmem:[%s1984 + $0x10] sm:$0xff]
    %v1988 = vld [vmem:[%s1984 + $0x18] sm:$0xff]
    %v1989 = vld [vmem:[%s1984 + $0x20] sm:$0xff]
    %v1990 = vld [vmem:[%s1984 + $0x28] sm:$0xff]
    %v1991 = vld [vmem:[%s1984 + $0x40] sm:$0xff]
    %v1992 = vld [vmem:[%s1984 + $0x48] sm:$0xff]
    %v1993 = vld [vmem:[%s1984 + $0x50] sm:$0xff]
    %v1994 = vld [vmem:[%s1984 + $0x58] sm:$0xff]
    %v1995 = vld [vmem:[%s1984 + $0x60] sm:$0xff]
    %v1996 = vld [vmem:[%s1984 + $0x68] sm:$0xff]
    %v1997 = vld [vmem:[%s1984 + $0x80] sm:$0xff]
    %v1998 = vld [vmem:[%s1984 + $0x88] sm:$0xff]
    %v1999 = vld [vmem:[%s1984 + $0x90] sm:$0xff]
    %v2000 = vld [vmem:[%s1984 + $0x98] sm:$0xff]
    %v2001 = vld [vmem:[%s1984 + $0xa0] sm:$0xff]
    %v2002 = vld [vmem:[%s1984 + $0xa8] sm:$0xff]
    %v2003 = vld [vmem:[%s1984 + $0xc0] sm:$0xff]
    %v2004 = vld [vmem:[%s1984 + $0xc8] sm:$0xff]
    %v2005 = vld [vmem:[%s1984 + $0xd0] sm:$0xff]
    %v2006 = vld [vmem:[%s1984 + $0xd8] sm:$0xff]
    %v2007 = vld [vmem:[%s1984 + $0xe0] sm:$0xff]
    %v2008 = vld [vmem:[%s1984 + $0xe8] sm:$0xff]
    %v2010 = vsel %vm62, %v1982, 0
    %v2013 = vsel %vm62, %v1983, 0
    %2015 = vmatprep.subr.mxu0 %v1986
    %2016 = vmatpush1.msra.mxu0 %v1985
    %2017 = vmatprep.subr.mxu0 %v1992
    %2018 = vmatpush1.msra.mxu0 %v1991
    %2019 = vmatprep.subr.mxu0 %v1998
    %2020 = vmatpush1.msra.mxu0 %v1997
    %2021 = vmatprep.subr.mxu0 %v2004
    %2022 = vmatpush1.msra.mxu0 %v2003
    %2023 = vmatprep.subr.mxu0 0.0
    %2024 = vmatpush1.msra.mxu0 0.0
    %2025 = vmatprep.subr.mxu0 0.0
    %2026 = vmatpush1.msra.mxu0 0.0
    %2027 = vmatprep.subr.mxu0 0.0
    %2028 = vmatpush1.msra.mxu0 0.0
    %2029 = vmatprep.subr.mxu0 0.0
    %2030 = vmatpush1.msra.mxu0 0.0
    %2031 = vmatprep.subr.mxu0 0.0
    %2032 = vmatpush1.msra.mxu0 0.0
    %2033 = vmatprep.subr.mxu0 0.0
    %2034 = vmatpush1.msra.mxu0 0.0
    %2035 = vmatprep.subr.mxu0 0.0
    %2036 = vmatpush1.msra.mxu0 0.0
    %2037 = vmatprep.subr.mxu0 0.0
    %2038 = vmatpush1.msra.mxu0 0.0
    %2039 = vmatprep.subr.mxu0 0.0
    %2040 = vmatpush1.msra.mxu0 0.0
    %2041 = vmatprep.subr.mxu0 0.0
    %2042 = vmatpush1.msra.mxu0 0.0
    %2043 = vmatprep.subr.mxu0 0.0
    %2044 = vmatpush1.msra.mxu0 0.0
    %2045 = vmatprep.subr.mxu0 0.0
    %2046 = vmatpush1.msra.mxu0 0.0
    %2047 = vmatprep.subr.mxu0 0.0
    %2048 = vmatpush1.msra.mxu0 0.0
    %2049 = vmatprep.subr.mxu0 0.0
    %2050 = vmatpush1.msra.mxu0 0.0
    %2051 = vmatprep.subr.mxu0 0.0
    %2052 = vmatpush1.msra.mxu0 0.0
    %2053 = vmatprep.subr.mxu0 0.0
    %2054 = vmatpush1.msra.mxu0 0.0
    %2055 = vmatprep.subr.mxu0 0.0
    %2056 = vmatpush1.msra.mxu0 0.0
    %2057 = vmatprep.subr.mxu0 0.0
    %2058 = vmatpush1.msra.mxu0 0.0
    %2059 = vmatprep.subr.mxu0 0.0
    %2060 = vmatpush1.msra.mxu0 0.0
    %2061 = vmatprep.subr.mxu0 0.0
    %2062 = vmatpush1.msra.mxu0 0.0
    %2063 = vmatprep.subr.mxu0 0.0
    %2064 = vmatpush1.msra.mxu0 0.0
    %2065 = vmatprep.subr.mxu0 0.0
    %2066 = vmatpush1.msra.mxu0 0.0
    %2067 = vmatprep.subr.mxu0 0.0
    %2068 = vmatpush1.msra.mxu0 0.0
    %2069 = vmatprep.subr.mxu0 0.0
    %2070 = vmatpush1.msra.mxu0 0.0
    %2071 = vmatprep.subr.mxu0 0.0
    %2072 = vmatpush1.msra.mxu0 0.0
    %2073 = vmatprep.subr.mxu0 0.0
    %2074 = vmatpush1.msra.mxu0 0.0
    %2075 = vmatprep.subr.mxu0 0.0
    %2076 = vmatpush1.msra.mxu0 0.0
    %2077 = vmatprep.subr.mxu0 0.0
    %2078 = vmatpush1.msra.mxu0 0.0
    %2079 = vmatprep.mubr.f32.mxu0 0.0
    %2080 = vmatmul.mubr.f32.gmra.mrb[0].mxu0 %v2010
    %v2081 = vpop.f32.mrb[0].mxu0
    %v2082 = vadd.f32 0.0, %v2081
    %v2083 = vpop.f32.mrb[0].mxu0
    %v2084 = vadd.f32 0.0, %v2083
    %2085 = vmatprep.mubr.f32.mxu0 0.0
    %2086 = vmatmul.mubr.f32.gmra.mrb[0].mxu0 %v2013
    %v2087 = vpop.f32.mrb[0].mxu0
    %v2088 = vadd.f32 0.0, %v2087
    %v2089 = vpop.f32.mrb[0].mxu0
    %v2090 = vadd.f32 0.0, %v2089
    %2091 = vdwg.mxu0
    %2092 = vmatprep.subr.mxu0 %v1988
    %2093 = vmatpush1.msra.mxu0 %v1987
    %2094 = vmatprep.subr.mxu0 %v1994
    %2095 = vmatpush1.msra.mxu0 %v1993
    %2096 = vmatprep.subr.mxu0 %v2000
    %2097 = vmatpush1.msra.mxu0 %v1999
    %2098 = vmatprep.subr.mxu0 %v2006
    %2099 = vmatpush1.msra.mxu0 %v2005
    %2100 = vmatprep.subr.mxu0 0.0
    %2101 = vmatpush1.msra.mxu0 0.0
    %2102 = vmatprep.subr.mxu0 0.0
    %2103 = vmatpush1.msra.mxu0 0.0
    %2104 = vmatprep.subr.mxu0 0.0
    %2105 = vmatpush1.msra.mxu0 0.0
    %2106 = vmatprep.subr.mxu0 0.0
    %2107 = vmatpush1.msra.mxu0 0.0
    %2108 = vmatprep.subr.mxu0 0.0
    %2109 = vmatpush1.msra.mxu0 0.0
    %2110 = vmatprep.subr.mxu0 0.0
    %2111 = vmatpush1.msra.mxu0 0.0
    %2112 = vmatprep.subr.mxu0 0.0
    %2113 = vmatpush1.msra.mxu0 0.0
    %2114 = vmatprep.subr.mxu0 0.0
    %2115 = vmatpush1.msra.mxu0 0.0
    %2116 = vmatprep.subr.mxu0 0.0
    %2117 = vmatpush1.msra.mxu0 0.0
    %2118 = vmatprep.subr.mxu0 0.0
    %2119 = vmatpush1.msra.mxu0 0.0
    %2120 = vmatprep.subr.mxu0 0.0
    %2121 = vmatpush1.msra.mxu0 0.0
    %2122 = vmatprep.subr.mxu0 0.0
    %2123 = vmatpush1.msra.mxu0 0.0
    %2124 = vmatprep.subr.mxu0 0.0
    %2125 = vmatpush1.msra.mxu0 0.0
    %2126 = vmatprep.subr.mxu0 0.0
    %2127 = vmatpush1.msra.mxu0 0.0
    %2128 = vmatprep.subr.mxu0 0.0
    %2129 = vmatpush1.msra.mxu0 0.0
    %2130 = vmatprep.subr.mxu0 0.0
    %2131 = vmatpush1.msra.mxu0 0.0
    %2132 = vmatprep.subr.mxu0 0.0
    %2133 = vmatpush1.msra.mxu0 0.0
    %2134 = vmatprep.subr.mxu0 0.0
    %2135 = vmatpush1.msra.mxu0 0.0
    %2136 = vmatprep.subr.mxu0 0.0
    %2137 = vmatpush1.msra.mxu0 0.0
    %2138 = vmatprep.subr.mxu0 0.0
    %2139 = vmatpush1.msra.mxu0 0.0
    %2140 = vmatprep.subr.mxu0 0.0
    %2141 = vmatpush1.msra.mxu0 0.0
    %2142 = vmatprep.subr.mxu0 0.0
    %2143 = vmatpush1.msra.mxu0 0.0
    %2144 = vmatprep.subr.mxu0 0.0
    %2145 = vmatpush1.msra.mxu0 0.0
    %2146 = vmatprep.subr.mxu0 0.0
    %2147 = vmatpush1.msra.mxu0 0.0
    %2148 = vmatprep.subr.mxu0 0.0
    %2149 = vmatpush1.msra.mxu0 0.0
    %2150 = vmatprep.subr.mxu0 0.0
    %2151 = vmatpush1.msra.mxu0 0.0
    %2152 = vmatprep.subr.mxu0 0.0
    %2153 = vmatpush1.msra.mxu0 0.0
    %2154 = vmatprep.subr.mxu0 0.0
    %2155 = vmatpush1.msra.mxu0 0.0
    %2156 = vmatprep.mubr.f32.mxu0 0.0
    %2157 = vmatmul.mubr.f32.gmra.mrb[0].mxu0 %v2010
    %v2158 = vpop.f32.mrb[0].mxu0
    %v2159 = vadd.f32 0.0, %v2158
    %v2160 = vpop.f32.mrb[0].mxu0
    %v2161 = vadd.f32 0.0, %v2160
    %2162 = vmatprep.mubr.f32.mxu0 0.0
    %2163 = vmatmul.mubr.f32.gmra.mrb[0].mxu0 %v2013
    %v2164 = vpop.f32.mrb[0].mxu0
    %v2165 = vadd.f32 0.0, %v2164
    %v2166 = vpop.f32.mrb[0].mxu0
    %v2167 = vadd.f32 0.0, %v2166
    %2168 = vdwg.mxu0
    %2169 = vmatprep.subr.mxu0 %v1990
    %2170 = vmatpush1.msra.mxu0 %v1989
    %2171 = vmatprep.subr.mxu0 %v1996
    %2172 = vmatpush1.msra.mxu0 %v1995
    %2173 = vmatprep.subr.mxu0 %v2002
    %2174 = vmatpush1.msra.mxu0 %v2001
    %2175 = vmatprep.subr.mxu0 %v2008
    %2176 = vmatpush1.msra.mxu0 %v2007
    %2177 = vmatprep.subr.mxu0 0.0
    %2178 = vmatpush1.msra.mxu0 0.0
    %2179 = vmatprep.subr.mxu0 0.0
    %2180 = vmatpush1.msra.mxu0 0.0
    %2181 = vmatprep.subr.mxu0 0.0
    %2182 = vmatpush1.msra.mxu0 0.0
    %2183 = vmatprep.subr.mxu0 0.0
    %2184 = vmatpush1.msra.mxu0 0.0
    %2185 = vmatprep.subr.mxu0 0.0
    %2186 = vmatpush1.msra.mxu0 0.0
    %2187 = vmatprep.subr.mxu0 0.0
    %2188 = vmatpush1.msra.mxu0 0.0
    %2189 = vmatprep.subr.mxu0 0.0
    %2190 = vmatpush1.msra.mxu0 0.0
    %2191 = vmatprep.subr.mxu0 0.0
    %2192 = vmatpush1.msra.mxu0 0.0
    %2193 = vmatprep.subr.mxu0 0.0
    %2194 = vmatpush1.msra.mxu0 0.0
    %2195 = vmatprep.subr.mxu0 0.0
    %2196 = vmatpush1.msra.mxu0 0.0
    %2197 = vmatprep.subr.mxu0 0.0
    %2198 = vmatpush1.msra.mxu0 0.0
    %2199 = vmatprep.subr.mxu0 0.0
    %2200 = vmatpush1.msra.mxu0 0.0
    %2201 = vmatprep.subr.mxu0 0.0
    %2202 = vmatpush1.msra.mxu0 0.0
    %2203 = vmatprep.subr.mxu0 0.0
    %2204 = vmatpush1.msra.mxu0 0.0
    %2205 = vmatprep.subr.mxu0 0.0
    %2206 = vmatpush1.msra.mxu0 0.0
    %2207 = vmatprep.subr.mxu0 0.0
    %2208 = vmatpush1.msra.mxu0 0.0
    %2209 = vmatprep.subr.mxu0 0.0
    %2210 = vmatpush1.msra.mxu0 0.0
    %2211 = vmatprep.subr.mxu0 0.0
    %2212 = vmatpush1.msra.mxu0 0.0
    %2213 = vmatprep.subr.mxu0 0.0
    %2214 = vmatpush1.msra.mxu0 0.0
    %2215 = vmatprep.subr.mxu0 0.0
    %2216 = vmatpush1.msra.mxu0 0.0
    %2217 = vmatprep.subr.mxu0 0.0
    %2218 = vmatpush1.msra.mxu0 0.0
    %2219 = vmatprep.subr.mxu0 0.0
    %2220 = vmatpush1.msra.mxu0 0.0
    %2221 = vmatprep.subr.mxu0 0.0
    %2222 = vmatpush1.msra.mxu0 0.0
    %2223 = vmatprep.subr.mxu0 0.0
    %2224 = vmatpush1.msra.mxu0 0.0
    %2225 = vmatprep.subr.mxu0 0.0
    %2226 = vmatpush1.msra.mxu0 0.0
    %2227 = vmatprep.subr.mxu0 0.0
    %2228 = vmatpush1.msra.mxu0 0.0
    %2229 = vmatprep.subr.mxu0 0.0
    %2230 = vmatpush1.msra.mxu0 0.0
    %2231 = vmatprep.subr.mxu0 0.0
    %2232 = vmatpush1.msra.mxu0 0.0
    %2233 = vmatprep.mubr.f32.mxu0 0.0
    %2234 = vmatmul.mubr.f32.gmra.mrb[0].mxu0 %v2010
    %v2235 = vpop.f32.mrb[0].mxu0
    %v2236 = vadd.f32 0.0, %v2235
    %v2237 = vpop.f32.mrb[0].mxu0
    %v2238 = vadd.f32 0.0, %v2237
    %2239 = vmatprep.mubr.f32.mxu0 0.0
    %2240 = vmatmul.mubr.f32.gmra.mrb[0].mxu0 %v2013
    %v2241 = vpop.f32.mrb[0].mxu0
    %v2242 = vadd.f32 0.0, %v2241
    %v2243 = vpop.f32.mrb[0].mxu0
    %v2244 = vadd.f32 0.0, %v2243
    %2245 = vdwg.mxu0
    %v2247 = vsel %vm748, %v2082, 0
    %v2250 = vsel %vm748, %v2088, 0
    %v2253 = vsel %vm748, %v2159, 0
    %v2256 = vsel %vm748, %v2165, 0
    %2258 = vmatprep.subr.mxu0 0.0
    %2259 = vmatpush1.xpose.msra.mxu0 %v2253
    %2260 = vmatprep.subr.mxu0 0.0
    %2261 = vmatpush1.xpose.msra.mxu0 %v2256
    %2262 = vmatprep.subr.mxu0 0.0
    %2263 = vmatpush1.xpose.msra.mxu0 0.0
    %2264 = vmatprep.subr.mxu0 0.0
    %2265 = vmatpush1.xpose.msra.mxu0 0.0
    %2266 = vmatprep.subr.mxu0 0.0
    %2267 = vmatpush1.xpose.msra.mxu0 0.0
    %2268 = vmatprep.subr.mxu0 0.0
    %2269 = vmatpush1.xpose.msra.mxu0 0.0
    %2270 = vmatprep.subr.mxu0 0.0
    %2271 = vmatpush1.xpose.msra.mxu0 0.0
    %2272 = vmatprep.subr.mxu0 0.0
    %2273 = vmatpush1.xpose.msra.mxu0 0.0
    %2274 = vmatprep.subr.mxu0 0.0
    %2275 = vmatpush1.xpose.msra.mxu0 0.0
    %2276 = vmatprep.subr.mxu0 0.0
    %2277 = vmatpush1.xpose.msra.mxu0 0.0
    %2278 = vmatprep.subr.mxu0 0.0
    %2279 = vmatpush1.xpose.msra.mxu0 0.0
    %2280 = vmatprep.subr.mxu0 0.0
    %2281 = vmatpush1.xpose.msra.mxu0 0.0
    %2282 = vmatprep.subr.mxu0 0.0
    %2283 = vmatpush1.xpose.msra.mxu0 0.0
    %2284 = vmatprep.subr.mxu0 0.0
    %2285 = vmatpush1.xpose.msra.mxu0 0.0
    %2286 = vmatprep.subr.mxu0 0.0
    %2287 = vmatpush1.xpose.msra.mxu0 0.0
    %2288 = vmatprep.subr.mxu0 0.0
    %2289 = vmatpush1.xpose.msra.mxu0 0.0
    %2290 = vmatprep.subr.mxu0 0.0
    %2291 = vmatpush1.xpose.msra.mxu0 0.0
    %2292 = vmatprep.subr.mxu0 0.0
    %2293 = vmatpush1.xpose.msra.mxu0 0.0
    %2294 = vmatprep.subr.mxu0 0.0
    %2295 = vmatpush1.xpose.msra.mxu0 0.0
    %2296 = vmatprep.subr.mxu0 0.0
    %2297 = vmatpush1.xpose.msra.mxu0 0.0
    %2298 = vmatprep.subr.mxu0 0.0
    %2299 = vmatpush1.xpose.msra.mxu0 0.0
    %2300 = vmatprep.subr.mxu0 0.0
    %2301 = vmatpush1.xpose.msra.mxu0 0.0
    %2302 = vmatprep.subr.mxu0 0.0
    %2303 = vmatpush1.xpose.msra.mxu0 0.0
    %2304 = vmatprep.subr.mxu0 0.0
    %2305 = vmatpush1.xpose.msra.mxu0 0.0
    %2306 = vmatprep.subr.mxu0 0.0
    %2307 = vmatpush1.xpose.msra.mxu0 0.0
    %2308 = vmatprep.subr.mxu0 0.0
    %2309 = vmatpush1.xpose.msra.mxu0 0.0
    %2310 = vmatprep.subr.mxu0 0.0
    %2311 = vmatpush1.xpose.msra.mxu0 0.0
    %2312 = vmatprep.subr.mxu0 0.0
    %2313 = vmatpush1.xpose.msra.mxu0 0.0
    %2314 = vmatprep.subr.mxu0 0.0
    %2315 = vmatpush1.xpose.msra.mxu0 0.0
    %2316 = vmatprep.subr.mxu0 0.0
    %2317 = vmatpush1.xpose.msra.mxu0 0.0
    %2318 = vmatprep.subr.mxu0 0.0
    %2319 = vmatpush1.xpose.msra.mxu0 0.0
    %2320 = vmatprep.subr.mxu0 0.0
    %2321 = vmatpush1.xpose.msra.mxu0 0.0
    %2322 = vmatprep.mubr.f32.mxu0 0.0
    %2323 = vmatmul.mubr.f32.gmra.mrb[0].mxu0 %v2247
    %v2324 = vpop.f32.mrb[0].mxu0
    %v2325 = vadd.f32 0.0, %v2324
    %v2326 = vpop.f32.mrb[0].mxu0
    %2327 = vmatprep.mubr.f32.mxu0 0.0
    %2328 = vmatmul.mubr.f32.gmra.mrb[0].mxu0 %v2250
    %v2329 = vpop.f32.mrb[0].mxu0
    %v2330 = vadd.f32 0.0, %v2329
    %v2331 = vpop.f32.mrb[0].mxu0
    %2332 = vdwg.mxu0
    %v2333 = vmul.f32 %v2325, 0.125
    %v2334 = vmul.f32 %v2330, 0.125
    %v2335 = vadd.f32 %v2333, %v439
    %v2336 = vadd.f32 %v2334, %v440
    %v2337 = vsel %vm351, %v2335, -inf
    %2338 = vmax.xlane.f32.xlu0 %v2337
    %v2339 = vpop.xlane.xlu0 %2338
    %v2340 = vsel %vm351, %v2336, -inf
    %2341 = vmax.xlane.f32.xlu0 %v2340
    %v2342 = vpop.xlane.xlu0 %2341
    %v2343 = vsub.f32 %v2335, %v2339
    %v2344 = vsub.f32 %v2336, %v2342
    %v2345 = vmul.f32 %v2343, 1.442695
    %v2346 = vpow.pop %v2345
    %v2347 = vmul.f32 %v2344, 1.442695
    %v2348 = vpow.pop %v2347
    %v2349 = vsel %vm351, %v2346, 0.0
    %2350 = vadd.xlane.f32.xlu0 %v2349
    %v2351 = vpop.xlane.xlu0 %2350
    %v2352 = vsel %vm351, %v2348, 0.0
    %2353 = vadd.xlane.f32.xlu0 %v2352
    %v2354 = vpop.xlane.xlu0 %2353
    %v2355 = vrcp.pop %v2351
    %v2356 = vmul.f32 %v2346, %v2355
    %v2357 = vrcp.pop %v2354
    %v2358 = vmul.f32 %v2348, %v2357
    %v2360 = vsel %vm351, %v2356, 0
    %v2363 = vsel %vm351, %v2358, 0
    %2365 = vmatprep.subr.mxu0 0.0
    %2366 = vmatpush1.msra.mxu0 %v2236
    %2367 = vmatprep.subr.mxu0 0.0
    %2368 = vmatpush1.msra.mxu0 %v2242
    %2369 = vmatprep.subr.mxu0 0.0
    %2370 = vmatpush1.msra.mxu0 0.0
    %2371 = vmatprep.subr.mxu0 0.0
    %2372 = vmatpush1.msra.mxu0 0.0
    %2373 = vmatprep.subr.mxu0 0.0
    %2374 = vmatpush1.msra.mxu0 0.0
    %2375 = vmatprep.subr.mxu0 0.0
    %2376 = vmatpush1.msra.mxu0 0.0
    %2377 = vmatprep.subr.mxu0 0.0
    %2378 = vmatpush1.msra.mxu0 0.0
    %2379 = vmatprep.subr.mxu0 0.0
    %2380 = vmatpush1.msra.mxu0 0.0
    %2381 = vmatprep.subr.mxu0 0.0
    %2382 = vmatpush1.msra.mxu0 0.0
    %2383 = vmatprep.subr.mxu0 0.0
    %2384 = vmatpush1.msra.mxu0 0.0
    %2385 = vmatprep.subr.mxu0 0.0
    %2386 = vmatpush1.msra.mxu0 0.0
    %2387 = vmatprep.subr.mxu0 0.0
    %2388 = vmatpush1.msra.mxu0 0.0
    %2389 = vmatprep.subr.mxu0 0.0
    %2390 = vmatpush1.msra.mxu0 0.0
    %2391 = vmatprep.subr.mxu0 0.0
    %2392 = vmatpush1.msra.mxu0 0.0
    %2393 = vmatprep.subr.mxu0 0.0
    %2394 = vmatpush1.msra.mxu0 0.0
    %2395 = vmatprep.subr.mxu0 0.0
    %2396 = vmatpush1.msra.mxu0 0.0
    %2397 = vmatprep.subr.mxu0 0.0
    %2398 = vmatpush1.msra.mxu0 0.0
    %2399 = vmatprep.subr.mxu0 0.0
    %2400 = vmatpush1.msra.mxu0 0.0
    %2401 = vmatprep.subr.mxu0 0.0
    %2402 = vmatpush1.msra.mxu0 0.0
    %2403 = vmatprep.subr.mxu0 0.0
    %2404 = vmatpush1.msra.mxu0 0.0
    %2405 = vmatprep.subr.mxu0 0.0
    %2406 = vmatpush1.msra.mxu0 0.0
    %2407 = vmatprep.subr.mxu0 0.0
    %2408 = vmatpush1.msra.mxu0 0.0
    %2409 = vmatprep.subr.mxu0 0.0
    %2410 = vmatpush1.msra.mxu0 0.0
    %2411 = vmatprep.subr.mxu0 0.0
    %2412 = vmatpush1.msra.mxu0 0.0
    %2413 = vmatprep.subr.mxu0 0.0
    %2414 = vmatpush1.msra.mxu0 0.0
    %2415 = vmatprep.subr.mxu0 0.0
    %2416 = vmatpush1.msra.mxu0 0.0
    %2417 = vmatprep.subr.mxu0 0.0
    %2418 = vmatpush1.msra.mxu0 0.0
    %2419 = vmatprep.subr.mxu0 0.0
    %2420 = vmatpush1.msra.mxu0 0.0
    %2421 = vmatprep.subr.mxu0 0.0
    %2422 = vmatpush1.msra.mxu0 0.0
    %2423 = vmatprep.subr.mxu0 0.0
    %2424 = vmatpush1.msra.mxu0 0.0
    %2425 = vmatprep.subr.mxu0 0.0
    %2426 = vmatpush1.msra.mxu0 0.0
    %2427 = vmatprep.subr.mxu0 0.0
    %2428 = vmatpush1.msra.mxu0 0.0
    %2429 = vmatprep.mubr.f32.mxu0 0.0
    %2430 = vmatmul.mubr.f32.gmra.mrb[0].mxu0 %v2360
    %v2431 = vpop.f32.mrb[0].mxu0
    %v2432 = vadd.f32 0.0, %v2431
    %v2433 = vpop.f32.mrb[0].mxu0
    %2434 = vmatprep.mubr.f32.mxu0 0.0
    %2435 = vmatmul.mubr.f32.gmra.mrb[0].mxu0 %v2363
    %v2436 = vpop.f32.mrb[0].mxu0
    %v2437 = vadd.f32 0.0, %v2436
    %v2438 = vpop.f32.mrb[0].mxu0
    %2439 = vdwg.mxu0
    %2440 = vrot.lane.b32.xlu0 %v2082, 64
    %v2441 = vpop.permute.xlu0 %2440
    %2442 = vrot.lane.b32.xlu0 %v2088, 64
    %v2443 = vpop.permute.xlu0 %2442
    %2444 = vrot.lane.b32.xlu0 %v2159, 64
    %v2445 = vpop.permute.xlu0 %2444
    %2446 = vrot.lane.b32.xlu0 %v2165, 64
    %v2447 = vpop.permute.xlu0 %2446
    %v2448 = vsel %vm748, %v2441, 0
    %v2450 = vsel %vm748, %v2443, 0
    %v2452 = vsel %vm748, %v2445, 0
    %v2454 = vsel %vm748, %v2447, 0
    %2456 = vmatprep.subr.mxu0 0.0
    %2457 = vmatpush1.xpose.msra.mxu0 %v2452
    %2458 = vmatprep.subr.mxu0 0.0
    %2459 = vmatpush1.xpose.msra.mxu0 %v2454
    %2460 = vmatprep.subr.mxu0 0.0
    %2461 = vmatpush1.xpose.msra.mxu0 0.0
    %2462 = vmatprep.subr.mxu0 0.0
    %2463 = vmatpush1.xpose.msra.mxu0 0.0
    %2464 = vmatprep.subr.mxu0 0.0
    %2465 = vmatpush1.xpose.msra.mxu0 0.0
    %2466 = vmatprep.subr.mxu0 0.0
    %2467 = vmatpush1.xpose.msra.mxu0 0.0
    %2468 = vmatprep.subr.mxu0 0.0
    %2469 = vmatpush1.xpose.msra.mxu0 0.0
    %2470 = vmatprep.subr.mxu0 0.0
    %2471 = vmatpush1.xpose.msra.mxu0 0.0
    %2472 = vmatprep.subr.mxu0 0.0
    %2473 = vmatpush1.xpose.msra.mxu0 0.0
    %2474 = vmatprep.subr.mxu0 0.0
    %2475 = vmatpush1.xpose.msra.mxu0 0.0
    %2476 = vmatprep.subr.mxu0 0.0
    %2477 = vmatpush1.xpose.msra.mxu0 0.0
    %2478 = vmatprep.subr.mxu0 0.0
    %2479 = vmatpush1.xpose.msra.mxu0 0.0
    %2480 = vmatprep.subr.mxu0 0.0
    %2481 = vmatpush1.xpose.msra.mxu0 0.0
    %2482 = vmatprep.subr.mxu0 0.0
    %2483 = vmatpush1.xpose.msra.mxu0 0.0
    %2484 = vmatprep.subr.mxu0 0.0
    %2485 = vmatpush1.xpose.msra.mxu0 0.0
    %2486 = vmatprep.subr.mxu0 0.0
    %2487 = vmatpush1.xpose.msra.mxu0 0.0
    %2488 = vmatprep.subr.mxu0 0.0
    %2489 = vmatpush1.xpose.msra.mxu0 0.0
    %2490 = vmatprep.subr.mxu0 0.0
    %2491 = vmatpush1.xpose.msra.mxu0 0.0
    %2492 = vmatprep.subr.mxu0 0.0
    %2493 = vmatpush1.xpose.msra.mxu0 0.0
    %2494 = vmatprep.subr.mxu0 0.0
    %2495 = vmatpush1.xpose.msra.mxu0 0.0
    %2496 = vmatprep.subr.mxu0 0.0
    %2497 = vmatpush1.xpose.msra.mxu0 0.0
    %2498 = vmatprep.subr.mxu0 0.0
    %2499 = vmatpush1.xpose.msra.mxu0 0.0
    %2500 = vmatprep.subr.mxu0 0.0
    %2501 = vmatpush1.xpose.msra.mxu0 0.0
    %2502 = vmatprep.subr.mxu0 0.0
    %2503 = vmatpush1.xpose.msra.mxu0 0.0
    %2504 = vmatprep.subr.mxu0 0.0
    %2505 = vmatpush1.xpose.msra.mxu0 0.0
    %2506 = vmatprep.subr.mxu0 0.0
    %2507 = vmatpush1.xpose.msra.mxu0 0.0
    %2508 = vmatprep.subr.mxu0 0.0
    %2509 = vmatpush1.xpose.msra.mxu0 0.0
    %2510 = vmatprep.subr.mxu0 0.0
    %2511 = vmatpush1.xpose.msra.mxu0 0.0
    %2512 = vmatprep.subr.mxu0 0.0
    %2513 = vmatpush1.xpose.msra.mxu0 0.0
    %2514 = vmatprep.subr.mxu0 0.0
    %2515 = vmatpush1.xpose.msra.mxu0 0.0
    %2516 = vmatprep.subr.mxu0 0.0
    %2517 = vmatpush1.xpose.msra.mxu0 0.0
    %2518 = vmatprep.subr.mxu0 0.0
    %2519 = vmatpush1.xpose.msra.mxu0 0.0
    %2520 = vmatprep.mubr.f32.mxu0 0.0
    %2521 = vmatmul.mubr.f32.gmra.mrb[0].mxu0 %v2448
    %v2522 = vpop.f32.mrb[0].mxu0
    %v2523 = vadd.f32 0.0, %v2522
    %v2524 = vpop.f32.mrb[0].mxu0
    %2525 = vmatprep.mubr.f32.mxu0 0.0
    %2526 = vmatmul.mubr.f32.gmra.mrb[0].mxu0 %v2450
    %v2527 = vpop.f32.mrb[0].mxu0
    %v2528 = vadd.f32 0.0, %v2527
    %v2529 = vpop.f32.mrb[0].mxu0
    %2530 = vdwg.mxu0
    %v2531 = vmul.f32 %v2523, 0.125
    %v2532 = vmul.f32 %v2528, 0.125
    %v2533 = vadd.f32 %v2531, %v441
    %v2534 = vadd.f32 %v2532, %v442
    %v2535 = vsel %vm351, %v2533, -inf
    %2536 = vmax.xlane.f32.xlu0 %v2535
    %v2537 = vpop.xlane.xlu0 %2536
    %v2538 = vsel %vm351, %v2534, -inf
    %2539 = vmax.xlane.f32.xlu0 %v2538
    %v2540 = vpop.xlane.xlu0 %2539
    %v2541 = vsub.f32 %v2533, %v2537
    %v2542 = vsub.f32 %v2534, %v2540
    %v2543 = vmul.f32 %v2541, 1.442695
    %v2544 = vpow.pop %v2543
    %v2545 = vmul.f32 %v2542, 1.442695
    %v2546 = vpow.pop %v2545
    %v2547 = vsel %vm351, %v2544, 0.0
    %2548 = vadd.xlane.f32.xlu0 %v2547
    %v2549 = vpop.xlane.xlu0 %2548
    %v2550 = vsel %vm351, %v2546, 0.0
    %2551 = vadd.xlane.f32.xlu0 %v2550
    %v2552 = vpop.xlane.xlu0 %2551
    %v2553 = vrcp.pop %v2549
    %v2554 = vmul.f32 %v2544, %v2553
    %v2555 = vrcp.pop %v2552
    %v2556 = vmul.f32 %v2546, %v2555
    %2559 = vrot.lane.b32.xlu0 %v2236, 64
    %v2560 = vpop.permute.xlu0 %2559
    %2561 = vrot.lane.b32.xlu0 %v2242, 64
    %v2562 = vpop.permute.xlu0 %2561
    %v2566 = vsel %vm351, %v2554, 0
    %v2569 = vsel %vm351, %v2556, 0
    %2571 = vmatprep.subr.mxu0 0.0
    %2572 = vmatpush1.msra.mxu0 %v2560
    %2573 = vmatprep.subr.mxu0 0.0
    %2574 = vmatpush1.msra.mxu0 %v2562
    %2575 = vmatprep.subr.mxu0 0.0
    %2576 = vmatpush1.msra.mxu0 0.0
    %2577 = vmatprep.subr.mxu0 0.0
    %2578 = vmatpush1.msra.mxu0 0.0
    %2579 = vmatprep.subr.mxu0 0.0
    %2580 = vmatpush1.msra.mxu0 0.0
    %2581 = vmatprep.subr.mxu0 0.0
    %2582 = vmatpush1.msra.mxu0 0.0
    %2583 = vmatprep.subr.mxu0 0.0
    %2584 = vmatpush1.msra.mxu0 0.0
    %2585 = vmatprep.subr.mxu0 0.0
    %2586 = vmatpush1.msra.mxu0 0.0
    %2587 = vmatprep.subr.mxu0 0.0
    %2588 = vmatpush1.msra.mxu0 0.0
    %2589 = vmatprep.subr.mxu0 0.0
    %2590 = vmatpush1.msra.mxu0 0.0
    %2591 = vmatprep.subr.mxu0 0.0
    %2592 = vmatpush1.msra.mxu0 0.0
    %2593 = vmatprep.subr.mxu0 0.0
    %2594 = vmatpush1.msra.mxu0 0.0
    %2595 = vmatprep.subr.mxu0 0.0
    %2596 = vmatpush1.msra.mxu0 0.0
    %2597 = vmatprep.subr.mxu0 0.0
    %2598 = vmatpush1.msra.mxu0 0.0
    %2599 = vmatprep.subr.mxu0 0.0
    %2600 = vmatpush1.msra.mxu0 0.0
    %2601 = vmatprep.subr.mxu0 0.0
    %2602 = vmatpush1.msra.mxu0 0.0
    %2603 = vmatprep.subr.mxu0 0.0
    %2604 = vmatpush1.msra.mxu0 0.0
    %2605 = vmatprep.subr.mxu0 0.0
    %2606 = vmatpush1.msra.mxu0 0.0
    %2607 = vmatprep.subr.mxu0 0.0
    %2608 = vmatpush1.msra.mxu0 0.0
    %2609 = vmatprep.subr.mxu0 0.0
    %2610 = vmatpush1.msra.mxu0 0.0
    %2611 = vmatprep.subr.mxu0 0.0
    %2612 = vmatpush1.msra.mxu0 0.0
    %2613 = vmatprep.subr.mxu0 0.0
    %2614 = vmatpush1.msra.mxu0 0.0
    %2615 = vmatprep.subr.mxu0 0.0
    %2616 = vmatpush1.msra.mxu0 0.0
    %2617 = vmatprep.subr.mxu0 0.0
    %2618 = vmatpush1.msra.mxu0 0.0
    %2619 = vmatprep.subr.mxu0 0.0
    %2620 = vmatpush1.msra.mxu0 0.0
    %2621 = vmatprep.subr.mxu0 0.0
    %2622 = vmatpush1.msra.mxu0 0.0
    %2623 = vmatprep.subr.mxu0 0.0
    %2624 = vmatpush1.msra.mxu0 0.0
    %2625 = vmatprep.subr.mxu0 0.0
    %2626 = vmatpush1.msra.mxu0 0.0
    %2627 = vmatprep.subr.mxu0 0.0
    %2628 = vmatpush1.msra.mxu0 0.0
    %2629 = vmatprep.subr.mxu0 0.0
    %2630 = vmatpush1.msra.mxu0 0.0
    %2631 = vmatprep.subr.mxu0 0.0
    %2632 = vmatpush1.msra.mxu0 0.0
    %2633 = vmatprep.subr.mxu0 0.0
    %2634 = vmatpush1.msra.mxu0 0.0
    %2635 = vmatprep.mubr.f32.mxu0 0.0
    %2636 = vmatmul.mubr.f32.gmra.mrb[0].mxu0 %v2566
    %v2637 = vpop.f32.mrb[0].mxu0
    %v2638 = vadd.f32 0.0, %v2637
    %v2639 = vpop.f32.mrb[0].mxu0
    %2640 = vmatprep.mubr.f32.mxu0 0.0
    %2641 = vmatmul.mubr.f32.gmra.mrb[0].mxu0 %v2569
    %v2642 = vpop.f32.mrb[0].mxu0
    %v2643 = vadd.f32 0.0, %v2642
    %v2644 = vpop.f32.mrb[0].mxu0
    %2645 = vdwg.mxu0
    %v2647 = vsel %vm748, %v2084, 0
    %v2650 = vsel %vm748, %v2090, 0
    %v2653 = vsel %vm748, %v2161, 0
    %v2656 = vsel %vm748, %v2167, 0
    %2658 = vmatprep.subr.mxu0 0.0
    %2659 = vmatpush1.xpose.msra.mxu0 %v2653
    %2660 = vmatprep.subr.mxu0 0.0
    %2661 = vmatpush1.xpose.msra.mxu0 %v2656
    %2662 = vmatprep.subr.mxu0 0.0
    %2663 = vmatpush1.xpose.msra.mxu0 0.0
    %2664 = vmatprep.subr.mxu0 0.0
    %2665 = vmatpush1.xpose.msra.mxu0 0.0
    %2666 = vmatprep.subr.mxu0 0.0
    %2667 = vmatpush1.xpose.msra.mxu0 0.0
    %2668 = vmatprep.subr.mxu0 0.0
    %2669 = vmatpush1.xpose.msra.mxu0 0.0
    %2670 = vmatprep.subr.mxu0 0.0
    %2671 = vmatpush1.xpose.msra.mxu0 0.0
    %2672 = vmatprep.subr.mxu0 0.0
    %2673 = vmatpush1.xpose.msra.mxu0 0.0
    %2674 = vmatprep.subr.mxu0 0.0
    %2675 = vmatpush1.xpose.msra.mxu0 0.0
    %2676 = vmatprep.subr.mxu0 0.0
    %2677 = vmatpush1.xpose.msra.mxu0 0.0
    %2678 = vmatprep.subr.mxu0 0.0
    %2679 = vmatpush1.xpose.msra.mxu0 0.0
    %2680 = vmatprep.subr.mxu0 0.0
    %2681 = vmatpush1.xpose.msra.mxu0 0.0
    %2682 = vmatprep.subr.mxu0 0.0
    %2683 = vmatpush1.xpose.msra.mxu0 0.0
    %2684 = vmatprep.subr.mxu0 0.0
    %2685 = vmatpush1.xpose.msra.mxu0 0.0
    %2686 = vmatprep.subr.mxu0 0.0
    %2687 = vmatpush1.xpose.msra.mxu0 0.0
    %2688 = vmatprep.subr.mxu0 0.0
    %2689 = vmatpush1.xpose.msra.mxu0 0.0
    %2690 = vmatprep.subr.mxu0 0.0
    %2691 = vmatpush1.xpose.msra.mxu0 0.0
    %2692 = vmatprep.subr.mxu0 0.0
    %2693 = vmatpush1.xpose.msra.mxu0 0.0
    %2694 = vmatprep.subr.mxu0 0.0
    %2695 = vmatpush1.xpose.msra.mxu0 0.0
    %2696 = vmatprep.subr.mxu0 0.0
    %2697 = vmatpush1.xpose.msra.mxu0 0.0
    %2698 = vmatprep.subr.mxu0 0.0
    %2699 = vmatpush1.xpose.msra.mxu0 0.0
    %2700 = vmatprep.subr.mxu0 0.0
    %2701 = vmatpush1.xpose.msra.mxu0 0.0
    %2702 = vmatprep.subr.mxu0 0.0
    %2703 = vmatpush1.xpose.msra.mxu0 0.0
    %2704 = vmatprep.subr.mxu0 0.0
    %2705 = vmatpush1.xpose.msra.mxu0 0.0
    %2706 = vmatprep.subr.mxu0 0.0
    %2707 = vmatpush1.xpose.msra.mxu0 0.0
    %2708 = vmatprep.subr.mxu0 0.0
    %2709 = vmatpush1.xpose.msra.mxu0 0.0
    %2710 = vmatprep.subr.mxu0 0.0
    %2711 = vmatpush1.xpose.msra.mxu0 0.0
    %2712 = vmatprep.subr.mxu0 0.0
    %2713 = vmatpush1.xpose.msra.mxu0 0.0
    %2714 = vmatprep.subr.mxu0 0.0
    %2715 = vmatpush1.xpose.msra.mxu0 0.0
    %2716 = vmatprep.subr.mxu0 0.0
    %2717 = vmatpush1.xpose.msra.mxu0 0.0
    %2718 = vmatprep.subr.mxu0 0.0
    %2719 = vmatpush1.xpose.msra.mxu0 0.0
    %2720 = vmatprep.subr.mxu0 0.0
    %2721 = vmatpush1.xpose.msra.mxu0 0.0
    %2722 = vmatprep.mubr.f32.mxu0 0.0
    %2723 = vmatmul.mubr.f32.gmra.mrb[0].mxu0 %v2647
    %v2724 = vpop.f32.mrb[0].mxu0
    %v2725 = vadd.f32 0.0, %v2724
    %v2726 = vpop.f32.mrb[0].mxu0
    %2727 = vmatprep.mubr.f32.mxu0 0.0
    %2728 = vmatmul.mubr.f32.gmra.mrb[0].mxu0 %v2650
    %v2729 = vpop.f32.mrb[0].mxu0
    %v2730 = vadd.f32 0.0, %v2729
    %v2731 = vpop.f32.mrb[0].mxu0
    %2732 = vdwg.mxu0
    %v2733 = vmul.f32 %v2725, 0.125
    %v2734 = vmul.f32 %v2730, 0.125
    %v2735 = vadd.f32 %v2733, %v443
    %v2736 = vadd.f32 %v2734, %v444
    %v2737 = vsel %vm351, %v2735, -inf
    %2738 = vmax.xlane.f32.xlu0 %v2737
    %v2739 = vpop.xlane.xlu0 %2738
    %v2740 = vsel %vm351, %v2736, -inf
    %2741 = vmax.xlane.f32.xlu0 %v2740
    %v2742 = vpop.xlane.xlu0 %2741
    %v2743 = vsub.f32 %v2735, %v2739
    %v2744 = vsub.f32 %v2736, %v2742
    %v2745 = vmul.f32 %v2743, 1.442695
    %v2746 = vpow.pop %v2745
    %v2747 = vmul.f32 %v2744, 1.442695
    %v2748 = vpow.pop %v2747
    %v2749 = vsel %vm351, %v2746, 0.0
    %2750 = vadd.xlane.f32.xlu0 %v2749
    %v2751 = vpop.xlane.xlu0 %2750
    %v2752 = vsel %vm351, %v2748, 0.0
    %2753 = vadd.xlane.f32.xlu0 %v2752
    %v2754 = vpop.xlane.xlu0 %2753
    %v2755 = vrcp.pop %v2751
    %v2756 = vmul.f32 %v2746, %v2755
    %v2757 = vrcp.pop %v2754
    %v2758 = vmul.f32 %v2748, %v2757
    %v2760 = vsel %vm351, %v2756, 0
    %v2763 = vsel %vm351, %v2758, 0
    %2765 = vmatprep.subr.mxu0 0.0
    %2766 = vmatpush1.msra.mxu0 %v2238
    %2767 = vmatprep.subr.mxu0 0.0
    %2768 = vmatpush1.msra.mxu0 %v2244
    %2769 = vmatprep.subr.mxu0 0.0
    %2770 = vmatpush1.msra.mxu0 0.0
    %2771 = vmatprep.subr.mxu0 0.0
    %2772 = vmatpush1.msra.mxu0 0.0
    %2773 = vmatprep.subr.mxu0 0.0
    %2774 = vmatpush1.msra.mxu0 0.0
    %2775 = vmatprep.subr.mxu0 0.0
    %2776 = vmatpush1.msra.mxu0 0.0
    %2777 = vmatprep.subr.mxu0 0.0
    %2778 = vmatpush1.msra.mxu0 0.0
    %2779 = vmatprep.subr.mxu0 0.0
    %2780 = vmatpush1.msra.mxu0 0.0
    %2781 = vmatprep.subr.mxu0 0.0
    %2782 = vmatpush1.msra.mxu0 0.0
    %2783 = vmatprep.subr.mxu0 0.0
    %2784 = vmatpush1.msra.mxu0 0.0
    %2785 = vmatprep.subr.mxu0 0.0
    %2786 = vmatpush1.msra.mxu0 0.0
    %2787 = vmatprep.subr.mxu0 0.0
    %2788 = vmatpush1.msra.mxu0 0.0
    %2789 = vmatprep.subr.mxu0 0.0
    %2790 = vmatpush1.msra.mxu0 0.0
    %2791 = vmatprep.subr.mxu0 0.0
    %2792 = vmatpush1.msra.mxu0 0.0
    %2793 = vmatprep.subr.mxu0 0.0
    %2794 = vmatpush1.msra.mxu0 0.0
    %2795 = vmatprep.subr.mxu0 0.0
    %2796 = vmatpush1.msra.mxu0 0.0
    %2797 = vmatprep.subr.mxu0 0.0
    %2798 = vmatpush1.msra.mxu0 0.0
    %2799 = vmatprep.subr.mxu0 0.0
    %2800 = vmatpush1.msra.mxu0 0.0
    %2801 = vmatprep.subr.mxu0 0.0
    %2802 = vmatpush1.msra.mxu0 0.0
    %2803 = vmatprep.subr.mxu0 0.0
    %2804 = vmatpush1.msra.mxu0 0.0
    %2805 = vmatprep.subr.mxu0 0.0
    %2806 = vmatpush1.msra.mxu0 0.0
    %2807 = vmatprep.subr.mxu0 0.0
    %2808 = vmatpush1.msra.mxu0 0.0
    %2809 = vmatprep.subr.mxu0 0.0
    %2810 = vmatpush1.msra.mxu0 0.0
    %2811 = vmatprep.subr.mxu0 0.0
    %2812 = vmatpush1.msra.mxu0 0.0
    %2813 = vmatprep.subr.mxu0 0.0
    %2814 = vmatpush1.msra.mxu0 0.0
    %2815 = vmatprep.subr.mxu0 0.0
    %2816 = vmatpush1.msra.mxu0 0.0
    %2817 = vmatprep.subr.mxu0 0.0
    %2818 = vmatpush1.msra.mxu0 0.0
    %2819 = vmatprep.subr.mxu0 0.0
    %2820 = vmatpush1.msra.mxu0 0.0
    %2821 = vmatprep.subr.mxu0 0.0
    %2822 = vmatpush1.msra.mxu0 0.0
    %2823 = vmatprep.subr.mxu0 0.0
    %2824 = vmatpush1.msra.mxu0 0.0
    %2825 = vmatprep.subr.mxu0 0.0
    %2826 = vmatpush1.msra.mxu0 0.0
    %2827 = vmatprep.subr.mxu0 0.0
    %2828 = vmatpush1.msra.mxu0 0.0
    %2829 = vmatprep.mubr.f32.mxu0 0.0
    %2830 = vmatmul.mubr.f32.gmra.mrb[0].mxu0 %v2760
    %v2831 = vpop.f32.mrb[0].mxu0
    %v2832 = vadd.f32 0.0, %v2831
    %v2833 = vpop.f32.mrb[0].mxu0
    %2834 = vmatprep.mubr.f32.mxu0 0.0
    %2835 = vmatmul.mubr.f32.gmra.mrb[0].mxu0 %v2763
    %v2836 = vpop.f32.mrb[0].mxu0
    %v2837 = vadd.f32 0.0, %v2836
    %v2838 = vpop.f32.mrb[0].mxu0
    %2839 = vdwg.mxu0
    %2840 = vrot.lane.b32.xlu0 %v2084, 64
    %v2841 = vpop.permute.xlu0 %2840
    %2842 = vrot.lane.b32.xlu0 %v2090, 64
    %v2843 = vpop.permute.xlu0 %2842
    %2844 = vrot.lane.b32.xlu0 %v2161, 64
    %v2845 = vpop.permute.xlu0 %2844
    %2846 = vrot.lane.b32.xlu0 %v2167, 64
    %v2847 = vpop.permute.xlu0 %2846
    %v2848 = vsel %vm748, %v2841, 0
    %v2850 = vsel %vm748, %v2843, 0
    %v2852 = vsel %vm748, %v2845, 0
    %v2854 = vsel %vm748, %v2847, 0
    %2856 = vmatprep.subr.mxu0 0.0
    %2857 = vmatpush1.xpose.msra.mxu0 %v2852
    %2858 = vmatprep.subr.mxu0 0.0
    %2859 = vmatpush1.xpose.msra.mxu0 %v2854
    %2860 = vmatprep.subr.mxu0 0.0
    %2861 = vmatpush1.xpose.msra.mxu0 0.0
    %2862 = vmatprep.subr.mxu0 0.0
    %2863 = vmatpush1.xpose.msra.mxu0 0.0
    %2864 = vmatprep.subr.mxu0 0.0
    %2865 = vmatpush1.xpose.msra.mxu0 0.0
    %2866 = vmatprep.subr.mxu0 0.0
    %2867 = vmatpush1.xpose.msra.mxu0 0.0
    %2868 = vmatprep.subr.mxu0 0.0
    %2869 = vmatpush1.xpose.msra.mxu0 0.0
    %2870 = vmatprep.subr.mxu0 0.0
    %2871 = vmatpush1.xpose.msra.mxu0 0.0
    %2872 = vmatprep.subr.mxu0 0.0
    %2873 = vmatpush1.xpose.msra.mxu0 0.0
    %2874 = vmatprep.subr.mxu0 0.0
    %2875 = vmatpush1.xpose.msra.mxu0 0.0
    %2876 = vmatprep.subr.mxu0 0.0
    %2877 = vmatpush1.xpose.msra.mxu0 0.0
    %2878 = vmatprep.subr.mxu0 0.0
    %2879 = vmatpush1.xpose.msra.mxu0 0.0
    %2880 = vmatprep.subr.mxu0 0.0
    %2881 = vmatpush1.xpose.msra.mxu0 0.0
    %2882 = vmatprep.subr.mxu0 0.0
    %2883 = vmatpush1.xpose.msra.mxu0 0.0
    %2884 = vmatprep.subr.mxu0 0.0
    %2885 = vmatpush1.xpose.msra.mxu0 0.0
    %2886 = vmatprep.subr.mxu0 0.0
    %2887 = vmatpush1.xpose.msra.mxu0 0.0
    %2888 = vmatprep.subr.mxu0 0.0
    %2889 = vmatpush1.xpose.msra.mxu0 0.0
    %2890 = vmatprep.subr.mxu0 0.0
    %2891 = vmatpush1.xpose.msra.mxu0 0.0
    %2892 = vmatprep.subr.mxu0 0.0
    %2893 = vmatpush1.xpose.msra.mxu0 0.0
    %2894 = vmatprep.subr.mxu0 0.0
    %2895 = vmatpush1.xpose.msra.mxu0 0.0
    %2896 = vmatprep.subr.mxu0 0.0
    %2897 = vmatpush1.xpose.msra.mxu0 0.0
    %2898 = vmatprep.subr.mxu0 0.0
    %2899 = vmatpush1.xpose.msra.mxu0 0.0
    %2900 = vmatprep.subr.mxu0 0.0
    %2901 = vmatpush1.xpose.msra.mxu0 0.0
    %2902 = vmatprep.subr.mxu0 0.0
    %2903 = vmatpush1.xpose.msra.mxu0 0.0
    %2904 = vmatprep.subr.mxu0 0.0
    %2905 = vmatpush1.xpose.msra.mxu0 0.0
    %2906 = vmatprep.subr.mxu0 0.0
    %2907 = vmatpush1.xpose.msra.mxu0 0.0
    %2908 = vmatprep.subr.mxu0 0.0
    %2909 = vmatpush1.xpose.msra.mxu0 0.0
    %2910 = vmatprep.subr.mxu0 0.0
    %2911 = vmatpush1.xpose.msra.mxu0 0.0
    %2912 = vmatprep.subr.mxu0 0.0
    %2913 = vmatpush1.xpose.msra.mxu0 0.0
    %2914 = vmatprep.subr.mxu0 0.0
    %2915 = vmatpush1.xpose.msra.mxu0 0.0
    %2916 = vmatprep.subr.mxu0 0.0
    %2917 = vmatpush1.xpose.msra.mxu0 0.0
    %2918 = vmatprep.subr.mxu0 0.0
    %2919 = vmatpush1.xpose.msra.mxu0 0.0
    %2920 = vmatprep.mubr.f32.mxu0 0.0
    %2921 = vmatmul.mubr.f32.gmra.mrb[0].mxu0 %v2848
    %v2922 = vpop.f32.mrb[0].mxu0
    %v2923 = vadd.f32 0.0, %v2922
    %v2924 = vpop.f32.mrb[0].mxu0
    %2925 = vmatprep.mubr.f32.mxu0 0.0
    %2926 = vmatmul.mubr.f32.gmra.mrb[0].mxu0 %v2850
    %v2927 = vpop.f32.mrb[0].mxu0
    %v2928 = vadd.f32 0.0, %v2927
    %v2929 = vpop.f32.mrb[0].mxu0
    %2930 = vdwg.mxu0
    %v2931 = vmul.f32 %v2923, 0.125
    %v2932 = vmul.f32 %v2928, 0.125
    %v2933 = vadd.f32 %v2931, %v445
    %v2934 = vadd.f32 %v2932, %v446
    %v2935 = vsel %vm351, %v2933, -inf
    %2936 = vmax.xlane.f32.xlu0 %v2935
    %v2937 = vpop.xlane.xlu0 %2936
    %v2938 = vsel %vm351, %v2934, -inf
    %2939 = vmax.xlane.f32.xlu0 %v2938
    %v2940 = vpop.xlane.xlu0 %2939
    %v2941 = vsub.f32 %v2933, %v2937
    %v2942 = vsub.f32 %v2934, %v2940
    %v2943 = vmul.f32 %v2941, 1.442695
    %v2944 = vpow.pop %v2943
    %v2945 = vmul.f32 %v2942, 1.442695
    %v2946 = vpow.pop %v2945
    %v2947 = vsel %vm351, %v2944, 0.0
    %2948 = vadd.xlane.f32.xlu0 %v2947
    %v2949 = vpop.xlane.xlu0 %2948
    %v2950 = vsel %vm351, %v2946, 0.0
    %2951 = vadd.xlane.f32.xlu0 %v2950
    %v2952 = vpop.xlane.xlu0 %2951
    %v2953 = vrcp.pop %v2949
    %v2954 = vmul.f32 %v2944, %v2953
    %v2955 = vrcp.pop %v2952
    %v2956 = vmul.f32 %v2946, %v2955
    %2959 = vrot.lane.b32.xlu0 %v2238, 64
    %v2960 = vpop.permute.xlu0 %2959
    %2961 = vrot.lane.b32.xlu0 %v2244, 64
    %v2962 = vpop.permute.xlu0 %2961
    %v2966 = vsel %vm351, %v2954, 0
    %v2969 = vsel %vm351, %v2956, 0
    %2971 = vmatprep.subr.mxu0 0.0
    %2972 = vmatpush1.msra.mxu0 %v2960
    %2973 = vmatprep.subr.mxu0 0.0
    %2974 = vmatpush1.msra.mxu0 %v2962
    %2975 = vmatprep.subr.mxu0 0.0
    %2976 = vmatpush1.msra.mxu0 0.0
    %2977 = vmatprep.subr.mxu0 0.0
    %2978 = vmatpush1.msra.mxu0 0.0
    %2979 = vmatprep.subr.mxu0 0.0
    %2980 = vmatpush1.msra.mxu0 0.0
    %2981 = vmatprep.subr.mxu0 0.0
    %2982 = vmatpush1.msra.mxu0 0.0
    %2983 = vmatprep.subr.mxu0 0.0
    %2984 = vmatpush1.msra.mxu0 0.0
    %2985 = vmatprep.subr.mxu0 0.0
    %2986 = vmatpush1.msra.mxu0 0.0
    %2987 = vmatprep.subr.mxu0 0.0
    %2988 = vmatpush1.msra.mxu0 0.0
    %2989 = vmatprep.subr.mxu0 0.0
    %2990 = vmatpush1.msra.mxu0 0.0
    %2991 = vmatprep.subr.mxu0 0.0
    %2992 = vmatpush1.msra.mxu0 0.0
    %2993 = vmatprep.subr.mxu0 0.0
    %2994 = vmatpush1.msra.mxu0 0.0
    %2995 = vmatprep.subr.mxu0 0.0
    %2996 = vmatpush1.msra.mxu0 0.0
    %2997 = vmatprep.subr.mxu0 0.0
    %2998 = vmatpush1.msra.mxu0 0.0
    %2999 = vmatprep.subr.mxu0 0.0
    %3000 = vmatpush1.msra.mxu0 0.0
    %3001 = vmatprep.subr.mxu0 0.0
    %3002 = vmatpush1.msra.mxu0 0.0
    %3003 = vmatprep.subr.mxu0 0.0
    %3004 = vmatpush1.msra.mxu0 0.0
    %3005 = vmatprep.subr.mxu0 0.0
    %3006 = vmatpush1.msra.mxu0 0.0
    %3007 = vmatprep.subr.mxu0 0.0
    %3008 = vmatpush1.msra.mxu0 0.0
    %3009 = vmatprep.subr.mxu0 0.0
    %3010 = vmatpush1.msra.mxu0 0.0
    %3011 = vmatprep.subr.mxu0 0.0
    %3012 = vmatpush1.msra.mxu0 0.0
    %3013 = vmatprep.subr.mxu0 0.0
    %3014 = vmatpush1.msra.mxu0 0.0
    %3015 = vmatprep.subr.mxu0 0.0
    %3016 = vmatpush1.msra.mxu0 0.0
    %3017 = vmatprep.subr.mxu0 0.0
    %3018 = vmatpush1.msra.mxu0 0.0
    %3019 = vmatprep.subr.mxu0 0.0
    %3020 = vmatpush1.msra.mxu0 0.0
    %3021 = vmatprep.subr.mxu0 0.0
    %3022 = vmatpush1.msra.mxu0 0.0
    %3023 = vmatprep.subr.mxu0 0.0
    %3024 = vmatpush1.msra.mxu0 0.0
    %3025 = vmatprep.subr.mxu0 0.0
    %3026 = vmatpush1.msra.mxu0 0.0
    %3027 = vmatprep.subr.mxu0 0.0
    %3028 = vmatpush1.msra.mxu0 0.0
    %3029 = vmatprep.subr.mxu0 0.0
    %3030 = vmatpush1.msra.mxu0 0.0
    %3031 = vmatprep.subr.mxu0 0.0
    %3032 = vmatpush1.msra.mxu0 0.0
    %3033 = vmatprep.subr.mxu0 0.0
    %3034 = vmatpush1.msra.mxu0 0.0
    %3035 = vmatprep.mubr.f32.mxu0 0.0
    %3036 = vmatmul.mubr.f32.gmra.mrb[0].mxu0 %v2966
    %v3037 = vpop.f32.mrb[0].mxu0
    %v3038 = vadd.f32 0.0, %v3037
    %v3039 = vpop.f32.mrb[0].mxu0
    %3040 = vmatprep.mubr.f32.mxu0 0.0
    %3041 = vmatmul.mubr.f32.gmra.mrb[0].mxu0 %v2969
    %v3042 = vpop.f32.mrb[0].mxu0
    %v3043 = vadd.f32 0.0, %v3042
    %v3044 = vpop.f32.mrb[0].mxu0
    %3045 = vdwg.mxu0
    %3048 = vrot.lane.b32.xlu0 %v2638, 64
    %v3049 = vpop.permute.xlu0 %3048
    %3050 = vrot.lane.b32.xlu0 %v2643, 64
    %v3051 = vpop.permute.xlu0 %3050
    %3056 = vrot.lane.b32.xlu0 %v3038, 64
    %v3057 = vpop.permute.xlu0 %3056
    %3058 = vrot.lane.b32.xlu0 %v3043, 64
    %v3059 = vpop.permute.xlu0 %3058
    %v3062 = vsel %vm748, %v2432, %v3049
    %v3063 = vsel %vm748, %v2437, %v3051
    %v3064 = vsel %vm748, %v2832, %v3057
    %v3065 = vsel %vm748, %v2837, %v3059
    %s3066 = scalar_lea.vmem %s12, 384
    %v3067 = vld [vmem:[%s3066] sm:$0xff]
    %v3068 = vld [vmem:[%s3066 + $0x8] sm:$0xff]
    %v3069 = vld [vmem:[%s3066 + $0x10] sm:$0xff]
    %v3070 = vld [vmem:[%s3066 + $0x18] sm:$0xff]
    %v3071 = vld [vmem:[%s3066 + $0x20] sm:$0xff]
    %v3072 = vld [vmem:[%s3066 + $0x28] sm:$0xff]
    %v3073 = vld [vmem:[%s3066 + $0x30] sm:$0xff]
    %v3074 = vld [vmem:[%s3066 + $0x38] sm:$0xff]
    %v3075 = vld [vmem:[%s3066 + $0x40] sm:$0xff]
    %v3076 = vld [vmem:[%s3066 + $0x48] sm:$0xff]
    %v3077 = vld [vmem:[%s3066 + $0x50] sm:$0xff]
    %v3078 = vld [vmem:[%s3066 + $0x58] sm:$0xff]
    %v3079 = vld [vmem:[%s3066 + $0x60] sm:$0xff]
    %v3080 = vld [vmem:[%s3066 + $0x68] sm:$0xff]
    %v3081 = vld [vmem:[%s3066 + $0x70] sm:$0xff]
    %v3082 = vld [vmem:[%s3066 + $0x78] sm:$0xff]
    %v3083 = vld [vmem:[%s3066 + $0x80] sm:$0xff]
    %v3084 = vld [vmem:[%s3066 + $0x88] sm:$0xff]
    %v3085 = vld [vmem:[%s3066 + $0x90] sm:$0xff]
    %v3086 = vld [vmem:[%s3066 + $0x98] sm:$0xff]
    %v3087 = vld [vmem:[%s3066 + $0xa0] sm:$0xff]
    %v3088 = vld [vmem:[%s3066 + $0xa8] sm:$0xff]
    %v3089 = vld [vmem:[%s3066 + $0xb0] sm:$0xff]
    %v3090 = vld [vmem:[%s3066 + $0xb8] sm:$0xff]
    %v3091 = vld [vmem:[%s3066 + $0xc0] sm:$0xff]
    %v3092 = vld [vmem:[%s3066 + $0xc8] sm:$0xff]
    %v3093 = vld [vmem:[%s3066 + $0xd0] sm:$0xff]
    %v3094 = vld [vmem:[%s3066 + $0xd8] sm:$0xff]
    %v3095 = vld [vmem:[%s3066 + $0xe0] sm:$0xff]
    %v3096 = vld [vmem:[%s3066 + $0xe8] sm:$0xff]
    %v3097 = vld [vmem:[%s3066 + $0xf0] sm:$0xff]
    %v3098 = vld [vmem:[%s3066 + $0xf8] sm:$0xff]
    %3099 = vmatprep.subr.mxu0 0.0
    %3100 = vmatpush1.msra.mxu0 %v3067
    %3101 = vmatprep.subr.mxu0 0.0
    %3102 = vmatpush1.msra.mxu0 %v3068
    %3103 = vmatprep.subr.mxu0 0.0
    %3104 = vmatpush1.msra.mxu0 %v3069
    %3105 = vmatprep.subr.mxu0 0.0
    %3106 = vmatpush1.msra.mxu0 %v3070
    %3107 = vmatprep.subr.mxu0 0.0
    %3108 = vmatpush1.msra.mxu0 %v3071
    %3109 = vmatprep.subr.mxu0 0.0
    %3110 = vmatpush1.msra.mxu0 %v3072
    %3111 = vmatprep.subr.mxu0 0.0
    %3112 = vmatpush1.msra.mxu0 %v3073
    %3113 = vmatprep.subr.mxu0 0.0
    %3114 = vmatpush1.msra.mxu0 %v3074
    %3115 = vmatprep.subr.mxu0 0.0
    %3116 = vmatpush1.msra.mxu0 %v3075
    %3117 = vmatprep.subr.mxu0 0.0
    %3118 = vmatpush1.msra.mxu0 %v3076
    %3119 = vmatprep.subr.mxu0 0.0
    %3120 = vmatpush1.msra.mxu0 %v3077
    %3121 = vmatprep.subr.mxu0 0.0
    %3122 = vmatpush1.msra.mxu0 %v3078
    %3123 = vmatprep.subr.mxu0 0.0
    %3124 = vmatpush1.msra.mxu0 %v3079
    %3125 = vmatprep.subr.mxu0 0.0
    %3126 = vmatpush1.msra.mxu0 %v3080
    %3127 = vmatprep.subr.mxu0 0.0
    %3128 = vmatpush1.msra.mxu0 %v3081
    %3129 = vmatprep.subr.mxu0 0.0
    %3130 = vmatpush1.msra.mxu0 %v3082
    %3131 = vmatprep.subr.mxu0 0.0
    %3132 = vmatpush1.msra.mxu0 %v3083
    %3133 = vmatprep.subr.mxu0 0.0
    %3134 = vmatpush1.msra.mxu0 %v3084
    %3135 = vmatprep.subr.mxu0 0.0
    %3136 = vmatpush1.msra.mxu0 %v3085
    %3137 = vmatprep.subr.mxu0 0.0
    %3138 = vmatpush1.msra.mxu0 %v3086
    %3139 = vmatprep.subr.mxu0 0.0
    %3140 = vmatpush1.msra.mxu0 %v3087
    %3141 = vmatprep.subr.mxu0 0.0
    %3142 = vmatpush1.msra.mxu0 %v3088
    %3143 = vmatprep.subr.mxu0 0.0
    %3144 = vmatpush1.msra.mxu0 %v3089
    %3145 = vmatprep.subr.mxu0 0.0
    %3146 = vmatpush1.msra.mxu0 %v3090
    %3147 = vmatprep.subr.mxu0 0.0
    %3148 = vmatpush1.msra.mxu0 %v3091
    %3149 = vmatprep.subr.mxu0 0.0
    %3150 = vmatpush1.msra.mxu0 %v3092
    %3151 = vmatprep.subr.mxu0 0.0
    %3152 = vmatpush1.msra.mxu0 %v3093
    %3153 = vmatprep.subr.mxu0 0.0
    %3154 = vmatpush1.msra.mxu0 %v3094
    %3155 = vmatprep.subr.mxu0 0.0
    %3156 = vmatpush1.msra.mxu0 %v3095
    %3157 = vmatprep.subr.mxu0 0.0
    %3158 = vmatpush1.msra.mxu0 %v3096
    %3159 = vmatprep.subr.mxu0 0.0
    %3160 = vmatpush1.msra.mxu0 %v3097
    %3161 = vmatprep.subr.mxu0 0.0
    %3162 = vmatpush1.msra.mxu0 %v3098
    %3163 = vmatprep.mubr.f32.mxu0 %v3064
    %3164 = vmatmul.mubr.f32.gmra.mrb[0].mxu0 %v3062
    %v3165 = vpop.f32.mrb[0].mxu0
    %v3166 = vadd.f32 0.0, %v3165
    %v3167 = vpop.f32.mrb[0].mxu0
    %3168 = vmatprep.mubr.f32.mxu0 %v3065
    %3169 = vmatmul.mubr.f32.gmra.mrb[0].mxu0 %v3063
    %v3170 = vpop.f32.mrb[0].mxu0
    %v3171 = vadd.f32 0.0, %v3170
    %v3172 = vpop.f32.mrb[0].mxu0
    %3173 = vdwg.mxu0
    %v3174 = vadd.f32 %v1942, %v3166
    %v3175 = vadd.f32 %v1943, %v3171
    %v3176 = vlaneseq
    %v3177 = vshrl.u32 %v3176, 7
    %v3178 = vsub.s32 2, %v3177
    %v3179 = vrot.slane %v1945, %v3178
    %v3180 = vadd.f32 %v3174, %v3179
    %v3181 = vadd.f32 %v3175, %v3179
    %v3182 = vsel %vm62, %v3180, 0.0
    %3183 = vadd.xlane.f32.xlu0 %v3182
    %v3184 = vpop.xlane.xlu0 %3183
    %v3185 = vsel %vm62, %v3181, 0.0
    %3186 = vadd.xlane.f32.xlu0 %v3185
    %v3187 = vpop.xlane.xlu0 %3186
    %v3188 = vmul.f32 %v3184, %v454
    %v3189 = vmul.f32 %v3187, %v454
    %v3190 = vsub.f32 %v3180, %v3188
    %v3191 = vsub.f32 %v3181, %v3189
    %v3192 = vmul.f32 %v3190, %v3190
    %v3193 = vmul.f32 %v3191, %v3191
    %v3194 = vsel %vm62, %v3192, 0.0
    %3195 = vadd.xlane.f32.xlu0 %v3194
    %v3196 = vpop.xlane.xlu0 %3195
    %v3197 = vsel %vm62, %v3193, 0.0
    %3198 = vadd.xlane.f32.xlu0 %v3197
    %v3199 = vpop.xlane.xlu0 %3198
    %v3200 = vmul.f32 %v3196, %v454
    %v3201 = vmul.f32 %v3199, %v454
    %v3202 = vadd.f32 %v3200, 1e-05
    %v3203 = vadd.f32 %v3201, 1e-05
    %v3204 = vrsqrt.pop %v3202
    %v3205 = vrsqrt.pop %v3203
    %v3206 = vmul.f32 %v3190, %v3204
    %v3207 = vmul.f32 %v3191, %v3205
    %v3208 = vlaneseq
    %v3209 = vshrl.u32 %v3208, 7
    %v3210 = vsub.s32 3, %v3209
    %v3211 = vrot.slane %v1945, %v3210
    %v3212 = vmul.f32 %v3206, %v3211
    %v3213 = vmul.f32 %v3207, %v3211
    %v3214 = vlaneseq
    %v3215 = vshrl.u32 %v3214, 7
    %v3216 = vsub.s32 4, %v3215
    %v3217 = vrot.slane %v1945, %v3216
    %v3218 = vadd.f32 %v3212, %v3217
    %v3219 = vadd.f32 %v3213, %v3217
    %v3220 = vld [vmem:[%s1984 + $0x30] sm:$0xff]
    %v3221 = vld [vmem:[%s1984 + $0x38] sm:$0xff]
    %v3222 = vld [vmem:[%s1984 + $0x70] sm:$0xff]
    %v3223 = vld [vmem:[%s1984 + $0x78] sm:$0xff]
    %v3224 = vld [vmem:[%s1984 + $0xb0] sm:$0xff]
    %v3225 = vld [vmem:[%s1984 + $0xb8] sm:$0xff]
    %v3226 = vld [vmem:[%s1984 + $0xf0] sm:$0xff]
    %v3227 = vld [vmem:[%s1984 + $0xf8] sm:$0xff]
    %s3228 = scalar_lea.vmem %s11, 2
    %v3229 = vld [vmem:[%s3228] sm:$0x3]
    %v3231 = vlaneseq
    %v3232 = vshrl.u32 %v3231, 7
    %v3233 = vsub.s32 0, %v3232
    %v3234 = vrot.slane %v3229, %v3233
    %v3235 = vlaneseq
    %v3236 = vshrl.u32 %v3235, 7
    %v3237 = vsub.s32 1, %v3236
    %v3238 = vrot.slane %v3229, %v3237
    %v3242 = vsel %vm62, %v3218, 0
    %v3245 = vsel %vm62, %v3219, 0
    %3247 = vmatprep.subr.mxu0 %v3221
    %3248 = vmatpush1.msra.mxu0 %v3220
    %3249 = vmatprep.subr.mxu0 %v3223
    %3250 = vmatpush1.msra.mxu0 %v3222
    %3251 = vmatprep.subr.mxu0 %v3225
    %3252 = vmatpush1.msra.mxu0 %v3224
    %3253 = vmatprep.subr.mxu0 %v3227
    %3254 = vmatpush1.msra.mxu0 %v3226
    %3255 = vmatprep.subr.mxu0 0.0
    %3256 = vmatpush1.msra.mxu0 0.0
    %3257 = vmatprep.subr.mxu0 0.0
    %3258 = vmatpush1.msra.mxu0 0.0
    %3259 = vmatprep.subr.mxu0 0.0
    %3260 = vmatpush1.msra.mxu0 0.0
    %3261 = vmatprep.subr.mxu0 0.0
    %3262 = vmatpush1.msra.mxu0 0.0
    %3263 = vmatprep.subr.mxu0 0.0
    %3264 = vmatpush1.msra.mxu0 0.0
    %3265 = vmatprep.subr.mxu0 0.0
    %3266 = vmatpush1.msra.mxu0 0.0
    %3267 = vmatprep.subr.mxu0 0.0
    %3268 = vmatpush1.msra.mxu0 0.0
    %3269 = vmatprep.subr.mxu0 0.0
    %3270 = vmatpush1.msra.mxu0 0.0
    %3271 = vmatprep.subr.mxu0 0.0
    %3272 = vmatpush1.msra.mxu0 0.0
    %3273 = vmatprep.subr.mxu0 0.0
    %3274 = vmatpush1.msra.mxu0 0.0
    %3275 = vmatprep.subr.mxu0 0.0
    %3276 = vmatpush1.msra.mxu0 0.0
    %3277 = vmatprep.subr.mxu0 0.0
    %3278 = vmatpush1.msra.mxu0 0.0
    %3279 = vmatprep.subr.mxu0 0.0
    %3280 = vmatpush1.msra.mxu0 0.0
    %3281 = vmatprep.subr.mxu0 0.0
    %3282 = vmatpush1.msra.mxu0 0.0
    %3283 = vmatprep.subr.mxu0 0.0
    %3284 = vmatpush1.msra.mxu0 0.0
    %3285 = vmatprep.subr.mxu0 0.0
    %3286 = vmatpush1.msra.mxu0 0.0
    %3287 = vmatprep.subr.mxu0 0.0
    %3288 = vmatpush1.msra.mxu0 0.0
    %3289 = vmatprep.subr.mxu0 0.0
    %3290 = vmatpush1.msra.mxu0 0.0
    %3291 = vmatprep.subr.mxu0 0.0
    %3292 = vmatpush1.msra.mxu0 0.0
    %3293 = vmatprep.subr.mxu0 0.0
    %3294 = vmatpush1.msra.mxu0 0.0
    %3295 = vmatprep.subr.mxu0 0.0
    %3296 = vmatpush1.msra.mxu0 0.0
    %3297 = vmatprep.subr.mxu0 0.0
    %3298 = vmatpush1.msra.mxu0 0.0
    %3299 = vmatprep.subr.mxu0 0.0
    %3300 = vmatpush1.msra.mxu0 0.0
    %3301 = vmatprep.subr.mxu0 0.0
    %3302 = vmatpush1.msra.mxu0 0.0
    %3303 = vmatprep.subr.mxu0 0.0
    %3304 = vmatpush1.msra.mxu0 0.0
    %3305 = vmatprep.subr.mxu0 0.0
    %3306 = vmatpush1.msra.mxu0 0.0
    %3307 = vmatprep.subr.mxu0 0.0
    %3308 = vmatpush1.msra.mxu0 0.0
    %3309 = vmatprep.subr.mxu0 0.0
    %3310 = vmatpush1.msra.mxu0 0.0
    %3311 = vmatprep.mubr.f32.mxu0 0.0
    %3312 = vmatmul.mubr.f32.gmra.mrb[0].mxu0 %v3242
    %v3313 = vpop.f32.mrb[0].mxu0
    %v3314 = vadd.f32 %v3234, %v3313
    %v3315 = vpop.f32.mrb[0].mxu0
    %v3316 = vadd.f32 %v3238, %v3315
    %3317 = vmatprep.mubr.f32.mxu0 0.0
    %3318 = vmatmul.mubr.f32.gmra.mrb[0].mxu0 %v3245
    %v3319 = vpop.f32.mrb[0].mxu0
    %v3320 = vadd.f32 %v3234, %v3319
    %v3321 = vpop.f32.mrb[0].mxu0
    %v3322 = vadd.f32 %v3238, %v3321
    %3323 = vdwg.mxu0
    %v3324 = vmul.f32 %v3316, %v3316
    %v3325 = vmul.f32 %v3322, %v3322
    %v3326 = vmul.f32 %v3316, %v3324
    %v3327 = vmul.f32 %v3322, %v3325
    %v3328 = vmul.f32 %v3326, 0.044715
    %v3329 = vmul.f32 %v3327, 0.044715
    %v3330 = vadd.f32 %v3316, %v3328
    %v3331 = vadd.f32 %v3322, %v3329
    %v3332 = vmul.f32 %v3330, 0.7978846
    %v3333 = vmul.f32 %v3331, 0.7978846
    %v3334 = vtanh.pop %v3332
    %v3335 = vtanh.pop %v3333
    %v3336 = vadd.f32 %v3334, 1.0
    %v3337 = vadd.f32 %v3335, 1.0
    %v3338 = vmul.f32 %v3336, 0.5
    %v3339 = vmul.f32 %v3337, 0.5
    %v3340 = vmul.f32 %v3316, %v3338
    %v3341 = vmul.f32 %v3322, %v3339
    %v3342 = vmul.f32 %v3314, %v3340
    %v3343 = vmul.f32 %v3320, %v3341
    %v3344 = vld [vmem:[%s3066 + $0x100] sm:$0xff]
    %v3345 = vld [vmem:[%s3066 + $0x108] sm:$0xff]
    %v3346 = vld [vmem:[%s3066 + $0x110] sm:$0xff]
    %v3347 = vld [vmem:[%s3066 + $0x118] sm:$0xff]
    %v3348 = vld [vmem:[%s3066 + $0x120] sm:$0xff]
    %v3349 = vld [vmem:[%s3066 + $0x128] sm:$0xff]
    %v3350 = vld [vmem:[%s3066 + $0x130] sm:$0xff]
    %v3351 = vld [vmem:[%s3066 + $0x138] sm:$0xff]
    %v3352 = vld [vmem:[%s3066 + $0x140] sm:$0xff]
    %v3353 = vld [vmem:[%s3066 + $0x148] sm:$0xff]
    %v3354 = vld [vmem:[%s3066 + $0x150] sm:$0xff]
    %v3355 = vld [vmem:[%s3066 + $0x158] sm:$0xff]
    %v3356 = vld [vmem:[%s3066 + $0x160] sm:$0xff]
    %v3357 = vld [vmem:[%s3066 + $0x168] sm:$0xff]
    %v3358 = vld [vmem:[%s3066 + $0x170] sm:$0xff]
    %v3359 = vld [vmem:[%s3066 + $0x178] sm:$0xff]
    %3360 = vmatprep.subr.mxu0 0.0
    %3361 = vmatpush1.msra.mxu0 %v3344
    %3362 = vmatprep.subr.mxu0 0.0
    %3363 = vmatpush1.msra.mxu0 %v3345
    %3364 = vmatprep.subr.mxu0 0.0
    %3365 = vmatpush1.msra.mxu0 %v3346
    %3366 = vmatprep.subr.mxu0 0.0
    %3367 = vmatpush1.msra.mxu0 %v3347
    %3368 = vmatprep.subr.mxu0 0.0
    %3369 = vmatpush1.msra.mxu0 %v3348
    %3370 = vmatprep.subr.mxu0 0.0
    %3371 = vmatpush1.msra.mxu0 %v3349
    %3372 = vmatprep.subr.mxu0 0.0
    %3373 = vmatpush1.msra.mxu0 %v3350
    %3374 = vmatprep.subr.mxu0 0.0
    %3375 = vmatpush1.msra.mxu0 %v3351
    %3376 = vmatprep.subr.mxu0 0.0
    %3377 = vmatpush1.msra.mxu0 %v3352
    %3378 = vmatprep.subr.mxu0 0.0
    %3379 = vmatpush1.msra.mxu0 %v3353
    %3380 = vmatprep.subr.mxu0 0.0
    %3381 = vmatpush1.msra.mxu0 %v3354
    %3382 = vmatprep.subr.mxu0 0.0
    %3383 = vmatpush1.msra.mxu0 %v3355
    %3384 = vmatprep.subr.mxu0 0.0
    %3385 = vmatpush1.msra.mxu0 %v3356
    %3386 = vmatprep.subr.mxu0 0.0
    %3387 = vmatpush1.msra.mxu0 %v3357
    %3388 = vmatprep.subr.mxu0 0.0
    %3389 = vmatpush1.msra.mxu0 %v3358
    %3390 = vmatprep.subr.mxu0 0.0
    %3391 = vmatpush1.msra.mxu0 %v3359
    %3392 = vmatprep.subr.mxu0 0.0
    %3393 = vmatpush1.msra.mxu0 0.0
    %3394 = vmatprep.subr.mxu0 0.0
    %3395 = vmatpush1.msra.mxu0 0.0
    %3396 = vmatprep.subr.mxu0 0.0
    %3397 = vmatpush1.msra.mxu0 0.0
    %3398 = vmatprep.subr.mxu0 0.0
    %3399 = vmatpush1.msra.mxu0 0.0
    %3400 = vmatprep.subr.mxu0 0.0
    %3401 = vmatpush1.msra.mxu0 0.0
    %3402 = vmatprep.subr.mxu0 0.0
    %3403 = vmatpush1.msra.mxu0 0.0
    %3404 = vmatprep.subr.mxu0 0.0
    %3405 = vmatpush1.msra.mxu0 0.0
    %3406 = vmatprep.subr.mxu0 0.0
    %3407 = vmatpush1.msra.mxu0 0.0
    %3408 = vmatprep.subr.mxu0 0.0
    %3409 = vmatpush1.msra.mxu0 0.0
    %3410 = vmatprep.subr.mxu0 0.0
    %3411 = vmatpush1.msra.mxu0 0.0
    %3412 = vmatprep.subr.mxu0 0.0
    %3413 = vmatpush1.msra.mxu0 0.0
    %3414 = vmatprep.subr.mxu0 0.0
    %3415 = vmatpush1.msra.mxu0 0.0
    %3416 = vmatprep.subr.mxu0 0.0
    %3417 = vmatpush1.msra.mxu0 0.0
    %3418 = vmatprep.subr.mxu0 0.0
    %3419 = vmatpush1.msra.mxu0 0.0
    %3420 = vmatprep.subr.mxu0 0.0
    %3421 = vmatpush1.msra.mxu0 0.0
    %3422 = vmatprep.subr.mxu0 0.0
    %3423 = vmatpush1.msra.mxu0 0.0
    %3424 = vmatprep.mubr.f32.mxu0 0.0
    %3425 = vmatmul.mubr.f32.gmra.mrb[0].mxu0 %v3342
    %v3426 = vpop.f32.mrb[0].mxu0
    %v3427 = vadd.f32 0.0, %v3426
    %v3428 = vpop.f32.mrb[0].mxu0
    %3429 = vmatprep.mubr.f32.mxu0 0.0
    %3430 = vmatmul.mubr.f32.gmra.mrb[0].mxu0 %v3343
    %v3431 = vpop.f32.mrb[0].mxu0
    %v3432 = vadd.f32 0.0, %v3431
    %v3433 = vpop.f32.mrb[0].mxu0
    %3434 = vdwg.mxu0
    %v3435 = vadd.f32 %v3180, %v3427
    %v3436 = vadd.f32 %v3181, %v3432
    %v3437 = vlaneseq
    %v3438 = vshrl.u32 %v3437, 7
    %v3439 = vsub.s32 5, %v3438
    %v3440 = vrot.slane %v1945, %v3439
    %v3441 = vadd.f32 %v3435, %v3440
    %v3442 = vadd.f32 %v3436, %v3440
    %v3443 = vsel %vm62, %v3441, 0.0
    %3444 = vadd.xlane.f32.xlu0 %v3443
    %v3445 = vpop.xlane.xlu0 %3444
    %v3446 = vsel %vm62, %v3442, 0.0
    %3447 = vadd.xlane.f32.xlu0 %v3446
    %v3448 = vpop.xlane.xlu0 %3447
    %v3449 = vmul.f32 %v3445, %v454
    %v3450 = vmul.f32 %v3448, %v454
    %v3451 = vsub.f32 %v3441, %v3449
    %v3452 = vsub.f32 %v3442, %v3450
    %v3453 = vmul.f32 %v3451, %v3451
    %v3454 = vmul.f32 %v3452, %v3452
    %v3455 = vsel %vm62, %v3453, 0.0
    %3456 = vadd.xlane.f32.xlu0 %v3455
    %v3457 = vpop.xlane.xlu0 %3456
    %v3458 = vsel %vm62, %v3454, 0.0
    %3459 = vadd.xlane.f32.xlu0 %v3458
    %v3460 = vpop.xlane.xlu0 %3459
    %v3461 = vmul.f32 %v3457, %v454
    %v3462 = vmul.f32 %v3460, %v454
    %v3463 = vadd.f32 %v3461, 1e-05
    %v3464 = vadd.f32 %v3462, 1e-05
    %v3465 = vrsqrt.pop %v3463
    %v3466 = vrsqrt.pop %v3464
    %v3467 = vmul.f32 %v3451, %v3465
    %v3468 = vmul.f32 %v3452, %v3466
    %v3469 = vlaneseq
    %v3470 = vshrl.u32 %v3469, 7
    %v3471 = vsub.s32 2, %v3470
    %v3472 = vrot.slane %v51, %v3471
    %v3473 = vmul.f32 %v3467, %v3472
    %v3474 = vmul.f32 %v3468, %v3472
    %v3475 = vlaneseq
    %v3476 = vshrl.u32 %v3475, 7
    %v3477 = vsub.s32 3, %v3476
    %v3478 = vrot.slane %v51, %v3477
    %v3479 = vadd.f32 %v3473, %v3478
    %v3480 = vadd.f32 %v3474, %v3478
    %v3481 = vsel %vm62, %v3479, 0.0
    %3482 = vadd.xlane.f32.xlu0 %v3481
    %v3483 = vpop.xlane.xlu0 %3482
    %v3484 = vsel %vm62, %v3480, 0.0
    %3485 = vadd.xlane.f32.xlu0 %v3484
    %v3486 = vpop.xlane.xlu0 %3485
    %v3487 = vmul.f32 %v3483, %v454
    %v3488 = vmul.f32 %v3486, %v454
    %v3489 = vsub.f32 %v3479, %v3487
    %v3490 = vsub.f32 %v3480, %v3488
    %v3491 = vmul.f32 %v3489, %v3489
    %v3492 = vmul.f32 %v3490, %v3490
    %v3493 = vsel %vm62, %v3491, 0.0
    %3494 = vadd.xlane.f32.xlu0 %v3493
    %v3495 = vpop.xlane.xlu0 %3494
    %v3496 = vsel %vm62, %v3492, 0.0
    %3497 = vadd.xlane.f32.xlu0 %v3496
    %v3498 = vpop.xlane.xlu0 %3497
    %v3499 = vmul.f32 %v3495, %v454
    %v3500 = vmul.f32 %v3498, %v454
    %v3501 = vadd.f32 %v3499, 1e-05
    %v3502 = vadd.f32 %v3500, 1e-05
    %v3503 = vrsqrt.pop %v3501
    %v3504 = vrsqrt.pop %v3502
    %v3505 = vmul.f32 %v3489, %v3503
    %v3506 = vmul.f32 %v3490, %v3504
    %v3507 = vlaneseq
    %v3508 = vshrl.u32 %v3507, 7
    %v3509 = vsub.s32 4, %v3508
    %v3510 = vrot.slane %v51, %v3509
    %v3511 = vmul.f32 %v3505, %v3510
    %v3512 = vmul.f32 %v3506, %v3510
    %v3513 = vlaneseq
    %v3514 = vshrl.u32 %v3513, 7
    %v3515 = vsub.s32 5, %v3514
    %v3516 = vrot.slane %v51, %v3515
    %v3517 = vadd.f32 %v3511, %v3516
    %v3518 = vadd.f32 %v3512, %v3516
    %v3519 = vld [vmem:[%s13] sm:$0xff]
    %v3520 = vld [vmem:[%s13 + $0x8] sm:$0xff]
    %v3521 = vld [vmem:[%s13 + $0x10] sm:$0xff]
    %v3522 = vld [vmem:[%s13 + $0x18] sm:$0xff]
    %v3523 = vld [vmem:[%s14] sm:$0x1]
    %v3525 = vlaneseq
    %v3526 = vshrl.u32 %v3525, 7
    %v3527 = vsub.s32 0, %v3526
    %v3528 = vrot.slane %v3523, %v3527
    %v3531 = vsel %vm62, %v3517, 0
    %v3534 = vsel %vm62, %v3518, 0
    %3536 = vmatprep.subr.mxu0 0.0
    %3537 = vmatpush1.msra.mxu0 %v3519
    %3538 = vmatprep.subr.mxu0 0.0
    %3539 = vmatpush1.msra.mxu0 %v3520
    %3540 = vmatprep.subr.mxu0 0.0
    %3541 = vmatpush1.msra.mxu0 %v3521
    %3542 = vmatprep.subr.mxu0 0.0
    %3543 = vmatpush1.msra.mxu0 %v3522
    %3544 = vmatprep.subr.mxu0 0.0
    %3545 = vmatpush1.msra.mxu0 0.0
    %3546 = vmatprep.subr.mxu0 0.0
    %3547 = vmatpush1.msra.mxu0 0.0
    %3548 = vmatprep.subr.mxu0 0.0
    %3549 = vmatpush1.msra.mxu0 0.0
    %3550 = vmatprep.subr.mxu0 0.0
    %3551 = vmatpush1.msra.mxu0 0.0
    %3552 = vmatprep.subr.mxu0 0.0
    %3553 = vmatpush1.msra.mxu0 0.0
    %3554 = vmatprep.subr.mxu0 0.0
    %3555 = vmatpush1.msra.mxu0 0.0
    %3556 = vmatprep.subr.mxu0 0.0
    %3557 = vmatpush1.msra.mxu0 0.0
    %3558 = vmatprep.subr.mxu0 0.0
    %3559 = vmatpush1.msra.mxu0 0.0
    %3560 = vmatprep.subr.mxu0 0.0
    %3561 = vmatpush1.msra.mxu0 0.0
    %3562 = vmatprep.subr.mxu0 0.0
    %3563 = vmatpush1.msra.mxu0 0.0
    %3564 = vmatprep.subr.mxu0 0.0
    %3565 = vmatpush1.msra.mxu0 0.0
    %3566 = vmatprep.subr.mxu0 0.0
    %3567 = vmatpush1.msra.mxu0 0.0
    %3568 = vmatprep.subr.mxu0 0.0
    %3569 = vmatpush1.msra.mxu0 0.0
    %3570 = vmatprep.subr.mxu0 0.0
    %3571 = vmatpush1.msra.mxu0 0.0
    %3572 = vmatprep.subr.mxu0 0.0
    %3573 = vmatpush1.msra.mxu0 0.0
    %3574 = vmatprep.subr.mxu0 0.0
    %3575 = vmatpush1.msra.mxu0 0.0
    %3576 = vmatprep.subr.mxu0 0.0
    %3577 = vmatpush1.msra.mxu0 0.0
    %3578 = vmatprep.subr.mxu0 0.0
    %3579 = vmatpush1.msra.mxu0 0.0
    %3580 = vmatprep.subr.mxu0 0.0
    %3581 = vmatpush1.msra.mxu0 0.0
    %3582 = vmatprep.subr.mxu0 0.0
    %3583 = vmatpush1.msra.mxu0 0.0
    %3584 = vmatprep.subr.mxu0 0.0
    %3585 = vmatpush1.msra.mxu0 0.0
    %3586 = vmatprep.subr.mxu0 0.0
    %3587 = vmatpush1.msra.mxu0 0.0
    %3588 = vmatprep.subr.mxu0 0.0
    %3589 = vmatpush1.msra.mxu0 0.0
    %3590 = vmatprep.subr.mxu0 0.0
    %3591 = vmatpush1.msra.mxu0 0.0
    %3592 = vmatprep.subr.mxu0 0.0
    %3593 = vmatpush1.msra.mxu0 0.0
    %3594 = vmatprep.subr.mxu0 0.0
    %3595 = vmatpush1.msra.mxu0 0.0
    %3596 = vmatprep.subr.mxu0 0.0
    %3597 = vmatpush1.msra.mxu0 0.0
    %3598 = vmatprep.subr.mxu0 0.0
    %3599 = vmatpush1.msra.mxu0 0.0
    %3600 = vmatprep.mubr.f32.mxu0 0.0
    %3601 = vmatmul.mubr.f32.gmra.mrb[0].mxu0 %v3531
    %v3602 = vpop.f32.mrb[0].mxu0
    %v3603 = vadd.f32 %v3528, %v3602
    %v3604 = vpop.f32.mrb[0].mxu0
    %3605 = vmatprep.mubr.f32.mxu0 0.0
    %3606 = vmatmul.mubr.f32.gmra.mrb[0].mxu0 %v3534
    %v3607 = vpop.f32.mrb[0].mxu0
    %v3608 = vadd.f32 %v3528, %v3607
    %v3609 = vpop.f32.mrb[0].mxu0
    %3610 = vdwg.mxu0
    %3611 = vst.msk [vmem:[#allocation2] sm:$0xff] %vm351, %v3603
    %3612 = vst.msk [vmem:[#allocation2 + $0x8] sm:$0xff] %vm351, %v3608
    // Predicated region
    $region62: #{forward.1} parent=1 // pred_check
      _
    $region63: #{forward.1} parent=1 // pred_check_branch
      %3614 = sbr.rel (0) target = $region65
    $region64: #{forward.1} parent=1 // pred_region
      %s3616 = ssub.s32 256, 256
      %3617 = vsyncadd [#allocation3], %s3616
      %s3618 = sshll.u32 [#allocation2], 4
      %s3619 = int_to_ptr.vmem [resolvable:$true] %s3618
      %3624 = dma.vmem_to_hbm [thread:$0]  %s3619, 256, %s15, [#allocation3], 128, 128, 8
    $region65: #{forward.1} parent=1 // pred_fallthru
      _
    // Predicated region
    $region66: #{forward.1} parent=1 // pred_check
      _
    $region67: #{forward.1} parent=1 // pred_check_branch
      %3626 = sbr.rel (0) target = $region69
    $region68: #{forward.1} parent=1 // pred_region
      %3627 = dma.done [#allocation3], 256
    $region69: #{forward.1} parent=1 // pred_fallthru
      _
    %3628 = vsyncpa [#allocation3], 1

</llo_original>
